<compile_context>
chip_gen: v7x
topology: tpu7x:2x2x1
jax: 0.10.0
libtpu: 0.0.40
codegen_flags: <defaults>
</compile_context>

<pallas_src>
import functools

import jax
import jax.numpy as jnp
from jax import lax
from jax.experimental import pallas as pl
from jax.experimental.pallas import tpu as pltpu


def lstm_chunk_kernel(emb_f_ref, emb_b_ref,
                      w_in_f_ref, w_in_b_ref, b_in_f_ref, b_in_b_ref,
                      whh_f_ref, whh_b_ref,
                      wfc_f_ref, wfc_b_ref, bfc_ref,
                      out_ref,
                      pre_f_ref, pre_b_ref,
                      h_f_ref, c_f_ref, h_b_ref, c_b_ref,
                      *, chunk_T, Bp, H, unroll, compute_dtype):
    """One grid step = one time chunk of the bidirectional LSTM recurrence.

    emb_f_ref : (chunk_T*Bp, E)  embeddings, fwd-direction chunk (compute dtype)
    emb_b_ref : (chunk_T*Bp, E)  embeddings, bwd-direction chunk (reversed chunk idx)
    w_in_*    : (E, 4H)          input weights, gate order [i,f,o,g]
    b_in_*    : (1, 4H) f32      b_ih + b_hh
    whh_*     : (H, 4H)          recurrent weights
    wfc_*     : (H, Cpad)        fc weight halves (fwd / bwd hidden), zero-padded
    bfc_ref   : (1, Cpad) f32
    out_ref   : (Bp, Cpad) f32   written on the last chunk only
    pre_*_ref : (chunk_T*Bp, 4H) f32 scratch, hoisted input projections
    h/c refs  : (Bp, H) f32 scratch carries, persistent across grid steps
    """
    step = pl.program_id(0)

    # ---- init carries on the first chunk --------------------------------
    @pl.when(step == 0)
    def _():
        h_f_ref[...] = jnp.zeros_like(h_f_ref)
        c_f_ref[...] = jnp.zeros_like(c_f_ref)
        h_b_ref[...] = jnp.zeros_like(h_b_ref)
        c_b_ref[...] = jnp.zeros_like(c_b_ref)

    # ---- hoisted input projections for this chunk (one MXU call / direction) ----
    pre_f_ref[...] = (jnp.dot(emb_f_ref[...], w_in_f_ref[...],
                              preferred_element_type=jnp.float32)
                      + b_in_f_ref[...])
    pre_b_ref[...] = (jnp.dot(emb_b_ref[...], w_in_b_ref[...],
                              preferred_element_type=jnp.float32)
                      + b_in_b_ref[...])

    whh_f = whh_f_ref[...]
    whh_b = whh_b_ref[...]
    H3 = 3 * H

    def sigmoid_fast(x):
        # sigmoid(x) = 1 / (1 + exp(-x)); EUP exp + approximate reciprocal.
        return pl.reciprocal(1.0 + jnp.exp(-x), approx=True)

    def cell(pre, h, c, whh):
        gates = pre + jnp.dot(h.astype(compute_dtype), whh,
                              preferred_element_type=jnp.float32)   # (Bp, 4H) f32
        s = sigmoid_fast(gates[:, :H3])            # [i | f | o] contiguous slab
        g = jnp.tanh(gates[:, H3:])
        c_new = s[:, H:2 * H] * c + s[:, :H] * g
        h_new = s[:, 2 * H:H3] * jnp.tanh(c_new)
        return h_new, c_new

    def body(t, carry):
        h_f, c_f, h_b, c_b = carry
        rf = pl.multiple_of(t * Bp, Bp)                     # sublane-aligned
        rb = pl.multiple_of((chunk_T - 1 - t) * Bp, Bp)     # sublane-aligned
        h_f, c_f = cell(pre_f_ref[pl.ds(rf, Bp), :], h_f, c_f, whh_f)
        h_b, c_b = cell(pre_b_ref[pl.ds(rb, Bp), :], h_b, c_b, whh_b)
        return h_f, c_f, h_b, c_b

    carry0 = (h_f_ref[...], c_f_ref[...], h_b_ref[...], c_b_ref[...])
    h_f, c_f, h_b, c_b = lax.fori_loop(0, chunk_T, body, carry0, unroll=unroll)

    h_f_ref[...] = h_f
    c_f_ref[...] = c_f
    h_b_ref[...] = h_b
    c_b_ref[...] = c_b

    # ---- classifier head on the last chunk; lane-dense padded store ------
    @pl.when(step == pl.num_programs(0) - 1)
    def _():
        out_ref[...] = (jnp.dot(h_f.astype(compute_dtype), wfc_f_ref[...],
                                preferred_element_type=jnp.float32)
                        + jnp.dot(h_b.astype(compute_dtype), wfc_b_ref[...],
                                  preferred_element_type=jnp.float32)
                        + bfc_ref[...])


@functools.partial(jax.jit, static_argnames=("weight_dtype", "time_chunk", "unroll"))
def simple_lstm_forward(embeddings, params, *, weight_dtype=jnp.bfloat16,
                        time_chunk=None, unroll=None):
    """embeddings: (T, B, E) float32.  Returns logits (B, num_classes)."""
    (wih_f_T, whh_f_T, b_f, wih_b_T, whh_b_T, b_b, wfc_T, b_fc) = params
    T, B, E = embeddings.shape
    H = whh_f_T.shape[0]
    C = wfc_T.shape[1]

    Bp = 8 * pl.cdiv(B, 8)                 # pad batch to full sublane tiles
    C_pad = 128 * pl.cdiv(C, 128)          # lane-dense output width

    if time_chunk is None:
        time_chunk = T if T <= 64 else next(
            c for c in (64, 32, 16, 8, 4, 2, 1) if T % c == 0)
    assert T % time_chunk == 0, "sequence length must be divisible by time_chunk"
    n_chunks = T // time_chunk
    if unroll is None:
        unroll = max(1, min(time_chunk, 8))

    def reorder(w):  # PyTorch gate order [i,f,g,o] -> [i,f,o,g] along last dim
        return jnp.concatenate(
            [w[..., :2 * H], w[..., 3 * H:], w[..., 2 * H:3 * H]], axis=-1)

    # Fused / padded parameter layout (built once; fused by XLA under jit).
    w_in_f = reorder(wih_f_T).astype(weight_dtype)          # (E, 4H)
    w_in_b = reorder(wih_b_T).astype(weight_dtype)
    b_in_f = reorder(b_f).astype(jnp.float32)               # (1, 4H), b_ih + b_hh
    b_in_b = reorder(b_b).astype(jnp.float32)
    whh_f = reorder(whh_f_T).astype(weight_dtype)           # (H, 4H)
    whh_b = reorder(whh_b_T).astype(weight_dtype)
    wfc_f = jnp.zeros((H, C_pad), weight_dtype).at[:, :C].set(
        wfc_T[:H].astype(weight_dtype))
    wfc_b = jnp.zeros((H, C_pad), weight_dtype).at[:, :C].set(
        wfc_T[H:].astype(weight_dtype))
    bfc_pad = jnp.zeros((1, C_pad), jnp.float32).at[:, :C].set(b_fc)

    # Batch-padded, time-major embedding rows in the compute dtype.
    emb_p = jnp.zeros((T, Bp, E), weight_dtype).at[:, :B, :].set(
        embeddings.astype(weight_dtype))
    emb2d = emb_p.reshape(T * Bp, E)

    rows = time_chunk * Bp
    full = lambda a: pl.BlockSpec(a.shape, lambda i: (0,) * a.ndim)

    out_pad = pl.pallas_call(
        functools.partial(lstm_chunk_kernel, chunk_T=time_chunk, Bp=Bp, H=H,
                          unroll=unroll, compute_dtype=weight_dtype),
        out_shape=jax.ShapeDtypeStruct((Bp, C_pad), jnp.float32),
        grid_spec=pltpu.PrefetchScalarGridSpec(
            num_scalar_prefetch=0,
            grid=(n_chunks,),
            in_specs=[
                pl.BlockSpec((rows, E), lambda i: (i, 0)),                 # emb, fwd chunk
                pl.BlockSpec((rows, E), lambda i: (n_chunks - 1 - i, 0)),  # emb, bwd chunk
                full(w_in_f), full(w_in_b), full(b_in_f), full(b_in_b),
                full(whh_f), full(whh_b), full(wfc_f), full(wfc_b), full(bfc_pad),
            ],
            out_specs=pl.BlockSpec((Bp, C_pad), lambda i: (0, 0)),
            scratch_shapes=[
                pltpu.VMEM((rows, 4 * H), jnp.float32),   # pre_f
                pltpu.VMEM((rows, 4 * H), jnp.float32),   # pre_b
                pltpu.VMEM((Bp, H), jnp.float32),         # h_f carry
                pltpu.VMEM((Bp, H), jnp.float32),         # c_f carry
                pltpu.VMEM((Bp, H), jnp.float32),         # h_b carry
                pltpu.VMEM((Bp, H), jnp.float32),         # c_b carry
            ]),
        compiler_params=pltpu.CompilerParams(
            dimension_semantics=("arbitrary",)),
    )(emb2d, emb2d, w_in_f, w_in_b, b_in_f, b_in_b,
      whh_f, whh_b, wfc_f, wfc_b, bfc_pad)

    return out_pad[:B, :C]


def reference_forward(emb, params, compute_dtype=jnp.float32):
    """Pure-JAX reference of the same math (PyTorch gate order i,f,g,o).

    compute_dtype mirrors the kernel's matmul-input dtype (weights/activations
    cast to it, f32 accumulation); gate/cell math stays f32.
    """
    (wih_f_T, whh_f_T, b_f, wih_b_T, whh_b_T, b_b, wfc_T, b_fc) = params
    T, B, E = emb.shape
    H = whh_f_T.shape[0]
    cd = compute_dtype

    def mm(x, w):
        return jnp.dot(x.astype(cd), w.astype(cd),
                       preferred_element_type=jnp.float32)

    def run(xs, wih, whh, b):
        def cell(carry, x):
            h, c = carry
            gates = mm(x, wih) + mm(h, whh) + b
            i = jax.nn.sigmoid(gates[:, 0:H])
            f = jax.nn.sigmoid(gates[:, H:2 * H])
            g = jnp.tanh(gates[:, 2 * H:3 * H])
            o = jax.nn.sigmoid(gates[:, 3 * H:4 * H])
            c = f * c + i * g
            h = o * jnp.tanh(c)
            return (h, c), None
        init = (jnp.zeros((B, H), jnp.float32), jnp.zeros((B, H), jnp.float32))
        (h, _), _ = lax.scan(cell, init, xs)
        return h

    h_f = run(emb, wih_f_T, whh_f_T, b_f)
    h_b = run(emb[::-1], wih_b_T, whh_b_T, b_b)
    hidden = jnp.concatenate([h_f, h_b], axis=1)
    return mm(hidden, wfc_T) + b_fc


if __name__ == "__main__":
    # Small, TPU-friendly sizes (embedding/hidden kept at 128 for lane alignment).
    NUM_EMBEDDINGS = 32
    NUM_CLASSES = 8
    EMBED_DIM = 128
    HIDDEN_DIM = 128
    SEQ_LEN = 8
    BATCH = 2

    key = jax.random.PRNGKey(0)
    keys = jax.random.split(key, 12)
    scale = 1.0 / jnp.sqrt(HIDDEN_DIM)

    # Embedding table (V, E)
    emb_table = jax.random.normal(keys[0], (NUM_EMBEDDINGS, EMBED_DIM), jnp.float32)

    # LSTM weights, PyTorch layout W_ih: (4H, E), W_hh: (4H, H); pass transposed.
    def u(k, shape):
        return jax.random.uniform(k, shape, jnp.float32, -scale, scale)

    wih_f = u(keys[1], (4 * HIDDEN_DIM, EMBED_DIM))
    whh_f = u(keys[2], (4 * HIDDEN_DIM, HIDDEN_DIM))
    b_f = u(keys[3], (4 * HIDDEN_DIM,)) + u(keys[4], (4 * HIDDEN_DIM,))  # b_ih + b_hh
    wih_b = u(keys[5], (4 * HIDDEN_DIM, EMBED_DIM))
    whh_b = u(keys[6], (4 * HIDDEN_DIM, HIDDEN_DIM))
    b_b = u(keys[7], (4 * HIDDEN_DIM,)) + u(keys[8], (4 * HIDDEN_DIM,))
    wfc = u(keys[9], (NUM_CLASSES, 2 * HIDDEN_DIM))
    b_fc = u(keys[10], (NUM_CLASSES,))

    params = (
        wih_f.T, whh_f.T, b_f.reshape(1, -1),
        wih_b.T, whh_b.T, b_b.reshape(1, -1),
        wfc.T, b_fc.reshape(1, -1),
    )

    # Input tokens (T, B) and embedding lookup (glue; gather stays in plain JAX).
    text = jax.random.randint(keys[11], (SEQ_LEN, BATCH), 0, NUM_EMBEDDINGS, jnp.int32)
    embeddings = emb_table[text]  # (T, B, E); dropout = identity (eval mode)

    # Production path: bf16 weights/embeddings, time-chunked streaming (2 chunks).
    logits = simple_lstm_forward(embeddings, params, time_chunk=4)
    jax.block_until_ready(logits)
    assert logits.shape == (BATCH, NUM_CLASSES)

    ref_f32 = reference_forward(embeddings, params)
    ref_bf16 = reference_forward(embeddings, params, compute_dtype=jnp.bfloat16)
    assert jnp.allclose(logits, ref_bf16, atol=2e-2, rtol=2e-2), \
        float(jnp.max(jnp.abs(logits - ref_bf16)))
    assert jnp.allclose(logits, ref_f32, atol=6e-2, rtol=6e-2), \
        float(jnp.max(jnp.abs(logits - ref_f32)))

    # Exact-f32-weight path: tight check of recurrence/indexing/gate-reorder logic.
    logits_f32 = simple_lstm_forward(embeddings, params,
                                     weight_dtype=jnp.float32, time_chunk=4)
    jax.block_until_ready(logits_f32)
    assert jnp.allclose(logits_f32, ref_f32, atol=1e-2, rtol=1e-2), \
        float(jnp.max(jnp.abs(logits_f32 - ref_f32)))

    print("KERNEL_OK")
</pallas_src>

<mosaic_0001>
module attributes {stable_mosaic.version = 11 : i64} {
  func.func @lstm_chunk_kernel(%arg0: i32, %arg1: memref<32x128xbf16, #tpu.memory_space<vmem>>, %arg2: memref<32x128xbf16, #tpu.memory_space<vmem>>, %arg3: memref<128x512xbf16, #tpu.memory_space<vmem>>, %arg4: memref<128x512xbf16, #tpu.memory_space<vmem>>, %arg5: memref<1x512xf32, #tpu.memory_space<vmem>>, %arg6: memref<1x512xf32, #tpu.memory_space<vmem>>, %arg7: memref<128x512xbf16, #tpu.memory_space<vmem>>, %arg8: memref<128x512xbf16, #tpu.memory_space<vmem>>, %arg9: memref<128x128xbf16, #tpu.memory_space<vmem>>, %arg10: memref<128x128xbf16, #tpu.memory_space<vmem>>, %arg11: memref<1x128xf32, #tpu.memory_space<vmem>>, %arg12: memref<8x128xf32, #tpu.memory_space<vmem>>, %arg13: memref<32x512xf32, #tpu.memory_space<vmem>>, %arg14: memref<32x512xf32, #tpu.memory_space<vmem>>, %arg15: memref<8x128xf32, #tpu.memory_space<vmem>>, %arg16: memref<8x128xf32, #tpu.memory_space<vmem>>, %arg17: memref<8x128xf32, #tpu.memory_space<vmem>>, %arg18: memref<8x128xf32, #tpu.memory_space<vmem>>) attributes {dimension_semantics = [#tpu.dimension_semantics<arbitrary>], iteration_bounds = array<i64: 2>, scalar_prefetch = 0 : i64, scratch_operands = 6 : i64, tpu.core_type = #tpu.core_type<tc>, window_params = [{transform_indices = @transform_0, window_bounds = array<i64: 32, 128>}, {transform_indices = @transform_1, window_bounds = array<i64: 32, 128>}, {pipeline_mode = #tpu.pipeline_mode<synchronous>, transform_indices = @transform_2, window_bounds = array<i64: 128, 512>}, {pipeline_mode = #tpu.pipeline_mode<synchronous>, transform_indices = @transform_3, window_bounds = array<i64: 128, 512>}, {pipeline_mode = #tpu.pipeline_mode<synchronous>, transform_indices = @transform_4, window_bounds = array<i64: 1, 512>}, {pipeline_mode = #tpu.pipeline_mode<synchronous>, transform_indices = @transform_5, window_bounds = array<i64: 1, 512>}, {pipeline_mode = #tpu.pipeline_mode<synchronous>, transform_indices = @transform_6, window_bounds = array<i64: 128, 512>}, {pipeline_mode = #tpu.pipeline_mode<synchronous>, transform_indices = @transform_7, window_bounds = array<i64: 128, 512>}, {pipeline_mode = #tpu.pipeline_mode<synchronous>, transform_indices = @transform_8, window_bounds = array<i64: 128, 128>}, {pipeline_mode = #tpu.pipeline_mode<synchronous>, transform_indices = @transform_9, window_bounds = array<i64: 128, 128>}, {pipeline_mode = #tpu.pipeline_mode<synchronous>, transform_indices = @transform_10, window_bounds = array<i64: 1, 128>}, {pipeline_mode = #tpu.pipeline_mode<synchronous>, transform_indices = @transform_11, window_bounds = array<i64: 8, 128>}]} {
    %c0_i32 = arith.constant 0 : i32
    %0 = arith.cmpi eq, %arg0, %c0_i32 : i32
    %1 = arith.extui %0 : i1 to i32
    %c0_i32_0 = arith.constant 0 : i32
    %2 = arith.cmpi ne, %1, %c0_i32_0 : i32
    scf.if %2 {
      %cst_83 = arith.constant 0.000000e+00 : f32
      %226 = vector.broadcast %cst_83 : f32 to vector<8x128xf32>
      %c0_84 = arith.constant 0 : index
      %c0_85 = arith.constant 0 : index
      %227 = vector.load %arg15[%c0_84, %c0_85] : memref<8x128xf32, #tpu.memory_space<vmem>>, vector<8x128xf32>
      tpu.vector_store %arg15[%c0_84, %c0_85], %226 {strides = array<i32>} : memref<8x128xf32, #tpu.memory_space<vmem>>, vector<8x128xf32>,
      %cst_86 = arith.constant 0.000000e+00 : f32
      %228 = vector.broadcast %cst_86 : f32 to vector<8x128xf32>
      %c0_87 = arith.constant 0 : index
      %c0_88 = arith.constant 0 : index
      %229 = vector.load %arg16[%c0_87, %c0_88] : memref<8x128xf32, #tpu.memory_space<vmem>>, vector<8x128xf32>
      tpu.vector_store %arg16[%c0_87, %c0_88], %228 {strides = array<i32>} : memref<8x128xf32, #tpu.memory_space<vmem>>, vector<8x128xf32>,
      %cst_89 = arith.constant 0.000000e+00 : f32
      %230 = vector.broadcast %cst_89 : f32 to vector<8x128xf32>
      %c0_90 = arith.constant 0 : index
      %c0_91 = arith.constant 0 : index
      %231 = vector.load %arg17[%c0_90, %c0_91] : memref<8x128xf32, #tpu.memory_space<vmem>>, vector<8x128xf32>
      tpu.vector_store %arg17[%c0_90, %c0_91], %230 {strides = array<i32>} : memref<8x128xf32, #tpu.memory_space<vmem>>, vector<8x128xf32>,
      %cst_92 = arith.constant 0.000000e+00 : f32
      %232 = vector.broadcast %cst_92 : f32 to vector<8x128xf32>
      %c0_93 = arith.constant 0 : index
      %c0_94 = arith.constant 0 : index
      %233 = vector.load %arg18[%c0_93, %c0_94] : memref<8x128xf32, #tpu.memory_space<vmem>>, vector<8x128xf32>
      tpu.vector_store %arg18[%c0_93, %c0_94], %232 {strides = array<i32>} : memref<8x128xf32, #tpu.memory_space<vmem>>, vector<8x128xf32>,
    } else {
    }
    %c0 = arith.constant 0 : index
    %c0_1 = arith.constant 0 : index
    %3 = vector.load %arg1[%c0, %c0_1] : memref<32x128xbf16, #tpu.memory_space<vmem>>, vector<32x128xbf16>
    %c0_2 = arith.constant 0 : index
    %c0_3 = arith.constant 0 : index
    %4 = vector.load %arg3[%c0_2, %c0_3] : memref<128x512xbf16, #tpu.memory_space<vmem>>, vector<128x512xbf16>
    %cst = arith.constant dense<0.000000e+00> : vector<32x512xf32>
    %5 = tpu.matmul %3, %4, %cst {dimension_numbers = #tpu.dot_dimension_numbers<[1], [0], [0], [1], [0, 0, 1, 1], [], []>} : vector<32x128xbf16>, vector<128x512xbf16>, vector<32x512xf32> -> vector<32x512xf32>
    %c0_4 = arith.constant 0 : index
    %c0_5 = arith.constant 0 : index
    %6 = vector.load %arg5[%c0_4, %c0_5] : memref<1x512xf32, #tpu.memory_space<vmem>>, vector<1x512xf32>
    %7 = vector.broadcast %6 : vector<1x512xf32> to vector<32x512xf32>
    %8 = arith.addf %5, %7 : vector<32x512xf32>
    %c0_6 = arith.constant 0 : index
    %c0_7 = arith.constant 0 : index
    %9 = vector.load %arg13[%c0_6, %c0_7] : memref<32x512xf32, #tpu.memory_space<vmem>>, vector<32x512xf32>
    tpu.vector_store %arg13[%c0_6, %c0_7], %8 {strides = array<i32>} : memref<32x512xf32, #tpu.memory_space<vmem>>, vector<32x512xf32>,
    %c0_8 = arith.constant 0 : index
    %c0_9 = arith.constant 0 : index
    %10 = vector.load %arg2[%c0_8, %c0_9] : memref<32x128xbf16, #tpu.memory_space<vmem>>, vector<32x128xbf16>
    %c0_10 = arith.constant 0 : index
    %c0_11 = arith.constant 0 : index
    %11 = vector.load %arg4[%c0_10, %c0_11] : memref<128x512xbf16, #tpu.memory_space<vmem>>, vector<128x512xbf16>
    %cst_12 = arith.constant dense<0.000000e+00> : vector<32x512xf32>
    %12 = tpu.matmul %10, %11, %cst_12 {dimension_numbers = #tpu.dot_dimension_numbers<[1], [0], [0], [1], [0, 0, 1, 1], [], []>} : vector<32x128xbf16>, vector<128x512xbf16>, vector<32x512xf32> -> vector<32x512xf32>
    %c0_13 = arith.constant 0 : index
    %c0_14 = arith.constant 0 : index
    %13 = vector.load %arg6[%c0_13, %c0_14] : memref<1x512xf32, #tpu.memory_space<vmem>>, vector<1x512xf32>
    %14 = vector.broadcast %13 : vector<1x512xf32> to vector<32x512xf32>
    %15 = arith.addf %12, %14 : vector<32x512xf32>
    %c0_15 = arith.constant 0 : index
    %c0_16 = arith.constant 0 : index
    %16 = vector.load %arg14[%c0_15, %c0_16] : memref<32x512xf32, #tpu.memory_space<vmem>>, vector<32x512xf32>
    tpu.vector_store %arg14[%c0_15, %c0_16], %15 {strides = array<i32>} : memref<32x512xf32, #tpu.memory_space<vmem>>, vector<32x512xf32>,
    %c0_17 = arith.constant 0 : index
    %c0_18 = arith.constant 0 : index
    %17 = vector.load %arg7[%c0_17, %c0_18] : memref<128x512xbf16, #tpu.memory_space<vmem>>, vector<128x512xbf16>
    %c0_19 = arith.constant 0 : index
    %c0_20 = arith.constant 0 : index
    %18 = vector.load %arg8[%c0_19, %c0_20] : memref<128x512xbf16, #tpu.memory_space<vmem>>, vector<128x512xbf16>
    %c0_21 = arith.constant 0 : index
    %c0_22 = arith.constant 0 : index
    %19 = vector.load %arg15[%c0_21, %c0_22] : memref<8x128xf32, #tpu.memory_space<vmem>>, vector<8x128xf32>
    %c0_23 = arith.constant 0 : index
    %c0_24 = arith.constant 0 : index
    %20 = vector.load %arg16[%c0_23, %c0_24] : memref<8x128xf32, #tpu.memory_space<vmem>>, vector<8x128xf32>
    %c0_25 = arith.constant 0 : index
    %c0_26 = arith.constant 0 : index
    %21 = vector.load %arg17[%c0_25, %c0_26] : memref<8x128xf32, #tpu.memory_space<vmem>>, vector<8x128xf32>
    %c0_27 = arith.constant 0 : index
    %c0_28 = arith.constant 0 : index
    %22 = vector.load %arg18[%c0_27, %c0_28] : memref<8x128xf32, #tpu.memory_space<vmem>>, vector<8x128xf32>
    %c0_i32_29 = arith.constant 0 : i32
    %c8_i32 = arith.constant 8 : i32
    %23 = arith.muli %c0_i32_29, %c8_i32 : i32
    %24 = tpu.assume_multiple %23, 8 : i32
    %c3_i32 = arith.constant 3 : i32
    %25 = arith.subi %c3_i32, %c0_i32_29 : i32
    %c8_i32_30 = arith.constant 8 : i32
    %26 = arith.muli %25, %c8_i32_30 : i32
    %27 = tpu.assume_multiple %26, 8 : i32
    %28 = arith.index_cast %24 : i32 to index
    %c0_31 = arith.constant 0 : index
    %29 = vector.load %arg13[%28, %c0_31] : memref<32x512xf32, #tpu.memory_space<vmem>>, vector<8x512xf32>
    %30 = arith.truncf %19 : vector<8x128xf32> to vector<8x128xbf16>
    %cst_32 = arith.constant dense<0.000000e+00> : vector<8x512xf32>
    %31 = tpu.matmul %30, %17, %cst_32 {dimension_numbers = #tpu.dot_dimension_numbers<[1], [0], [0], [1], [0, 0, 1, 1], [], []>} : vector<8x128xbf16>, vector<128x512xbf16>, vector<8x512xf32> -> vector<8x512xf32>
    %32 = arith.addf %29, %31 : vector<8x512xf32>
    %33 = vector.extract_strided_slice %32 {offsets = [0, 0], sizes = [8, 384], strides = [1, 1]} : vector<8x512xf32> to vector<8x384xf32>
    %cst_33 = arith.constant 0.000000e+00 : f32
    %34 = vector.broadcast %cst_33 : f32 to vector<8x384xf32>
    %35 = arith.subf %34, %33 : vector<8x384xf32>
    %36 = math.exp %35 : vector<8x384xf32>
    %cst_34 = arith.constant 1.000000e+00 : f32
    %37 = vector.broadcast %cst_34 : f32 to vector<8x384xf32>
    %38 = arith.addf %37, %36 : vector<8x384xf32>
    %39 = tpu.reciprocal %38 {approx = true} : vector<8x384xf32> -> vector<8x384xf32>
    %40 = vector.extract_strided_slice %32 {offsets = [0, 384], sizes = [8, 128], strides = [1, 1]} : vector<8x512xf32> to vector<8x128xf32>
    %41 = math.tanh %40 : vector<8x128xf32>
    %42 = vector.extract_strided_slice %39 {offsets = [0, 128], sizes = [8, 128], strides = [1, 1]} : vector<8x384xf32> to vector<8x128xf32>
    %43 = arith.mulf %42, %20 : vector<8x128xf32>
    %44 = vector.extract_strided_slice %39 {offsets = [0, 0], sizes = [8, 128], strides = [1, 1]} : vector<8x384xf32> to vector<8x128xf32>
    %45 = arith.mulf %44, %41 : vector<8x128xf32>
    %46 = arith.addf %43, %45 : vector<8x128xf32>
    %47 = vector.extract_strided_slice %39 {offsets = [0, 256], sizes = [8, 128], strides = [1, 1]} : vector<8x384xf32> to vector<8x128xf32>
    %48 = math.tanh %46 : vector<8x128xf32>
    %49 = arith.mulf %47, %48 : vector<8x128xf32>
    %50 = arith.index_cast %27 : i32 to index
    %c0_35 = arith.constant 0 : index
    %51 = vector.load %arg14[%50, %c0_35] : memref<32x512xf32, #tpu.memory_space<vmem>>, vector<8x512xf32>
    %52 = arith.truncf %21 : vector<8x128xf32> to vector<8x128xbf16>
    %cst_36 = arith.constant dense<0.000000e+00> : vector<8x512xf32>
    %53 = tpu.matmul %52, %18, %cst_36 {dimension_numbers = #tpu.dot_dimension_numbers<[1], [0], [0], [1], [0, 0, 1, 1], [], []>} : vector<8x128xbf16>, vector<128x512xbf16>, vector<8x512xf32> -> vector<8x512xf32>
    %54 = arith.addf %51, %53 : vector<8x512xf32>
    %55 = vector.extract_strided_slice %54 {offsets = [0, 0], sizes = [8, 384], strides = [1, 1]} : vector<8x512xf32> to vector<8x384xf32>
    %cst_37 = arith.constant 0.000000e+00 : f32
    %56 = vector.broadcast %cst_37 : f32 to vector<8x384xf32>
    %57 = arith.subf %56, %55 : vector<8x384xf32>
    %58 = math.exp %57 : vector<8x384xf32>
    %cst_38 = arith.constant 1.000000e+00 : f32
    %59 = vector.broadcast %cst_38 : f32 to vector<8x384xf32>
    %60 = arith.addf %59, %58 : vector<8x384xf32>
    %61 = tpu.reciprocal %60 {approx = true} : vector<8x384xf32> -> vector<8x384xf32>
    %62 = vector.extract_strided_slice %54 {offsets = [0, 384], sizes = [8, 128], strides = [1, 1]} : vector<8x512xf32> to vector<8x128xf32>
    %63 = math.tanh %62 : vector<8x128xf32>
    %64 = vector.extract_strided_slice %61 {offsets = [0, 128], sizes = [8, 128], strides = [1, 1]} : vector<8x384xf32> to vector<8x128xf32>
    %65 = arith.mulf %64, %22 : vector<8x128xf32>
    %66 = vector.extract_strided_slice %61 {offsets = [0, 0], sizes = [8, 128], strides = [1, 1]} : vector<8x384xf32> to vector<8x128xf32>
    %67 = arith.mulf %66, %63 : vector<8x128xf32>
    %68 = arith.addf %65, %67 : vector<8x128xf32>
    %69 = vector.extract_strided_slice %61 {offsets = [0, 256], sizes = [8, 128], strides = [1, 1]} : vector<8x384xf32> to vector<8x128xf32>
    %70 = math.tanh %68 : vector<8x128xf32>
    %71 = arith.mulf %69, %70 : vector<8x128xf32>
    %c1_i32 = arith.constant 1 : i32
    %c8_i32_39 = arith.constant 8 : i32
    %72 = arith.muli %c1_i32, %c8_i32_39 : i32
    %73 = tpu.assume_multiple %72, 8 : i32
    %c3_i32_40 = arith.constant 3 : i32
    %74 = arith.subi %c3_i32_40, %c1_i32 : i32
    %c8_i32_41 = arith.constant 8 : i32
    %75 = arith.muli %74, %c8_i32_41 : i32
    %76 = tpu.assume_multiple %75, 8 : i32
    %77 = arith.index_cast %73 : i32 to index
    %c0_42 = arith.constant 0 : index
    %78 = vector.load %arg13[%77, %c0_42] : memref<32x512xf32, #tpu.memory_space<vmem>>, vector<8x512xf32>
    %79 = arith.truncf %49 : vector<8x128xf32> to vector<8x128xbf16>
    %cst_43 = arith.constant dense<0.000000e+00> : vector<8x512xf32>
    %80 = tpu.matmul %79, %17, %cst_43 {dimension_numbers = #tpu.dot_dimension_numbers<[1], [0], [0], [1], [0, 0, 1, 1], [], []>} : vector<8x128xbf16>, vector<128x512xbf16>, vector<8x512xf32> -> vector<8x512xf32>
    %81 = arith.addf %78, %80 : vector<8x512xf32>
    %82 = vector.extract_strided_slice %81 {offsets = [0, 0], sizes = [8, 384], strides = [1, 1]} : vector<8x512xf32> to vector<8x384xf32>
    %cst_44 = arith.constant 0.000000e+00 : f32
    %83 = vector.broadcast %cst_44 : f32 to vector<8x384xf32>
    %84 = arith.subf %83, %82 : vector<8x384xf32>
    %85 = math.exp %84 : vector<8x384xf32>
    %cst_45 = arith.constant 1.000000e+00 : f32
    %86 = vector.broadcast %cst_45 : f32 to vector<8x384xf32>
    %87 = arith.addf %86, %85 : vector<8x384xf32>
    %88 = tpu.reciprocal %87 {approx = true} : vector<8x384xf32> -> vector<8x384xf32>
    %89 = vector.extract_strided_slice %81 {offsets = [0, 384], sizes = [8, 128], strides = [1, 1]} : vector<8x512xf32> to vector<8x128xf32>
    %90 = math.tanh %89 : vector<8x128xf32>
    %91 = vector.extract_strided_slice %88 {offsets = [0, 128], sizes = [8, 128], strides = [1, 1]} : vector<8x384xf32> to vector<8x128xf32>
    %92 = arith.mulf %91, %46 : vector<8x128xf32>
    %93 = vector.extract_strided_slice %88 {offsets = [0, 0], sizes = [8, 128], strides = [1, 1]} : vector<8x384xf32> to vector<8x128xf32>
    %94 = arith.mulf %93, %90 : vector<8x128xf32>
    %95 = arith.addf %92, %94 : vector<8x128xf32>
    %96 = vector.extract_strided_slice %88 {offsets = [0, 256], sizes = [8, 128], strides = [1, 1]} : vector<8x384xf32> to vector<8x128xf32>
    %97 = math.tanh %95 : vector<8x128xf32>
    %98 = arith.mulf %96, %97 : vector<8x128xf32>
    %99 = arith.index_cast %76 : i32 to index
    %c0_46 = arith.constant 0 : index
    %100 = vector.load %arg14[%99, %c0_46] : memref<32x512xf32, #tpu.memory_space<vmem>>, vector<8x512xf32>
    %101 = arith.truncf %71 : vector<8x128xf32> to vector<8x128xbf16>
    %cst_47 = arith.constant dense<0.000000e+00> : vector<8x512xf32>
    %102 = tpu.matmul %101, %18, %cst_47 {dimension_numbers = #tpu.dot_dimension_numbers<[1], [0], [0], [1], [0, 0, 1, 1], [], []>} : vector<8x128xbf16>, vector<128x512xbf16>, vector<8x512xf32> -> vector<8x512xf32>
    %103 = arith.addf %100, %102 : vector<8x512xf32>
    %104 = vector.extract_strided_slice %103 {offsets = [0, 0], sizes = [8, 384], strides = [1, 1]} : vector<8x512xf32> to vector<8x384xf32>
    %cst_48 = arith.constant 0.000000e+00 : f32
    %105 = vector.broadcast %cst_48 : f32 to vector<8x384xf32>
    %106 = arith.subf %105, %104 : vector<8x384xf32>
    %107 = math.exp %106 : vector<8x384xf32>
    %cst_49 = arith.constant 1.000000e+00 : f32
    %108 = vector.broadcast %cst_49 : f32 to vector<8x384xf32>
    %109 = arith.addf %108, %107 : vector<8x384xf32>
    %110 = tpu.reciprocal %109 {approx = true} : vector<8x384xf32> -> vector<8x384xf32>
    %111 = vector.extract_strided_slice %103 {offsets = [0, 384], sizes = [8, 128], strides = [1, 1]} : vector<8x512xf32> to vector<8x128xf32>
    %112 = math.tanh %111 : vector<8x128xf32>
    %113 = vector.extract_strided_slice %110 {offsets = [0, 128], sizes = [8, 128], strides = [1, 1]} : vector<8x384xf32> to vector<8x128xf32>
    %114 = arith.mulf %113, %68 : vector<8x128xf32>
    %115 = vector.extract_strided_slice %110 {offsets = [0, 0], sizes = [8, 128], strides = [1, 1]} : vector<8x384xf32> to vector<8x128xf32>
    %116 = arith.mulf %115, %112 : vector<8x128xf32>
    %117 = arith.addf %114, %116 : vector<8x128xf32>
    %118 = vector.extract_strided_slice %110 {offsets = [0, 256], sizes = [8, 128], strides = [1, 1]} : vector<8x384xf32> to vector<8x128xf32>
    %119 = math.tanh %117 : vector<8x128xf32>
    %120 = arith.mulf %118, %119 : vector<8x128xf32>
    %c2_i32 = arith.constant 2 : i32
    %c8_i32_50 = arith.constant 8 : i32
    %121 = arith.muli %c2_i32, %c8_i32_50 : i32
    %122 = tpu.assume_multiple %121, 8 : i32
    %c3_i32_51 = arith.constant 3 : i32
    %123 = arith.subi %c3_i32_51, %c2_i32 : i32
    %c8_i32_52 = arith.constant 8 : i32
    %124 = arith.muli %123, %c8_i32_52 : i32
    %125 = tpu.assume_multiple %124, 8 : i32
    %126 = arith.index_cast %122 : i32 to index
    %c0_53 = arith.constant 0 : index
    %127 = vector.load %arg13[%126, %c0_53] : memref<32x512xf32, #tpu.memory_space<vmem>>, vector<8x512xf32>
    %128 = arith.truncf %98 : vector<8x128xf32> to vector<8x128xbf16>
    %cst_54 = arith.constant dense<0.000000e+00> : vector<8x512xf32>
    %129 = tpu.matmul %128, %17, %cst_54 {dimension_numbers = #tpu.dot_dimension_numbers<[1], [0], [0], [1], [0, 0, 1, 1], [], []>} : vector<8x128xbf16>, vector<128x512xbf16>, vector<8x512xf32> -> vector<8x512xf32>
    %130 = arith.addf %127, %129 : vector<8x512xf32>
    %131 = vector.extract_strided_slice %130 {offsets = [0, 0], sizes = [8, 384], strides = [1, 1]} : vector<8x512xf32> to vector<8x384xf32>
    %cst_55 = arith.constant 0.000000e+00 : f32
    %132 = vector.broadcast %cst_55 : f32 to vector<8x384xf32>
    %133 = arith.subf %132, %131 : vector<8x384xf32>
    %134 = math.exp %133 : vector<8x384xf32>
    %cst_56 = arith.constant 1.000000e+00 : f32
    %135 = vector.broadcast %cst_56 : f32 to vector<8x384xf32>
    %136 = arith.addf %135, %134 : vector<8x384xf32>
    %137 = tpu.reciprocal %136 {approx = true} : vector<8x384xf32> -> vector<8x384xf32>
    %138 = vector.extract_strided_slice %130 {offsets = [0, 384], sizes = [8, 128], strides = [1, 1]} : vector<8x512xf32> to vector<8x128xf32>
    %139 = math.tanh %138 : vector<8x128xf32>
    %140 = vector.extract_strided_slice %137 {offsets = [0, 128], sizes = [8, 128], strides = [1, 1]} : vector<8x384xf32> to vector<8x128xf32>
    %141 = arith.mulf %140, %95 : vector<8x128xf32>
    %142 = vector.extract_strided_slice %137 {offsets = [0, 0], sizes = [8, 128], strides = [1, 1]} : vector<8x384xf32> to vector<8x128xf32>
    %143 = arith.mulf %142, %139 : vector<8x128xf32>
    %144 = arith.addf %141, %143 : vector<8x128xf32>
    %145 = vector.extract_strided_slice %137 {offsets = [0, 256], sizes = [8, 128], strides = [1, 1]} : vector<8x384xf32> to vector<8x128xf32>
    %146 = math.tanh %144 : vector<8x128xf32>
    %147 = arith.mulf %145, %146 : vector<8x128xf32>
    %148 = arith.index_cast %125 : i32 to index
    %c0_57 = arith.constant 0 : index
    %149 = vector.load %arg14[%148, %c0_57] : memref<32x512xf32, #tpu.memory_space<vmem>>, vector<8x512xf32>
    %150 = arith.truncf %120 : vector<8x128xf32> to vector<8x128xbf16>
    %cst_58 = arith.constant dense<0.000000e+00> : vector<8x512xf32>
    %151 = tpu.matmul %150, %18, %cst_58 {dimension_numbers = #tpu.dot_dimension_numbers<[1], [0], [0], [1], [0, 0, 1, 1], [], []>} : vector<8x128xbf16>, vector<128x512xbf16>, vector<8x512xf32> -> vector<8x512xf32>
    %152 = arith.addf %149, %151 : vector<8x512xf32>
    %153 = vector.extract_strided_slice %152 {offsets = [0, 0], sizes = [8, 384], strides = [1, 1]} : vector<8x512xf32> to vector<8x384xf32>
    %cst_59 = arith.constant 0.000000e+00 : f32
    %154 = vector.broadcast %cst_59 : f32 to vector<8x384xf32>
    %155 = arith.subf %154, %153 : vector<8x384xf32>
    %156 = math.exp %155 : vector<8x384xf32>
    %cst_60 = arith.constant 1.000000e+00 : f32
    %157 = vector.broadcast %cst_60 : f32 to vector<8x384xf32>
    %158 = arith.addf %157, %156 : vector<8x384xf32>
    %159 = tpu.reciprocal %158 {approx = true} : vector<8x384xf32> -> vector<8x384xf32>
    %160 = vector.extract_strided_slice %152 {offsets = [0, 384], sizes = [8, 128], strides = [1, 1]} : vector<8x512xf32> to vector<8x128xf32>
    %161 = math.tanh %160 : vector<8x128xf32>
    %162 = vector.extract_strided_slice %159 {offsets = [0, 128], sizes = [8, 128], strides = [1, 1]} : vector<8x384xf32> to vector<8x128xf32>
    %163 = arith.mulf %162, %117 : vector<8x128xf32>
    %164 = vector.extract_strided_slice %159 {offsets = [0, 0], sizes = [8, 128], strides = [1, 1]} : vector<8x384xf32> to vector<8x128xf32>
    %165 = arith.mulf %164, %161 : vector<8x128xf32>
    %166 = arith.addf %163, %165 : vector<8x128xf32>
    %167 = vector.extract_strided_slice %159 {offsets = [0, 256], sizes = [8, 128], strides = [1, 1]} : vector<8x384xf32> to vector<8x128xf32>
    %168 = math.tanh %166 : vector<8x128xf32>
    %169 = arith.mulf %167, %168 : vector<8x128xf32>
    %c3_i32_61 = arith.constant 3 : i32
    %c8_i32_62 = arith.constant 8 : i32
    %170 = arith.muli %c3_i32_61, %c8_i32_62 : i32
    %171 = tpu.assume_multiple %170, 8 : i32
    %c3_i32_63 = arith.constant 3 : i32
    %172 = arith.subi %c3_i32_63, %c3_i32_61 : i32
    %c8_i32_64 = arith.constant 8 : i32
    %173 = arith.muli %172, %c8_i32_64 : i32
    %174 = tpu.assume_multiple %173, 8 : i32
    %175 = arith.index_cast %171 : i32 to index
    %c0_65 = arith.constant 0 : index
    %176 = vector.load %arg13[%175, %c0_65] : memref<32x512xf32, #tpu.memory_space<vmem>>, vector<8x512xf32>
    %177 = arith.truncf %147 : vector<8x128xf32> to vector<8x128xbf16>
    %cst_66 = arith.constant dense<0.000000e+00> : vector<8x512xf32>
    %178 = tpu.matmul %177, %17, %cst_66 {dimension_numbers = #tpu.dot_dimension_numbers<[1], [0], [0], [1], [0, 0, 1, 1], [], []>} : vector<8x128xbf16>, vector<128x512xbf16>, vector<8x512xf32> -> vector<8x512xf32>
    %179 = arith.addf %176, %178 : vector<8x512xf32>
    %180 = vector.extract_strided_slice %179 {offsets = [0, 0], sizes = [8, 384], strides = [1, 1]} : vector<8x512xf32> to vector<8x384xf32>
    %cst_67 = arith.constant 0.000000e+00 : f32
    %181 = vector.broadcast %cst_67 : f32 to vector<8x384xf32>
    %182 = arith.subf %181, %180 : vector<8x384xf32>
    %183 = math.exp %182 : vector<8x384xf32>
    %cst_68 = arith.constant 1.000000e+00 : f32
    %184 = vector.broadcast %cst_68 : f32 to vector<8x384xf32>
    %185 = arith.addf %184, %183 : vector<8x384xf32>
    %186 = tpu.reciprocal %185 {approx = true} : vector<8x384xf32> -> vector<8x384xf32>
    %187 = vector.extract_strided_slice %179 {offsets = [0, 384], sizes = [8, 128], strides = [1, 1]} : vector<8x512xf32> to vector<8x128xf32>
    %188 = math.tanh %187 : vector<8x128xf32>
    %189 = vector.extract_strided_slice %186 {offsets = [0, 128], sizes = [8, 128], strides = [1, 1]} : vector<8x384xf32> to vector<8x128xf32>
    %190 = arith.mulf %189, %144 : vector<8x128xf32>
    %191 = vector.extract_strided_slice %186 {offsets = [0, 0], sizes = [8, 128], strides = [1, 1]} : vector<8x384xf32> to vector<8x128xf32>
    %192 = arith.mulf %191, %188 : vector<8x128xf32>
    %193 = arith.addf %190, %192 : vector<8x128xf32>
    %194 = vector.extract_strided_slice %186 {offsets = [0, 256], sizes = [8, 128], strides = [1, 1]} : vector<8x384xf32> to vector<8x128xf32>
    %195 = math.tanh %193 : vector<8x128xf32>
    %196 = arith.mulf %194, %195 : vector<8x128xf32>
    %197 = arith.index_cast %174 : i32 to index
    %c0_69 = arith.constant 0 : index
    %198 = vector.load %arg14[%197, %c0_69] : memref<32x512xf32, #tpu.memory_space<vmem>>, vector<8x512xf32>
    %199 = arith.truncf %169 : vector<8x128xf32> to vector<8x128xbf16>
    %cst_70 = arith.constant dense<0.000000e+00> : vector<8x512xf32>
    %200 = tpu.matmul %199, %18, %cst_70 {dimension_numbers = #tpu.dot_dimension_numbers<[1], [0], [0], [1], [0, 0, 1, 1], [], []>} : vector<8x128xbf16>, vector<128x512xbf16>, vector<8x512xf32> -> vector<8x512xf32>
    %201 = arith.addf %198, %200 : vector<8x512xf32>
    %202 = vector.extract_strided_slice %201 {offsets = [0, 0], sizes = [8, 384], strides = [1, 1]} : vector<8x512xf32> to vector<8x384xf32>
    %cst_71 = arith.constant 0.000000e+00 : f32
    %203 = vector.broadcast %cst_71 : f32 to vector<8x384xf32>
    %204 = arith.subf %203, %202 : vector<8x384xf32>
    %205 = math.exp %204 : vector<8x384xf32>
    %cst_72 = arith.constant 1.000000e+00 : f32
    %206 = vector.broadcast %cst_72 : f32 to vector<8x384xf32>
    %207 = arith.addf %206, %205 : vector<8x384xf32>
    %208 = tpu.reciprocal %207 {approx = true} : vector<8x384xf32> -> vector<8x384xf32>
    %209 = vector.extract_strided_slice %201 {offsets = [0, 384], sizes = [8, 128], strides = [1, 1]} : vector<8x512xf32> to vector<8x128xf32>
    %210 = math.tanh %209 : vector<8x128xf32>
    %211 = vector.extract_strided_slice %208 {offsets = [0, 128], sizes = [8, 128], strides = [1, 1]} : vector<8x384xf32> to vector<8x128xf32>
    %212 = arith.mulf %211, %166 : vector<8x128xf32>
    %213 = vector.extract_strided_slice %208 {offsets = [0, 0], sizes = [8, 128], strides = [1, 1]} : vector<8x384xf32> to vector<8x128xf32>
    %214 = arith.mulf %213, %210 : vector<8x128xf32>
    %215 = arith.addf %212, %214 : vector<8x128xf32>
    %216 = vector.extract_strided_slice %208 {offsets = [0, 256], sizes = [8, 128], strides = [1, 1]} : vector<8x384xf32> to vector<8x128xf32>
    %217 = math.tanh %215 : vector<8x128xf32>
    %218 = arith.mulf %216, %217 : vector<8x128xf32>
    %c4_i32 = arith.constant 4 : i32
    %c0_73 = arith.constant 0 : index
    %c0_74 = arith.constant 0 : index
    %219 = vector.load %arg15[%c0_73, %c0_74] : memref<8x128xf32, #tpu.memory_space<vmem>>, vector<8x128xf32>
    tpu.vector_store %arg15[%c0_73, %c0_74], %196 {strides = array<i32>} : memref<8x128xf32, #tpu.memory_space<vmem>>, vector<8x128xf32>,
    %c0_75 = arith.constant 0 : index
    %c0_76 = arith.constant 0 : index
    %220 = vector.load %arg16[%c0_75, %c0_76] : memref<8x128xf32, #tpu.memory_space<vmem>>, vector<8x128xf32>
    tpu.vector_store %arg16[%c0_75, %c0_76], %193 {strides = array<i32>} : memref<8x128xf32, #tpu.memory_space<vmem>>, vector<8x128xf32>,
    %c0_77 = arith.constant 0 : index
    %c0_78 = arith.constant 0 : index
    %221 = vector.load %arg17[%c0_77, %c0_78] : memref<8x128xf32, #tpu.memory_space<vmem>>, vector<8x128xf32>
    tpu.vector_store %arg17[%c0_77, %c0_78], %218 {strides = array<i32>} : memref<8x128xf32, #tpu.memory_space<vmem>>, vector<8x128xf32>,
    %c0_79 = arith.constant 0 : index
    %c0_80 = arith.constant 0 : index
    %222 = vector.load %arg18[%c0_79, %c0_80] : memref<8x128xf32, #tpu.memory_space<vmem>>, vector<8x128xf32>
    tpu.vector_store %arg18[%c0_79, %c0_80], %215 {strides = array<i32>} : memref<8x128xf32, #tpu.memory_space<vmem>>, vector<8x128xf32>,
    %c1_i32_81 = arith.constant 1 : i32
    %223 = arith.cmpi eq, %arg0, %c1_i32_81 : i32
    %224 = arith.extui %223 : i1 to i32
    %c0_i32_82 = arith.constant 0 : i32
    %225 = arith.cmpi ne, %224, %c0_i32_82 : i32
    scf.if %225 {
      %226 = arith.truncf %196 : vector<8x128xf32> to vector<8x128xbf16>
      %c0_83 = arith.constant 0 : index
      %c0_84 = arith.constant 0 : index
      %227 = vector.load %arg9[%c0_83, %c0_84] : memref<128x128xbf16, #tpu.memory_space<vmem>>, vector<128x128xbf16>
      %cst_85 = arith.constant dense<0.000000e+00> : vector<8x128xf32>
      %228 = tpu.matmul %226, %227, %cst_85 {dimension_numbers = #tpu.dot_dimension_numbers<[1], [0], [0], [1], [0, 0, 1, 1], [], []>} : vector<8x128xbf16>, vector<128x128xbf16>, vector<8x128xf32> -> vector<8x128xf32>
      %229 = arith.truncf %218 : vector<8x128xf32> to vector<8x128xbf16>
      %c0_86 = arith.constant 0 : index
      %c0_87 = arith.constant 0 : index
      %230 = vector.load %arg10[%c0_86, %c0_87] : memref<128x128xbf16, #tpu.memory_space<vmem>>, vector<128x128xbf16>
      %cst_88 = arith.constant dense<0.000000e+00> : vector<8x128xf32>
      %231 = tpu.matmul %229, %230, %cst_88 {dimension_numbers = #tpu.dot_dimension_numbers<[1], [0], [0], [1], [0, 0, 1, 1], [], []>} : vector<8x128xbf16>, vector<128x128xbf16>, vector<8x128xf32> -> vector<8x128xf32>
      %232 = arith.addf %228, %231 : vector<8x128xf32>
      %c0_89 = arith.constant 0 : index
      %c0_90 = arith.constant 0 : index
      %233 = vector.load %arg11[%c0_89, %c0_90] : memref<1x128xf32, #tpu.memory_space<vmem>>, vector<1x128xf32>
      %234 = vector.broadcast %233 : vector<1x128xf32> to vector<8x128xf32>
      %235 = arith.addf %232, %234 : vector<8x128xf32>
      %c0_91 = arith.constant 0 : index
      %c0_92 = arith.constant 0 : index
      %236 = vector.load %arg12[%c0_91, %c0_92] : memref<8x128xf32, #tpu.memory_space<vmem>>, vector<8x128xf32>
      tpu.vector_store %arg12[%c0_91, %c0_92], %235 {strides = array<i32>} : memref<8x128xf32, #tpu.memory_space<vmem>>, vector<8x128xf32>,
    } else {
    }
    return
  }
  func.func @transform_0(%arg0: i32) -> (i32, i32) {
    %c0_i32 = arith.constant 0 : i32
    %c0_i32_0 = arith.constant 0 : i32
    return %arg0, %c0_i32 : i32, i32
  }
  func.func @transform_1(%arg0: i32) -> (i32, i32) {
    %c1_i32 = arith.constant 1 : i32
    %0 = arith.subi %c1_i32, %arg0 : i32
    %c0_i32 = arith.constant 0 : i32
    %c0_i32_0 = arith.constant 0 : i32
    return %0, %c0_i32 : i32, i32
  }
  func.func @transform_2(%arg0: i32) -> (i32, i32) {
    %c0_i32 = arith.constant 0 : i32
    %c0_i32_0 = arith.constant 0 : i32
    %c0_i32_1 = arith.constant 0 : i32
    return %c0_i32, %c0_i32_0 : i32, i32
  }
  func.func @transform_3(%arg0: i32) -> (i32, i32) {
    %c0_i32 = arith.constant 0 : i32
    %c0_i32_0 = arith.constant 0 : i32
    %c0_i32_1 = arith.constant 0 : i32
    return %c0_i32, %c0_i32_0 : i32, i32
  }
  func.func @transform_4(%arg0: i32) -> (i32, i32) {
    %c0_i32 = arith.constant 0 : i32
    %c0_i32_0 = arith.constant 0 : i32
    %c0_i32_1 = arith.constant 0 : i32
    return %c0_i32, %c0_i32_0 : i32, i32
  }
  func.func @transform_5(%arg0: i32) -> (i32, i32) {
    %c0_i32 = arith.constant 0 : i32
    %c0_i32_0 = arith.constant 0 : i32
    %c0_i32_1 = arith.constant 0 : i32
    return %c0_i32, %c0_i32_0 : i32, i32
  }
  func.func @transform_6(%arg0: i32) -> (i32, i32) {
    %c0_i32 = arith.constant 0 : i32
    %c0_i32_0 = arith.constant 0 : i32
    %c0_i32_1 = arith.constant 0 : i32
    return %c0_i32, %c0_i32_0 : i32, i32
  }
  func.func @transform_7(%arg0: i32) -> (i32, i32) {
    %c0_i32 = arith.constant 0 : i32
    %c0_i32_0 = arith.constant 0 : i32
    %c0_i32_1 = arith.constant 0 : i32
    return %c0_i32, %c0_i32_0 : i32, i32
  }
  func.func @transform_8(%arg0: i32) -> (i32, i32) {
    %c0_i32 = arith.constant 0 : i32
    %c0_i32_0 = arith.constant 0 : i32
    %c0_i32_1 = arith.constant 0 : i32
    return %c0_i32, %c0_i32_0 : i32, i32
  }
  func.func @transform_9(%arg0: i32) -> (i32, i32) {
    %c0_i32 = arith.constant 0 : i32
    %c0_i32_0 = arith.constant 0 : i32
    %c0_i32_1 = arith.constant 0 : i32
    return %c0_i32, %c0_i32_0 : i32, i32
  }
  func.func @transform_10(%arg0: i32) -> (i32, i32) {
    %c0_i32 = arith.constant 0 : i32
    %c0_i32_0 = arith.constant 0 : i32
    %c0_i32_1 = arith.constant 0 : i32
    return %c0_i32, %c0_i32_0 : i32, i32
  }
  func.func @transform_11(%arg0: i32) -> (i32, i32) {
    %c0_i32 = arith.constant 0 : i32
    %c0_i32_0 = arith.constant 0 : i32
    %c0_i32_1 = arith.constant 0 : i32
    return %c0_i32, %c0_i32_0 : i32, i32
  }
}

</mosaic_0001>

<llo_original>
// kernel: simple_lstm_forward.1
$region0: #{simple_lstm_forward.1}
  #allocation0 [shape = 'u32[]', space=smem, size = 0x4, offset = 0x4, fixed_abs, tag = 'smem constant byte address 0x4 - core index']
  #allocation1 [shape = 'u32[144,128]{1,0:T(1,128)}', space=vmem, size = 0x12000, scoped, tag = 'internal scratch']
  #allocation2 [shape = 'f32[32,512]{1,0:T(8,128)}', space=vmem, size = 0x10000, scoped, tag = 'scratch operand']
  #allocation3 [shape = 'f32[32,512]{1,0:T(8,128)}', space=vmem, size = 0x10000, scoped, tag = 'scratch operand']
  #allocation4 [shape = 'f32[8,128]{1,0:T(8,128)}', space=vmem, size = 0x1000, scoped, tag = 'scratch operand']
  #allocation5 [shape = 'f32[8,128]{1,0:T(8,128)}', space=vmem, size = 0x1000, scoped, tag = 'scratch operand']
  #allocation6 [shape = 'f32[8,128]{1,0:T(8,128)}', space=vmem, size = 0x1000, scoped, tag = 'scratch operand']
  #allocation7 [shape = 'f32[8,128]{1,0:T(8,128)}', space=vmem, size = 0x1000, scoped, tag = 'scratch operand']
  %s0 = inlined_call_operand.vmem [shape: bf16[64,128], index: 0, kind: input, shape index: {}, may-alias: {0,1}]
  %s1 = inlined_call_operand.vmem [shape: bf16[64,128], index: 1, kind: input, shape index: {}, may-alias: {0,1}]
  %s2 = inlined_call_operand.vmem [shape: bf16[128,512], index: 2, kind: input, shape index: {}]
  %s3 = inlined_call_operand.vmem [shape: bf16[128,512], index: 3, kind: input, shape index: {}]
  %s4 = inlined_call_operand.vmem [shape: f32[1,512], index: 4, kind: input, shape index: {}]
  %s5 = inlined_call_operand.vmem [shape: f32[1,512], index: 5, kind: input, shape index: {}]
  %s6 = inlined_call_operand.vmem [shape: bf16[128,512], index: 6, kind: input, shape index: {}]
  %s7 = inlined_call_operand.vmem [shape: bf16[128,512], index: 7, kind: input, shape index: {}]
  %s8 = inlined_call_operand.vmem [shape: bf16[128,128], index: 8, kind: input, shape index: {}]
  %s9 = inlined_call_operand.vmem [shape: bf16[128,128], index: 9, kind: input, shape index: {}]
  %s10 = inlined_call_operand.vmem [shape: f32[1,128], index: 10, kind: input, shape index: {}]
  %s11 = inlined_call_operand.vmem [shape: f32[8,128], index: 11, kind: output, shape index: {}]
  %s12 = sld [smem:[#allocation0]]
  $region85: #{simple_lstm_forward.1} parent=0
    _
  %s14 = ssub.s32 1, %s12
  %s15 = scalar_select 0, %s14, %s12
  loop: start=0, step=1, limit=4
  $region2: #{simple_lstm_forward.1} parent=0 // loop_pre_header
    _
  $region3: #{simple_lstm_forward.1} parent=0 // loop_header
    %s17 = sphi 0, %s21
    %p18 = scmp.ge.s32.totalorder %s17, 4
    %s27 = sphi 0, %s29
    %s30 = sphi 0, %s27
    %s31 = sphi 0, %s30
    %s47 = sphi 0, %s31
    %s55 = sphi 0, %s57
    %s58 = sphi 0, %s55
    %s59 = sphi 0, %s58
    %s75 = sphi 0, %s59
    %s79 = sphi 0, %s79
    %s81 = sphi 0, %s79
    %s82 = sphi 0, %s81
    %s96 = sphi 0, %s82
    %s100 = sphi 0, %s100
    %s102 = sphi 0, %s100
    %s103 = sphi 0, %s102
    %s117 = sphi 0, %s103
    %s121 = sphi 0, %s121
    %s123 = sphi 0, %s121
    %s124 = sphi 0, %s123
    %s138 = sphi 0, %s124
    %s142 = sphi 0, %s142
    %s144 = sphi 0, %s142
    %s145 = sphi 0, %s144
    %s159 = sphi 0, %s145
    %s163 = sphi 0, %s163
    %s165 = sphi 0, %s163
    %s166 = sphi 0, %s165
    %s180 = sphi 0, %s166
    %s184 = sphi 0, %s184
    %s186 = sphi 0, %s184
    %s187 = sphi 0, %s186
    %s201 = sphi 0, %s187
    %s205 = sphi 0, %s205
    %s207 = sphi 0, %s205
    %s208 = sphi 0, %s207
    %s222 = sphi 0, %s208
    %s226 = sphi 0, %s226
    %s228 = sphi 0, %s226
    %s229 = sphi 0, %s228
    %s243 = sphi 0, %s229
    %s247 = sphi 0, %s247
    %s249 = sphi 0, %s247
    %s250 = sphi 0, %s249
    %s264 = sphi 0, %s250
    %s268 = sphi 0, %s268
    %s270 = sphi 0, %s268
    %s271 = sphi 0, %s270
    %s285 = sphi 0, %s271
  $region4: #{simple_lstm_forward.1} parent=0 // loop_header_branch
    %20 = sbr.rel (%p18) target = $region8
  $region5: #{simple_lstm_forward.1} parent=0 // loop_body
    %s22 = ssub.s32 %s17, 1
    %s23 = ssub.s32 %s17, 2
    %s24 = sadd.s32 %s17, 1
    %s25 = ssub.s32 %s17, %s24
    %p26 = scmp.eq.s32.totalorder %s25, 0
    %s28 = sadd.s32 %s27, 1
    %s29 = scalar_select %p26, %s27, %s28
    %p32 = pneg %p26
    %p33 = scmp.eq.s32.totalorder %s17, 1
    %p34 = por %p32, %p33
    %p35 = scmp.ne.s32.totalorder %s27, %s30
    %p36 = scmp.eq.s32.totalorder %s17, 0
    %p37 = por %p35, %p36
    %p38 = scmp.ne.s32.totalorder %s27, %s30
    %p39 = scmp.eq.s32.totalorder %s22, 1
    %p40 = por %p38, %p39
    %p41 = scmp.ne.s32.totalorder %s30, %s31
    %p42 = scmp.eq.s32.totalorder %s22, 0
    %p43 = por %p41, %p42
    %p44 = scmp.ne.s32.totalorder %s30, %s31
    %p45 = scmp.eq.s32.totalorder %s23, 1
    %p46 = por %p44, %p45
    %p48 = scmp.ne.s32.totalorder %s31, %s47
    %p49 = scmp.eq.s32.totalorder %s23, 0
    %p50 = por %p48, %p49
    %s51 = ssub.s32 1, %s17
    %s52 = ssub.s32 1, %s24
    %s53 = ssub.s32 %s51, %s52
    %p54 = scmp.eq.s32.totalorder %s53, 0
    %s56 = sadd.s32 %s55, 1
    %s57 = scalar_select %p54, %s55, %s56
    %p60 = pneg %p54
    %p61 = scmp.eq.s32.totalorder %s17, 1
    %p62 = por %p60, %p61
    %p63 = scmp.ne.s32.totalorder %s55, %s58
    %p64 = scmp.eq.s32.totalorder %s17, 0
    %p65 = por %p63, %p64
    %p66 = scmp.ne.s32.totalorder %s55, %s58
    %p67 = scmp.eq.s32.totalorder %s22, 1
    %p68 = por %p66, %p67
    %p69 = scmp.ne.s32.totalorder %s58, %s59
    %p70 = scmp.eq.s32.totalorder %s22, 0
    %p71 = por %p69, %p70
    %p72 = scmp.ne.s32.totalorder %s58, %s59
    %p73 = scmp.eq.s32.totalorder %s23, 1
    %p74 = por %p72, %p73
    %p76 = scmp.ne.s32.totalorder %s59, %s75
    %p77 = scmp.eq.s32.totalorder %s23, 0
    %p78 = por %p76, %p77
    %s80 = sadd.s32 %s79, 1
    %p83 = scmp.eq.s32.totalorder %s17, 1
    %p84 = scmp.ne.s32.totalorder %s79, %s81
    %p85 = scmp.eq.s32.totalorder %s17, 0
    %p86 = por %p84, %p85
    %p87 = scmp.ne.s32.totalorder %s79, %s81
    %p88 = scmp.eq.s32.totalorder %s22, 1
    %p89 = por %p87, %p88
    %p90 = scmp.ne.s32.totalorder %s81, %s82
    %p91 = scmp.eq.s32.totalorder %s22, 0
    %p92 = por %p90, %p91
    %p93 = scmp.ne.s32.totalorder %s81, %s82
    %p94 = scmp.eq.s32.totalorder %s23, 1
    %p95 = por %p93, %p94
    %p97 = scmp.ne.s32.totalorder %s82, %s96
    %p98 = scmp.eq.s32.totalorder %s23, 0
    %p99 = por %p97, %p98
    %s101 = sadd.s32 %s100, 1
    %p104 = scmp.eq.s32.totalorder %s17, 1
    %p105 = scmp.ne.s32.totalorder %s100, %s102
    %p106 = scmp.eq.s32.totalorder %s17, 0
    %p107 = por %p105, %p106
    %p108 = scmp.ne.s32.totalorder %s100, %s102
    %p109 = scmp.eq.s32.totalorder %s22, 1
    %p110 = por %p108, %p109
    %p111 = scmp.ne.s32.totalorder %s102, %s103
    %p112 = scmp.eq.s32.totalorder %s22, 0
    %p113 = por %p111, %p112
    %p114 = scmp.ne.s32.totalorder %s102, %s103
    %p115 = scmp.eq.s32.totalorder %s23, 1
    %p116 = por %p114, %p115
    %p118 = scmp.ne.s32.totalorder %s103, %s117
    %p119 = scmp.eq.s32.totalorder %s23, 0
    %p120 = por %p118, %p119
    %s122 = sadd.s32 %s121, 1
    %p125 = scmp.eq.s32.totalorder %s17, 1
    %p126 = scmp.ne.s32.totalorder %s121, %s123
    %p127 = scmp.eq.s32.totalorder %s17, 0
    %p128 = por %p126, %p127
    %p129 = scmp.ne.s32.totalorder %s121, %s123
    %p130 = scmp.eq.s32.totalorder %s22, 1
    %p131 = por %p129, %p130
    %p132 = scmp.ne.s32.totalorder %s123, %s124
    %p133 = scmp.eq.s32.totalorder %s22, 0
    %p134 = por %p132, %p133
    %p135 = scmp.ne.s32.totalorder %s123, %s124
    %p136 = scmp.eq.s32.totalorder %s23, 1
    %p137 = por %p135, %p136
    %p139 = scmp.ne.s32.totalorder %s124, %s138
    %p140 = scmp.eq.s32.totalorder %s23, 0
    %p141 = por %p139, %p140
    %s143 = sadd.s32 %s142, 1
    %p146 = scmp.eq.s32.totalorder %s17, 1
    %p147 = scmp.ne.s32.totalorder %s142, %s144
    %p148 = scmp.eq.s32.totalorder %s17, 0
    %p149 = por %p147, %p148
    %p150 = scmp.ne.s32.totalorder %s142, %s144
    %p151 = scmp.eq.s32.totalorder %s22, 1
    %p152 = por %p150, %p151
    %p153 = scmp.ne.s32.totalorder %s144, %s145
    %p154 = scmp.eq.s32.totalorder %s22, 0
    %p155 = por %p153, %p154
    %p156 = scmp.ne.s32.totalorder %s144, %s145
    %p157 = scmp.eq.s32.totalorder %s23, 1
    %p158 = por %p156, %p157
    %p160 = scmp.ne.s32.totalorder %s145, %s159
    %p161 = scmp.eq.s32.totalorder %s23, 0
    %p162 = por %p160, %p161
    %s164 = sadd.s32 %s163, 1
    %p167 = scmp.eq.s32.totalorder %s17, 1
    %p168 = scmp.ne.s32.totalorder %s163, %s165
    %p169 = scmp.eq.s32.totalorder %s17, 0
    %p170 = por %p168, %p169
    %p171 = scmp.ne.s32.totalorder %s163, %s165
    %p172 = scmp.eq.s32.totalorder %s22, 1
    %p173 = por %p171, %p172
    %p174 = scmp.ne.s32.totalorder %s165, %s166
    %p175 = scmp.eq.s32.totalorder %s22, 0
    %p176 = por %p174, %p175
    %p177 = scmp.ne.s32.totalorder %s165, %s166
    %p178 = scmp.eq.s32.totalorder %s23, 1
    %p179 = por %p177, %p178
    %p181 = scmp.ne.s32.totalorder %s166, %s180
    %p182 = scmp.eq.s32.totalorder %s23, 0
    %p183 = por %p181, %p182
    %s185 = sadd.s32 %s184, 1
    %p188 = scmp.eq.s32.totalorder %s17, 1
    %p189 = scmp.ne.s32.totalorder %s184, %s186
    %p190 = scmp.eq.s32.totalorder %s17, 0
    %p191 = por %p189, %p190
    %p192 = scmp.ne.s32.totalorder %s184, %s186
    %p193 = scmp.eq.s32.totalorder %s22, 1
    %p194 = por %p192, %p193
    %p195 = scmp.ne.s32.totalorder %s186, %s187
    %p196 = scmp.eq.s32.totalorder %s22, 0
    %p197 = por %p195, %p196
    %p198 = scmp.ne.s32.totalorder %s186, %s187
    %p199 = scmp.eq.s32.totalorder %s23, 1
    %p200 = por %p198, %p199
    %p202 = scmp.ne.s32.totalorder %s187, %s201
    %p203 = scmp.eq.s32.totalorder %s23, 0
    %p204 = por %p202, %p203
    %s206 = sadd.s32 %s205, 1
    %p209 = scmp.eq.s32.totalorder %s17, 1
    %p210 = scmp.ne.s32.totalorder %s205, %s207
    %p211 = scmp.eq.s32.totalorder %s17, 0
    %p212 = por %p210, %p211
    %p213 = scmp.ne.s32.totalorder %s205, %s207
    %p214 = scmp.eq.s32.totalorder %s22, 1
    %p215 = por %p213, %p214
    %p216 = scmp.ne.s32.totalorder %s207, %s208
    %p217 = scmp.eq.s32.totalorder %s22, 0
    %p218 = por %p216, %p217
    %p219 = scmp.ne.s32.totalorder %s207, %s208
    %p220 = scmp.eq.s32.totalorder %s23, 1
    %p221 = por %p219, %p220
    %p223 = scmp.ne.s32.totalorder %s208, %s222
    %p224 = scmp.eq.s32.totalorder %s23, 0
    %p225 = por %p223, %p224
    %s227 = sadd.s32 %s226, 1
    %p230 = scmp.eq.s32.totalorder %s17, 1
    %p231 = scmp.ne.s32.totalorder %s226, %s228
    %p232 = scmp.eq.s32.totalorder %s17, 0
    %p233 = por %p231, %p232
    %p234 = scmp.ne.s32.totalorder %s226, %s228
    %p235 = scmp.eq.s32.totalorder %s22, 1
    %p236 = por %p234, %p235
    %p237 = scmp.ne.s32.totalorder %s228, %s229
    %p238 = scmp.eq.s32.totalorder %s22, 0
    %p239 = por %p237, %p238
    %p240 = scmp.ne.s32.totalorder %s228, %s229
    %p241 = scmp.eq.s32.totalorder %s23, 1
    %p242 = por %p240, %p241
    %p244 = scmp.ne.s32.totalorder %s229, %s243
    %p245 = scmp.eq.s32.totalorder %s23, 0
    %p246 = por %p244, %p245
    %s248 = sadd.s32 %s247, 1
    %p251 = scmp.eq.s32.totalorder %s17, 1
    %p252 = scmp.ne.s32.totalorder %s247, %s249
    %p253 = scmp.eq.s32.totalorder %s17, 0
    %p254 = por %p252, %p253
    %p255 = scmp.ne.s32.totalorder %s247, %s249
    %p256 = scmp.eq.s32.totalorder %s22, 1
    %p257 = por %p255, %p256
    %p258 = scmp.ne.s32.totalorder %s249, %s250
    %p259 = scmp.eq.s32.totalorder %s22, 0
    %p260 = por %p258, %p259
    %p261 = scmp.ne.s32.totalorder %s249, %s250
    %p262 = scmp.eq.s32.totalorder %s23, 1
    %p263 = por %p261, %p262
    %p265 = scmp.ne.s32.totalorder %s250, %s264
    %p266 = scmp.eq.s32.totalorder %s23, 0
    %p267 = por %p265, %p266
    %s269 = sadd.s32 %s268, 1
    %p272 = scmp.eq.s32.totalorder %s17, 1
    %p273 = scmp.ne.s32.totalorder %s268, %s270
    %p274 = scmp.eq.s32.totalorder %s17, 0
    %p275 = por %p273, %p274
    %p276 = scmp.ne.s32.totalorder %s268, %s270
    %p277 = scmp.eq.s32.totalorder %s22, 1
    %p278 = por %p276, %p277
    %p279 = scmp.ne.s32.totalorder %s270, %s271
    %p280 = scmp.eq.s32.totalorder %s22, 0
    %p281 = por %p279, %p280
    %p282 = scmp.ne.s32.totalorder %s270, %s271
    %p283 = scmp.eq.s32.totalorder %s23, 1
    %p284 = por %p282, %p283
    %p286 = scmp.ne.s32.totalorder %s271, %s285
    %p287 = scmp.eq.s32.totalorder %s23, 0
    %p288 = por %p286, %p287
    %p289 = scmp.le.s32.totalorder 1, %s17
    %p290 = scmp.lt.s32.totalorder %s17, 3
    %p291 = pnand %p289, %p290
    %p292 = pneg %p291
    // Predicated region
    $region9: #{simple_lstm_forward.1} parent=5 // pred_check
      _
    $region10: #{simple_lstm_forward.1} parent=5 // pred_check_branch
      %294 = sbr.rel (%p291) target = $region12
    $region11: #{simple_lstm_forward.1} parent=5 // pred_region
      %s295 = ssub.s32 %s17, 1
      // Predicated region
      $region13: #{simple_lstm_forward.1} parent=11 // pred_check
        %p296 = pneg %p92
      $region14: #{simple_lstm_forward.1} parent=11 // pred_check_branch
        %298 = sbr.rel (%p296) target = $region16
      $region15: #{simple_lstm_forward.1} parent=11 // pred_region
        _
      $region16: #{simple_lstm_forward.1} parent=11 // pred_fallthru
        _
      // Predicated region
      $region17: #{simple_lstm_forward.1} parent=11 // pred_check
        %p299 = pneg %p113
      $region18: #{simple_lstm_forward.1} parent=11 // pred_check_branch
        %301 = sbr.rel (%p299) target = $region20
      $region19: #{simple_lstm_forward.1} parent=11 // pred_region
        _
      $region20: #{simple_lstm_forward.1} parent=11 // pred_fallthru
        _
      // Predicated region
      $region21: #{simple_lstm_forward.1} parent=11 // pred_check
        %p302 = pneg %p134
      $region22: #{simple_lstm_forward.1} parent=11 // pred_check_branch
        %304 = sbr.rel (%p302) target = $region24
      $region23: #{simple_lstm_forward.1} parent=11 // pred_region
        _
      $region24: #{simple_lstm_forward.1} parent=11 // pred_fallthru
        _
      // Predicated region
      $region25: #{simple_lstm_forward.1} parent=11 // pred_check
        %p305 = pneg %p155
      $region26: #{simple_lstm_forward.1} parent=11 // pred_check_branch
        %307 = sbr.rel (%p305) target = $region28
      $region27: #{simple_lstm_forward.1} parent=11 // pred_region
        _
      $region28: #{simple_lstm_forward.1} parent=11 // pred_fallthru
        _
      // Predicated region
      $region29: #{simple_lstm_forward.1} parent=11 // pred_check
        %p308 = pneg %p176
      $region30: #{simple_lstm_forward.1} parent=11 // pred_check_branch
        %310 = sbr.rel (%p308) target = $region32
      $region31: #{simple_lstm_forward.1} parent=11 // pred_region
        _
      $region32: #{simple_lstm_forward.1} parent=11 // pred_fallthru
        _
      // Predicated region
      $region33: #{simple_lstm_forward.1} parent=11 // pred_check
        %p311 = pneg %p197
      $region34: #{simple_lstm_forward.1} parent=11 // pred_check_branch
        %313 = sbr.rel (%p311) target = $region36
      $region35: #{simple_lstm_forward.1} parent=11 // pred_region
        _
      $region36: #{simple_lstm_forward.1} parent=11 // pred_fallthru
        _
      // Predicated region
      $region37: #{simple_lstm_forward.1} parent=11 // pred_check
        %p314 = pneg %p218
      $region38: #{simple_lstm_forward.1} parent=11 // pred_check_branch
        %316 = sbr.rel (%p314) target = $region40
      $region39: #{simple_lstm_forward.1} parent=11 // pred_region
        _
      $region40: #{simple_lstm_forward.1} parent=11 // pred_fallthru
        _
      // Predicated region
      $region41: #{simple_lstm_forward.1} parent=11 // pred_check
        %p317 = pneg %p239
      $region42: #{simple_lstm_forward.1} parent=11 // pred_check_branch
        %319 = sbr.rel (%p317) target = $region44
      $region43: #{simple_lstm_forward.1} parent=11 // pred_region
        _
      $region44: #{simple_lstm_forward.1} parent=11 // pred_fallthru
        _
      // Predicated region
      $region45: #{simple_lstm_forward.1} parent=11 // pred_check
        %p320 = pneg %p260
      $region46: #{simple_lstm_forward.1} parent=11 // pred_check_branch
        %322 = sbr.rel (%p320) target = $region48
      $region47: #{simple_lstm_forward.1} parent=11 // pred_region
        _
      $region48: #{simple_lstm_forward.1} parent=11 // pred_fallthru
        _
    $region12: #{simple_lstm_forward.1} parent=5 // pred_fallthru
      _
    %p323 = scmp.lt.s32.totalorder %s17, 2
    // Predicated region
    $region49: #{simple_lstm_forward.1} parent=5 // pred_check
      %p324 = pneg %p323
    $region50: #{simple_lstm_forward.1} parent=5 // pred_check_branch
      %326 = sbr.rel (%p324) target = $region52
    $region51: #{simple_lstm_forward.1} parent=5 // pred_region
      // Predicated region
      $region53: #{simple_lstm_forward.1} parent=51 // pred_check
        %p327 = pneg %p37
      $region54: #{simple_lstm_forward.1} parent=51 // pred_check_branch
        %329 = sbr.rel (%p327) target = $region56
      $region55: #{simple_lstm_forward.1} parent=51 // pred_region
        %s330 = smul.u32 4, %s17
        %p331 = scmp.lt.s32.totalorder %s330, 7
        %s332 = scalar_select %p331, %s330, 7
        %s333 = smul.addr %s332, 4
        %s334 = scalar_lea.vmem %s0, %s333
        %s335 = smul.u32 4, %s17
      $region56: #{simple_lstm_forward.1} parent=51 // pred_fallthru
        _
      // Predicated region
      $region57: #{simple_lstm_forward.1} parent=51 // pred_check
        %p336 = pneg %p65
      $region58: #{simple_lstm_forward.1} parent=51 // pred_check_branch
        %338 = sbr.rel (%p336) target = $region60
      $region59: #{simple_lstm_forward.1} parent=51 // pred_region
        %s339 = ssub.s32 1, %s17
        %s340 = smul.u32 4, %s339
        %p341 = scmp.lt.s32.totalorder %s340, 7
        %s342 = scalar_select %p341, %s340, 7
        %s343 = smul.addr %s342, 4
        %s344 = scalar_lea.vmem %s1, %s343
        %s345 = ssub.s32 1, %s17
        %s346 = smul.u32 4, %s345
      $region60: #{simple_lstm_forward.1} parent=51 // pred_fallthru
        _
    $region52: #{simple_lstm_forward.1} parent=5 // pred_fallthru
      _
    %p347 = scmp.le.s32.totalorder 1, %s17
    %p348 = scmp.lt.s32.totalorder %s17, 3
    %p349 = pnand %p347, %p348
    %p350 = pneg %p349
    // Predicated region
    $region61: #{simple_lstm_forward.1} parent=5 // pred_check
      _
    $region62: #{simple_lstm_forward.1} parent=5 // pred_check_branch
      %352 = sbr.rel (%p349) target = $region64
    $region63: #{simple_lstm_forward.1} parent=5 // pred_region
      %s353 = ssub.s32 %s17, 1
      %s354 = smul.u32 4, %s22
      %p355 = scmp.lt.s32.totalorder %s354, 7
      %s356 = scalar_select %p355, %s354, 7
      %s357 = smul.addr %s356, 4
      %s358 = scalar_lea.vmem %s0, %s357
      %p359 = pneg %p43
      %p360 = pneg %p40
      %s361 = ssub.s32 1, %s22
      %s362 = smul.u32 4, %s361
      %p363 = scmp.lt.s32.totalorder %s362, 7
      %s364 = scalar_select %p363, %s362, 7
      %s365 = smul.addr %s364, 4
      %s366 = scalar_lea.vmem %s1, %s365
      %p367 = pneg %p71
      %p368 = pneg %p68
      %p369 = pneg %p92
      %p370 = pneg %p89
      %p371 = pneg %p113
      %p372 = pneg %p110
      %p373 = pneg %p134
      %p374 = pneg %p131
      %p375 = pneg %p155
      %p376 = pneg %p152
      %p377 = pneg %p176
      %p378 = pneg %p173
      %p379 = pneg %p197
      %p380 = pneg %p194
      %p381 = pneg %p218
      %p382 = pneg %p215
      %p383 = pneg %p239
      %p384 = pneg %p236
      %p385 = pneg %p260
      %p386 = pneg %p257
      %p387 = pneg %p281
      %p388 = pneg %p278
      %s389 = smul.u32 4, %s22
      %p390 = scmp.lt.s32.totalorder %s389, 7
      %s391 = scalar_select %p390, %s389, 7
      %s392 = smul.addr %s391, 4
      %s393 = scalar_lea.vmem %s0, %s392
      %s394 = smul.u32 4, %s22
      %s395 = ssub.s32 1, %s22
      %s396 = smul.u32 4, %s395
      %p397 = scmp.lt.s32.totalorder %s396, 7
      %s398 = scalar_select %p397, %s396, 7
      %s399 = smul.addr %s398, 4
      %s400 = scalar_lea.vmem %s1, %s399
      %s401 = ssub.s32 1, %s22
      %s402 = smul.u32 4, %s401
      %p404 = scmp.eq.s32.totalorder %s22, 0
      // Predicated region
      $region65: #{simple_lstm_forward.1} parent=63 // pred_check
        %p405 = pneg %p404
      $region66: #{simple_lstm_forward.1} parent=63 // pred_check_branch
        %407 = sbr.rel (%p405) target = $region68
      $region67: #{simple_lstm_forward.1} parent=63 // pred_region
        %408 = vst [vmem:[#allocation4] sm:$0xff] 0.0
        %409 = vst [vmem:[#allocation5] sm:$0xff] 0.0
        %410 = vst [vmem:[#allocation6] sm:$0xff] 0.0
        %411 = vst [vmem:[#allocation7] sm:$0xff] 0.0
      $region68: #{simple_lstm_forward.1} parent=63 // pred_fallthru
        _
      %v412 = vld [vmem:[%s393] sm:$0xf]
      %v413 = vld [vmem:[%s393 + $0x4] sm:$0xf]
      %v414 = vld [vmem:[%s393 + $0x8] sm:$0xf]
      %v415 = vld [vmem:[%s393 + $0xc] sm:$0xf]
      %v416 = vld [vmem:[%s2] sm:$0xff]
      %v417 = vld [vmem:[%s2 + $0x8] sm:$0xff]
      %v418 = vld [vmem:[%s2 + $0x10] sm:$0xff]
      %v419 = vld [vmem:[%s2 + $0x18] sm:$0xff]
      %v420 = vld [vmem:[%s2 + $0x20] sm:$0xff]
      %v421 = vld [vmem:[%s2 + $0x28] sm:$0xff]
      %v422 = vld [vmem:[%s2 + $0x30] sm:$0xff]
      %v423 = vld [vmem:[%s2 + $0x38] sm:$0xff]
      %v424 = vld [vmem:[%s2 + $0x40] sm:$0xff]
      %v425 = vld [vmem:[%s2 + $0x48] sm:$0xff]
      %v426 = vld [vmem:[%s2 + $0x50] sm:$0xff]
      %v427 = vld [vmem:[%s2 + $0x58] sm:$0xff]
      %v428 = vld [vmem:[%s2 + $0x60] sm:$0xff]
      %v429 = vld [vmem:[%s2 + $0x68] sm:$0xff]
      %v430 = vld [vmem:[%s2 + $0x70] sm:$0xff]
      %v431 = vld [vmem:[%s2 + $0x78] sm:$0xff]
      %v432 = vld [vmem:[%s2 + $0x80] sm:$0xff]
      %v433 = vld [vmem:[%s2 + $0x88] sm:$0xff]
      %v434 = vld [vmem:[%s2 + $0x90] sm:$0xff]
      %v435 = vld [vmem:[%s2 + $0x98] sm:$0xff]
      %v436 = vld [vmem:[%s2 + $0xa0] sm:$0xff]
      %v437 = vld [vmem:[%s2 + $0xa8] sm:$0xff]
      %v438 = vld [vmem:[%s2 + $0xb0] sm:$0xff]
      %v439 = vld [vmem:[%s2 + $0xb8] sm:$0xff]
      %v440 = vld [vmem:[%s2 + $0xc0] sm:$0xff]
      %v441 = vld [vmem:[%s2 + $0xc8] sm:$0xff]
      %v442 = vld [vmem:[%s2 + $0xd0] sm:$0xff]
      %v443 = vld [vmem:[%s2 + $0xd8] sm:$0xff]
      %v444 = vld [vmem:[%s2 + $0xe0] sm:$0xff]
      %v445 = vld [vmem:[%s2 + $0xe8] sm:$0xff]
      %v446 = vld [vmem:[%s2 + $0xf0] sm:$0xff]
      %v447 = vld [vmem:[%s2 + $0xf8] sm:$0xff]
      %v448 = vld [vmem:[%s4] sm:$0xf]
      %v450 = vlaneseq
      %v451 = vshrl.u32 %v450, 7
      %v452 = vsub.s32 0, %v451
      %v453 = vrot.slane %v448, %v452
      %v454 = vlaneseq
      %v455 = vshrl.u32 %v454, 7
      %v456 = vsub.s32 1, %v455
      %v457 = vrot.slane %v448, %v456
      %v458 = vlaneseq
      %v459 = vshrl.u32 %v458, 7
      %v460 = vsub.s32 2, %v459
      %v461 = vrot.slane %v448, %v460
      %v462 = vlaneseq
      %v463 = vshrl.u32 %v462, 7
      %v464 = vsub.s32 3, %v463
      %v465 = vrot.slane %v448, %v464
      %v474 = vunpack.c.l.b16 %v412
      %v475 = vunpack.c.l.b16 %v413
      %v476 = vunpack.c.l.b16 %v414
      %v477 = vunpack.c.l.b16 %v415
      %v478 = vpack.c.b16 %v475, %v474
      %v479 = vpack.c.b16 %v477, %v476
      %v514 = vunpack.c.l.b16 %v416
      %v515 = vunpack.c.h.b16 %v416
      %v516 = vunpack.c.l.b16 %v417
      %v517 = vunpack.c.h.b16 %v417
      %v518 = vunpack.c.l.b16 %v418
      %v519 = vunpack.c.h.b16 %v418
      %v520 = vunpack.c.l.b16 %v419
      %v521 = vunpack.c.h.b16 %v419
      %v522 = vunpack.c.l.b16 %v420
      %v523 = vunpack.c.h.b16 %v420
      %v524 = vunpack.c.l.b16 %v421
      %v525 = vunpack.c.h.b16 %v421
      %v526 = vunpack.c.l.b16 %v422
      %v527 = vunpack.c.h.b16 %v422
      %v528 = vunpack.c.l.b16 %v423
      %v529 = vunpack.c.h.b16 %v423
      %v530 = vunpack.c.l.b16 %v424
      %v531 = vunpack.c.h.b16 %v424
      %v532 = vunpack.c.l.b16 %v425
      %v533 = vunpack.c.h.b16 %v425
      %v534 = vunpack.c.l.b16 %v426
      %v535 = vunpack.c.h.b16 %v426
      %v536 = vunpack.c.l.b16 %v427
      %v537 = vunpack.c.h.b16 %v427
      %v538 = vunpack.c.l.b16 %v428
      %v539 = vunpack.c.h.b16 %v428
      %v540 = vunpack.c.l.b16 %v429
      %v541 = vunpack.c.h.b16 %v429
      %v542 = vunpack.c.l.b16 %v430
      %v543 = vunpack.c.h.b16 %v430
      %v544 = vunpack.c.l.b16 %v431
      %v545 = vunpack.c.h.b16 %v431
      %v546 = vunpack.c.l.b16 %v432
      %v547 = vunpack.c.h.b16 %v432
      %v548 = vunpack.c.l.b16 %v433
      %v549 = vunpack.c.h.b16 %v433
      %v550 = vunpack.c.l.b16 %v434
      %v551 = vunpack.c.h.b16 %v434
      %v552 = vunpack.c.l.b16 %v435
      %v553 = vunpack.c.h.b16 %v435
      %v554 = vunpack.c.l.b16 %v436
      %v555 = vunpack.c.h.b16 %v436
      %v556 = vunpack.c.l.b16 %v437
      %v557 = vunpack.c.h.b16 %v437
      %v558 = vunpack.c.l.b16 %v438
      %v559 = vunpack.c.h.b16 %v438
      %v560 = vunpack.c.l.b16 %v439
      %v561 = vunpack.c.h.b16 %v439
      %v562 = vunpack.c.l.b16 %v440
      %v563 = vunpack.c.h.b16 %v440
      %v564 = vunpack.c.l.b16 %v441
      %v565 = vunpack.c.h.b16 %v441
      %v566 = vunpack.c.l.b16 %v442
      %v567 = vunpack.c.h.b16 %v442
      %v568 = vunpack.c.l.b16 %v443
      %v569 = vunpack.c.h.b16 %v443
      %v570 = vunpack.c.l.b16 %v444
      %v571 = vunpack.c.h.b16 %v444
      %v572 = vunpack.c.l.b16 %v445
      %v573 = vunpack.c.h.b16 %v445
      %v574 = vunpack.c.l.b16 %v446
      %v575 = vunpack.c.h.b16 %v446
      %v576 = vunpack.c.l.b16 %v447
      %v577 = vunpack.c.h.b16 %v447
      %v578 = vpack.c.b16 %v518, %v514
      %v579 = vpack.c.b16 %v519, %v515
      %v580 = vpack.c.b16 %v520, %v516
      %v581 = vpack.c.b16 %v521, %v517
      %v582 = vpack.c.b16 %v526, %v522
      %v583 = vpack.c.b16 %v527, %v523
      %v584 = vpack.c.b16 %v528, %v524
      %v585 = vpack.c.b16 %v529, %v525
      %v586 = vpack.c.b16 %v534, %v530
      %v587 = vpack.c.b16 %v535, %v531
      %v588 = vpack.c.b16 %v536, %v532
      %v589 = vpack.c.b16 %v537, %v533
      %v590 = vpack.c.b16 %v542, %v538
      %v591 = vpack.c.b16 %v543, %v539
      %v592 = vpack.c.b16 %v544, %v540
      %v593 = vpack.c.b16 %v545, %v541
      %v594 = vpack.c.b16 %v550, %v546
      %v595 = vpack.c.b16 %v551, %v547
      %v596 = vpack.c.b16 %v552, %v548
      %v597 = vpack.c.b16 %v553, %v549
      %v598 = vpack.c.b16 %v558, %v554
      %v599 = vpack.c.b16 %v559, %v555
      %v600 = vpack.c.b16 %v560, %v556
      %v601 = vpack.c.b16 %v561, %v557
      %v602 = vpack.c.b16 %v566, %v562
      %v603 = vpack.c.b16 %v567, %v563
      %v604 = vpack.c.b16 %v568, %v564
      %v605 = vpack.c.b16 %v569, %v565
      %v606 = vpack.c.b16 %v574, %v570
      %v607 = vpack.c.b16 %v575, %v571
      %v608 = vpack.c.b16 %v576, %v572
      %v609 = vpack.c.b16 %v577, %v573
      %642 = vmatprep.subr.bf16.mxu0 %v579
      %643 = vmatpush1.bf16.msra.mxu0 %v578
      %644 = vmatprep.subr.bf16.mxu0 %v583
      %645 = vmatpush1.bf16.msra.mxu0 %v582
      %646 = vmatprep.subr.bf16.mxu0 %v587
      %647 = vmatpush1.bf16.msra.mxu0 %v586
      %648 = vmatprep.subr.bf16.mxu0 %v591
      %649 = vmatpush1.bf16.msra.mxu0 %v590
      %650 = vmatprep.subr.bf16.mxu0 %v595
      %651 = vmatpush1.bf16.msra.mxu0 %v594
      %652 = vmatprep.subr.bf16.mxu0 %v599
      %653 = vmatpush1.bf16.msra.mxu0 %v598
      %654 = vmatprep.subr.bf16.mxu0 %v603
      %655 = vmatpush1.bf16.msra.mxu0 %v602
      %656 = vmatprep.subr.bf16.mxu0 %v607
      %657 = vmatpush1.bf16.msra.mxu0 %v606
      %658 = vmatprep.subr.bf16.mxu0 0
      %659 = vmatpush1.bf16.msra.mxu0 0
      %660 = vmatprep.subr.bf16.mxu0 0
      %661 = vmatpush1.bf16.msra.mxu0 0
      %662 = vmatprep.subr.bf16.mxu0 0
      %663 = vmatpush1.bf16.msra.mxu0 0
      %664 = vmatprep.subr.bf16.mxu0 0
      %665 = vmatpush1.bf16.msra.mxu0 0
      %666 = vmatprep.subr.bf16.mxu0 0
      %667 = vmatpush1.bf16.msra.mxu0 0
      %668 = vmatprep.subr.bf16.mxu0 0
      %669 = vmatpush1.bf16.msra.mxu0 0
      %670 = vmatprep.subr.bf16.mxu0 0
      %671 = vmatpush1.bf16.msra.mxu0 0
      %672 = vmatprep.subr.bf16.mxu0 0
      %673 = vmatpush1.bf16.msra.mxu0 0
      %674 = vmatprep.mubr.bf16.mxu0 0
      %675 = vmatmul.mubr.bf16.gmra.mrb[0].mxu0 %v478
      %v676 = vpop.f32.mrb[0].mxu0
      %v677 = vadd.f32 %v453, %v676
      %v678 = vpop.f32.mrb[0].mxu0
      %v679 = vadd.f32 %v457, %v678
      %v680 = vpop.f32.mrb[0].mxu0
      %v681 = vadd.f32 %v453, %v680
      %v682 = vpop.f32.mrb[0].mxu0
      %v683 = vadd.f32 %v457, %v682
      %684 = vmatprep.mubr.bf16.mxu0 0
      %685 = vmatmul.mubr.bf16.gmra.mrb[0].mxu0 %v479
      %v686 = vpop.f32.mrb[0].mxu0
      %v687 = vadd.f32 %v453, %v686
      %v688 = vpop.f32.mrb[0].mxu0
      %v689 = vadd.f32 %v457, %v688
      %v690 = vpop.f32.mrb[0].mxu0
      %v691 = vadd.f32 %v453, %v690
      %v692 = vpop.f32.mrb[0].mxu0
      %v693 = vadd.f32 %v457, %v692
      %694 = vdwg.mxu0
      %695 = vmatprep.subr.bf16.mxu0 %v581
      %696 = vmatpush1.bf16.msra.mxu0 %v580
      %697 = vmatprep.subr.bf16.mxu0 %v585
      %698 = vmatpush1.bf16.msra.mxu0 %v584
      %699 = vmatprep.subr.bf16.mxu0 %v589
      %700 = vmatpush1.bf16.msra.mxu0 %v588
      %701 = vmatprep.subr.bf16.mxu0 %v593
      %702 = vmatpush1.bf16.msra.mxu0 %v592
      %703 = vmatprep.subr.bf16.mxu0 %v597
      %704 = vmatpush1.bf16.msra.mxu0 %v596
      %705 = vmatprep.subr.bf16.mxu0 %v601
      %706 = vmatpush1.bf16.msra.mxu0 %v600
      %707 = vmatprep.subr.bf16.mxu0 %v605
      %708 = vmatpush1.bf16.msra.mxu0 %v604
      %709 = vmatprep.subr.bf16.mxu0 %v609
      %710 = vmatpush1.bf16.msra.mxu0 %v608
      %711 = vmatprep.subr.bf16.mxu0 0
      %712 = vmatpush1.bf16.msra.mxu0 0
      %713 = vmatprep.subr.bf16.mxu0 0
      %714 = vmatpush1.bf16.msra.mxu0 0
      %715 = vmatprep.subr.bf16.mxu0 0
      %716 = vmatpush1.bf16.msra.mxu0 0
      %717 = vmatprep.subr.bf16.mxu0 0
      %718 = vmatpush1.bf16.msra.mxu0 0
      %719 = vmatprep.subr.bf16.mxu0 0
      %720 = vmatpush1.bf16.msra.mxu0 0
      %721 = vmatprep.subr.bf16.mxu0 0
      %722 = vmatpush1.bf16.msra.mxu0 0
      %723 = vmatprep.subr.bf16.mxu0 0
      %724 = vmatpush1.bf16.msra.mxu0 0
      %725 = vmatprep.subr.bf16.mxu0 0
      %726 = vmatpush1.bf16.msra.mxu0 0
      %727 = vmatprep.mubr.bf16.mxu0 0
      %728 = vmatmul.mubr.bf16.gmra.mrb[0].mxu0 %v478
      %v729 = vpop.f32.mrb[0].mxu0
      %v730 = vadd.f32 %v461, %v729
      %v731 = vpop.f32.mrb[0].mxu0
      %v732 = vadd.f32 %v465, %v731
      %v733 = vpop.f32.mrb[0].mxu0
      %v734 = vadd.f32 %v461, %v733
      %v735 = vpop.f32.mrb[0].mxu0
      %v736 = vadd.f32 %v465, %v735
      %737 = vmatprep.mubr.bf16.mxu0 0
      %738 = vmatmul.mubr.bf16.gmra.mrb[0].mxu0 %v479
      %v739 = vpop.f32.mrb[0].mxu0
      %v740 = vadd.f32 %v461, %v739
      %v741 = vpop.f32.mrb[0].mxu0
      %v742 = vadd.f32 %v465, %v741
      %v743 = vpop.f32.mrb[0].mxu0
      %v744 = vadd.f32 %v461, %v743
      %v745 = vpop.f32.mrb[0].mxu0
      %v746 = vadd.f32 %v465, %v745
      %747 = vdwg.mxu0
      %748 = vst [vmem:[#allocation2] sm:$0xff] %v677
      %749 = vst [vmem:[#allocation2 + $0x8] sm:$0xff] %v679
      %750 = vst [vmem:[#allocation2 + $0x10] sm:$0xff] %v730
      %751 = vst [vmem:[#allocation2 + $0x18] sm:$0xff] %v732
      %752 = vst [vmem:[#allocation2 + $0x20] sm:$0xff] %v681
      %753 = vst [vmem:[#allocation2 + $0x28] sm:$0xff] %v683
      %754 = vst [vmem:[#allocation2 + $0x30] sm:$0xff] %v734
      %755 = vst [vmem:[#allocation2 + $0x38] sm:$0xff] %v736
      %756 = vst [vmem:[#allocation2 + $0x40] sm:$0xff] %v687
      %757 = vst [vmem:[#allocation2 + $0x48] sm:$0xff] %v689
      %758 = vst [vmem:[#allocation2 + $0x50] sm:$0xff] %v740
      %759 = vst [vmem:[#allocation2 + $0x58] sm:$0xff] %v742
      %760 = vst [vmem:[#allocation2 + $0x60] sm:$0xff] %v691
      %761 = vst [vmem:[#allocation2 + $0x68] sm:$0xff] %v693
      %762 = vst [vmem:[#allocation2 + $0x70] sm:$0xff] %v744
      %763 = vst [vmem:[#allocation2 + $0x78] sm:$0xff] %v746
      %v764 = vld [vmem:[%s400] sm:$0xf]
      %v765 = vld [vmem:[%s400 + $0x4] sm:$0xf]
      %v766 = vld [vmem:[%s400 + $0x8] sm:$0xf]
      %v767 = vld [vmem:[%s400 + $0xc] sm:$0xf]
      %v768 = vld [vmem:[%s3] sm:$0xff]
      %v769 = vld [vmem:[%s3 + $0x8] sm:$0xff]
      %v770 = vld [vmem:[%s3 + $0x10] sm:$0xff]
      %v771 = vld [vmem:[%s3 + $0x18] sm:$0xff]
      %v772 = vld [vmem:[%s3 + $0x20] sm:$0xff]
      %v773 = vld [vmem:[%s3 + $0x28] sm:$0xff]
      %v774 = vld [vmem:[%s3 + $0x30] sm:$0xff]
      %v775 = vld [vmem:[%s3 + $0x38] sm:$0xff]
      %v776 = vld [vmem:[%s3 + $0x40] sm:$0xff]
      %v777 = vld [vmem:[%s3 + $0x48] sm:$0xff]
      %v778 = vld [vmem:[%s3 + $0x50] sm:$0xff]
      %v779 = vld [vmem:[%s3 + $0x58] sm:$0xff]
      %v780 = vld [vmem:[%s3 + $0x60] sm:$0xff]
      %v781 = vld [vmem:[%s3 + $0x68] sm:$0xff]
      %v782 = vld [vmem:[%s3 + $0x70] sm:$0xff]
      %v783 = vld [vmem:[%s3 + $0x78] sm:$0xff]
      %v784 = vld [vmem:[%s3 + $0x80] sm:$0xff]
      %v785 = vld [vmem:[%s3 + $0x88] sm:$0xff]
      %v786 = vld [vmem:[%s3 + $0x90] sm:$0xff]
      %v787 = vld [vmem:[%s3 + $0x98] sm:$0xff]
      %v788 = vld [vmem:[%s3 + $0xa0] sm:$0xff]
      %v789 = vld [vmem:[%s3 + $0xa8] sm:$0xff]
      %v790 = vld [vmem:[%s3 + $0xb0] sm:$0xff]
      %v791 = vld [vmem:[%s3 + $0xb8] sm:$0xff]
      %v792 = vld [vmem:[%s3 + $0xc0] sm:$0xff]
      %v793 = vld [vmem:[%s3 + $0xc8] sm:$0xff]
      %v794 = vld [vmem:[%s3 + $0xd0] sm:$0xff]
      %v795 = vld [vmem:[%s3 + $0xd8] sm:$0xff]
      %v796 = vld [vmem:[%s3 + $0xe0] sm:$0xff]
      %v797 = vld [vmem:[%s3 + $0xe8] sm:$0xff]
      %v798 = vld [vmem:[%s3 + $0xf0] sm:$0xff]
      %v799 = vld [vmem:[%s3 + $0xf8] sm:$0xff]
      %v800 = vld [vmem:[%s5] sm:$0xf]
      %v802 = vlaneseq
      %v803 = vshrl.u32 %v802, 7
      %v804 = vsub.s32 0, %v803
      %v805 = vrot.slane %v800, %v804
      %v806 = vlaneseq
      %v807 = vshrl.u32 %v806, 7
      %v808 = vsub.s32 1, %v807
      %v809 = vrot.slane %v800, %v808
      %v810 = vlaneseq
      %v811 = vshrl.u32 %v810, 7
      %v812 = vsub.s32 2, %v811
      %v813 = vrot.slane %v800, %v812
      %v814 = vlaneseq
      %v815 = vshrl.u32 %v814, 7
      %v816 = vsub.s32 3, %v815
      %v817 = vrot.slane %v800, %v816
      %v826 = vunpack.c.l.b16 %v764
      %v827 = vunpack.c.l.b16 %v765
      %v828 = vunpack.c.l.b16 %v766
      %v829 = vunpack.c.l.b16 %v767
      %v830 = vpack.c.b16 %v827, %v826
      %v831 = vpack.c.b16 %v829, %v828
      %v866 = vunpack.c.l.b16 %v768
      %v867 = vunpack.c.h.b16 %v768
      %v868 = vunpack.c.l.b16 %v769
      %v869 = vunpack.c.h.b16 %v769
      %v870 = vunpack.c.l.b16 %v770
      %v871 = vunpack.c.h.b16 %v770
      %v872 = vunpack.c.l.b16 %v771
      %v873 = vunpack.c.h.b16 %v771
      %v874 = vunpack.c.l.b16 %v772
      %v875 = vunpack.c.h.b16 %v772
      %v876 = vunpack.c.l.b16 %v773
      %v877 = vunpack.c.h.b16 %v773
      %v878 = vunpack.c.l.b16 %v774
      %v879 = vunpack.c.h.b16 %v774
      %v880 = vunpack.c.l.b16 %v775
      %v881 = vunpack.c.h.b16 %v775
      %v882 = vunpack.c.l.b16 %v776
      %v883 = vunpack.c.h.b16 %v776
      %v884 = vunpack.c.l.b16 %v777
      %v885 = vunpack.c.h.b16 %v777
      %v886 = vunpack.c.l.b16 %v778
      %v887 = vunpack.c.h.b16 %v778
      %v888 = vunpack.c.l.b16 %v779
      %v889 = vunpack.c.h.b16 %v779
      %v890 = vunpack.c.l.b16 %v780
      %v891 = vunpack.c.h.b16 %v780
      %v892 = vunpack.c.l.b16 %v781
      %v893 = vunpack.c.h.b16 %v781
      %v894 = vunpack.c.l.b16 %v782
      %v895 = vunpack.c.h.b16 %v782
      %v896 = vunpack.c.l.b16 %v783
      %v897 = vunpack.c.h.b16 %v783
      %v898 = vunpack.c.l.b16 %v784
      %v899 = vunpack.c.h.b16 %v784
      %v900 = vunpack.c.l.b16 %v785
      %v901 = vunpack.c.h.b16 %v785
      %v902 = vunpack.c.l.b16 %v786
      %v903 = vunpack.c.h.b16 %v786
      %v904 = vunpack.c.l.b16 %v787
      %v905 = vunpack.c.h.b16 %v787
      %v906 = vunpack.c.l.b16 %v788
      %v907 = vunpack.c.h.b16 %v788
      %v908 = vunpack.c.l.b16 %v789
      %v909 = vunpack.c.h.b16 %v789
      %v910 = vunpack.c.l.b16 %v790
      %v911 = vunpack.c.h.b16 %v790
      %v912 = vunpack.c.l.b16 %v791
      %v913 = vunpack.c.h.b16 %v791
      %v914 = vunpack.c.l.b16 %v792
      %v915 = vunpack.c.h.b16 %v792
      %v916 = vunpack.c.l.b16 %v793
      %v917 = vunpack.c.h.b16 %v793
      %v918 = vunpack.c.l.b16 %v794
      %v919 = vunpack.c.h.b16 %v794
      %v920 = vunpack.c.l.b16 %v795
      %v921 = vunpack.c.h.b16 %v795
      %v922 = vunpack.c.l.b16 %v796
      %v923 = vunpack.c.h.b16 %v796
      %v924 = vunpack.c.l.b16 %v797
      %v925 = vunpack.c.h.b16 %v797
      %v926 = vunpack.c.l.b16 %v798
      %v927 = vunpack.c.h.b16 %v798
      %v928 = vunpack.c.l.b16 %v799
      %v929 = vunpack.c.h.b16 %v799
      %v930 = vpack.c.b16 %v870, %v866
      %v931 = vpack.c.b16 %v871, %v867
      %v932 = vpack.c.b16 %v872, %v868
      %v933 = vpack.c.b16 %v873, %v869
      %v934 = vpack.c.b16 %v878, %v874
      %v935 = vpack.c.b16 %v879, %v875
      %v936 = vpack.c.b16 %v880, %v876
      %v937 = vpack.c.b16 %v881, %v877
      %v938 = vpack.c.b16 %v886, %v882
      %v939 = vpack.c.b16 %v887, %v883
      %v940 = vpack.c.b16 %v888, %v884
      %v941 = vpack.c.b16 %v889, %v885
      %v942 = vpack.c.b16 %v894, %v890
      %v943 = vpack.c.b16 %v895, %v891
      %v944 = vpack.c.b16 %v896, %v892
      %v945 = vpack.c.b16 %v897, %v893
      %v946 = vpack.c.b16 %v902, %v898
      %v947 = vpack.c.b16 %v903, %v899
      %v948 = vpack.c.b16 %v904, %v900
      %v949 = vpack.c.b16 %v905, %v901
      %v950 = vpack.c.b16 %v910, %v906
      %v951 = vpack.c.b16 %v911, %v907
      %v952 = vpack.c.b16 %v912, %v908
      %v953 = vpack.c.b16 %v913, %v909
      %v954 = vpack.c.b16 %v918, %v914
      %v955 = vpack.c.b16 %v919, %v915
      %v956 = vpack.c.b16 %v920, %v916
      %v957 = vpack.c.b16 %v921, %v917
      %v958 = vpack.c.b16 %v926, %v922
      %v959 = vpack.c.b16 %v927, %v923
      %v960 = vpack.c.b16 %v928, %v924
      %v961 = vpack.c.b16 %v929, %v925
      %994 = vmatprep.subr.bf16.mxu0 %v931
      %995 = vmatpush1.bf16.msra.mxu0 %v930
      %996 = vmatprep.subr.bf16.mxu0 %v935
      %997 = vmatpush1.bf16.msra.mxu0 %v934
      %998 = vmatprep.subr.bf16.mxu0 %v939
      %999 = vmatpush1.bf16.msra.mxu0 %v938
      %1000 = vmatprep.subr.bf16.mxu0 %v943
      %1001 = vmatpush1.bf16.msra.mxu0 %v942
      %1002 = vmatprep.subr.bf16.mxu0 %v947
      %1003 = vmatpush1.bf16.msra.mxu0 %v946
      %1004 = vmatprep.subr.bf16.mxu0 %v951
      %1005 = vmatpush1.bf16.msra.mxu0 %v950
      %1006 = vmatprep.subr.bf16.mxu0 %v955
      %1007 = vmatpush1.bf16.msra.mxu0 %v954
      %1008 = vmatprep.subr.bf16.mxu0 %v959
      %1009 = vmatpush1.bf16.msra.mxu0 %v958
      %1010 = vmatprep.subr.bf16.mxu0 0
      %1011 = vmatpush1.bf16.msra.mxu0 0
      %1012 = vmatprep.subr.bf16.mxu0 0
      %1013 = vmatpush1.bf16.msra.mxu0 0
      %1014 = vmatprep.subr.bf16.mxu0 0
      %1015 = vmatpush1.bf16.msra.mxu0 0
      %1016 = vmatprep.subr.bf16.mxu0 0
      %1017 = vmatpush1.bf16.msra.mxu0 0
      %1018 = vmatprep.subr.bf16.mxu0 0
      %1019 = vmatpush1.bf16.msra.mxu0 0
      %1020 = vmatprep.subr.bf16.mxu0 0
      %1021 = vmatpush1.bf16.msra.mxu0 0
      %1022 = vmatprep.subr.bf16.mxu0 0
      %1023 = vmatpush1.bf16.msra.mxu0 0
      %1024 = vmatprep.subr.bf16.mxu0 0
      %1025 = vmatpush1.bf16.msra.mxu0 0
      %1026 = vmatprep.mubr.bf16.mxu0 0
      %1027 = vmatmul.mubr.bf16.gmra.mrb[0].mxu0 %v830
      %v1028 = vpop.f32.mrb[0].mxu0
      %v1029 = vadd.f32 %v805, %v1028
      %v1030 = vpop.f32.mrb[0].mxu0
      %v1031 = vadd.f32 %v809, %v1030
      %v1032 = vpop.f32.mrb[0].mxu0
      %v1033 = vadd.f32 %v805, %v1032
      %v1034 = vpop.f32.mrb[0].mxu0
      %v1035 = vadd.f32 %v809, %v1034
      %1036 = vmatprep.mubr.bf16.mxu0 0
      %1037 = vmatmul.mubr.bf16.gmra.mrb[0].mxu0 %v831
      %v1038 = vpop.f32.mrb[0].mxu0
      %v1039 = vadd.f32 %v805, %v1038
      %v1040 = vpop.f32.mrb[0].mxu0
      %v1041 = vadd.f32 %v809, %v1040
      %v1042 = vpop.f32.mrb[0].mxu0
      %v1043 = vadd.f32 %v805, %v1042
      %v1044 = vpop.f32.mrb[0].mxu0
      %v1045 = vadd.f32 %v809, %v1044
      %1046 = vdwg.mxu0
      %1047 = vmatprep.subr.bf16.mxu0 %v933
      %1048 = vmatpush1.bf16.msra.mxu0 %v932
      %1049 = vmatprep.subr.bf16.mxu0 %v937
      %1050 = vmatpush1.bf16.msra.mxu0 %v936
      %1051 = vmatprep.subr.bf16.mxu0 %v941
      %1052 = vmatpush1.bf16.msra.mxu0 %v940
      %1053 = vmatprep.subr.bf16.mxu0 %v945
      %1054 = vmatpush1.bf16.msra.mxu0 %v944
      %1055 = vmatprep.subr.bf16.mxu0 %v949
      %1056 = vmatpush1.bf16.msra.mxu0 %v948
      %1057 = vmatprep.subr.bf16.mxu0 %v953
      %1058 = vmatpush1.bf16.msra.mxu0 %v952
      %1059 = vmatprep.subr.bf16.mxu0 %v957
      %1060 = vmatpush1.bf16.msra.mxu0 %v956
      %1061 = vmatprep.subr.bf16.mxu0 %v961
      %1062 = vmatpush1.bf16.msra.mxu0 %v960
      %1063 = vmatprep.subr.bf16.mxu0 0
      %1064 = vmatpush1.bf16.msra.mxu0 0
      %1065 = vmatprep.subr.bf16.mxu0 0
      %1066 = vmatpush1.bf16.msra.mxu0 0
      %1067 = vmatprep.subr.bf16.mxu0 0
      %1068 = vmatpush1.bf16.msra.mxu0 0
      %1069 = vmatprep.subr.bf16.mxu0 0
      %1070 = vmatpush1.bf16.msra.mxu0 0
      %1071 = vmatprep.subr.bf16.mxu0 0
      %1072 = vmatpush1.bf16.msra.mxu0 0
      %1073 = vmatprep.subr.bf16.mxu0 0
      %1074 = vmatpush1.bf16.msra.mxu0 0
      %1075 = vmatprep.subr.bf16.mxu0 0
      %1076 = vmatpush1.bf16.msra.mxu0 0
      %1077 = vmatprep.subr.bf16.mxu0 0
      %1078 = vmatpush1.bf16.msra.mxu0 0
      %1079 = vmatprep.mubr.bf16.mxu0 0
      %1080 = vmatmul.mubr.bf16.gmra.mrb[0].mxu0 %v830
      %v1081 = vpop.f32.mrb[0].mxu0
      %v1082 = vadd.f32 %v813, %v1081
      %v1083 = vpop.f32.mrb[0].mxu0
      %v1084 = vadd.f32 %v817, %v1083
      %v1085 = vpop.f32.mrb[0].mxu0
      %v1086 = vadd.f32 %v813, %v1085
      %v1087 = vpop.f32.mrb[0].mxu0
      %v1088 = vadd.f32 %v817, %v1087
      %1089 = vmatprep.mubr.bf16.mxu0 0
      %1090 = vmatmul.mubr.bf16.gmra.mrb[0].mxu0 %v831
      %v1091 = vpop.f32.mrb[0].mxu0
      %v1092 = vadd.f32 %v813, %v1091
      %v1093 = vpop.f32.mrb[0].mxu0
      %v1094 = vadd.f32 %v817, %v1093
      %v1095 = vpop.f32.mrb[0].mxu0
      %v1096 = vadd.f32 %v813, %v1095
      %v1097 = vpop.f32.mrb[0].mxu0
      %v1098 = vadd.f32 %v817, %v1097
      %1099 = vdwg.mxu0
      %1100 = vst [vmem:[#allocation3] sm:$0xff] %v1029
      %1101 = vst [vmem:[#allocation3 + $0x8] sm:$0xff] %v1031
      %1102 = vst [vmem:[#allocation3 + $0x10] sm:$0xff] %v1082
      %1103 = vst [vmem:[#allocation3 + $0x18] sm:$0xff] %v1084
      %1104 = vst [vmem:[#allocation3 + $0x20] sm:$0xff] %v1033
      %1105 = vst [vmem:[#allocation3 + $0x28] sm:$0xff] %v1035
      %1106 = vst [vmem:[#allocation3 + $0x30] sm:$0xff] %v1086
      %1107 = vst [vmem:[#allocation3 + $0x38] sm:$0xff] %v1088
      %1108 = vst [vmem:[#allocation3 + $0x40] sm:$0xff] %v1039
      %1109 = vst [vmem:[#allocation3 + $0x48] sm:$0xff] %v1041
      %1110 = vst [vmem:[#allocation3 + $0x50] sm:$0xff] %v1092
      %1111 = vst [vmem:[#allocation3 + $0x58] sm:$0xff] %v1094
      %1112 = vst [vmem:[#allocation3 + $0x60] sm:$0xff] %v1043
      %1113 = vst [vmem:[#allocation3 + $0x68] sm:$0xff] %v1045
      %1114 = vst [vmem:[#allocation3 + $0x70] sm:$0xff] %v1096
      %1115 = vst [vmem:[#allocation3 + $0x78] sm:$0xff] %v1098
      %v1116 = vld [vmem:[%s6] sm:$0xff]
      %v1117 = vld [vmem:[%s6 + $0x8] sm:$0xff]
      %v1118 = vld [vmem:[%s6 + $0x10] sm:$0xff]
      %v1119 = vld [vmem:[%s6 + $0x18] sm:$0xff]
      %v1120 = vld [vmem:[%s6 + $0x20] sm:$0xff]
      %v1121 = vld [vmem:[%s6 + $0x28] sm:$0xff]
      %v1122 = vld [vmem:[%s6 + $0x30] sm:$0xff]
      %v1123 = vld [vmem:[%s6 + $0x38] sm:$0xff]
      %v1124 = vld [vmem:[%s6 + $0x40] sm:$0xff]
      %v1125 = vld [vmem:[%s6 + $0x48] sm:$0xff]
      %v1126 = vld [vmem:[%s6 + $0x50] sm:$0xff]
      %v1127 = vld [vmem:[%s6 + $0x58] sm:$0xff]
      %v1128 = vld [vmem:[%s6 + $0x60] sm:$0xff]
      %v1129 = vld [vmem:[%s6 + $0x68] sm:$0xff]
      %v1130 = vld [vmem:[%s6 + $0x70] sm:$0xff]
      %v1131 = vld [vmem:[%s6 + $0x78] sm:$0xff]
      %v1132 = vld [vmem:[%s6 + $0x80] sm:$0xff]
      %v1133 = vld [vmem:[%s6 + $0x88] sm:$0xff]
      %v1134 = vld [vmem:[%s6 + $0x90] sm:$0xff]
      %v1135 = vld [vmem:[%s6 + $0x98] sm:$0xff]
      %v1136 = vld [vmem:[%s6 + $0xa0] sm:$0xff]
      %v1137 = vld [vmem:[%s6 + $0xa8] sm:$0xff]
      %v1138 = vld [vmem:[%s6 + $0xb0] sm:$0xff]
      %v1139 = vld [vmem:[%s6 + $0xb8] sm:$0xff]
      %v1140 = vld [vmem:[%s6 + $0xc0] sm:$0xff]
      %v1141 = vld [vmem:[%s6 + $0xc8] sm:$0xff]
      %v1142 = vld [vmem:[%s6 + $0xd0] sm:$0xff]
      %v1143 = vld [vmem:[%s6 + $0xd8] sm:$0xff]
      %v1144 = vld [vmem:[%s6 + $0xe0] sm:$0xff]
      %v1145 = vld [vmem:[%s6 + $0xe8] sm:$0xff]
      %v1146 = vld [vmem:[%s6 + $0xf0] sm:$0xff]
      %v1147 = vld [vmem:[%s6 + $0xf8] sm:$0xff]
      %v1148 = vld [vmem:[%s7] sm:$0xff]
      %v1149 = vld [vmem:[%s7 + $0x8] sm:$0xff]
      %v1150 = vld [vmem:[%s7 + $0x10] sm:$0xff]
      %v1151 = vld [vmem:[%s7 + $0x18] sm:$0xff]
      %v1152 = vld [vmem:[%s7 + $0x20] sm:$0xff]
      %v1153 = vld [vmem:[%s7 + $0x28] sm:$0xff]
      %v1154 = vld [vmem:[%s7 + $0x30] sm:$0xff]
      %v1155 = vld [vmem:[%s7 + $0x38] sm:$0xff]
      %v1156 = vld [vmem:[%s7 + $0x40] sm:$0xff]
      %v1157 = vld [vmem:[%s7 + $0x48] sm:$0xff]
      %v1158 = vld [vmem:[%s7 + $0x50] sm:$0xff]
      %v1159 = vld [vmem:[%s7 + $0x58] sm:$0xff]
      %v1160 = vld [vmem:[%s7 + $0x60] sm:$0xff]
      %v1161 = vld [vmem:[%s7 + $0x68] sm:$0xff]
      %v1162 = vld [vmem:[%s7 + $0x70] sm:$0xff]
      %v1163 = vld [vmem:[%s7 + $0x78] sm:$0xff]
      %v1164 = vld [vmem:[%s7 + $0x80] sm:$0xff]
      %v1165 = vld [vmem:[%s7 + $0x88] sm:$0xff]
      %v1166 = vld [vmem:[%s7 + $0x90] sm:$0xff]
      %v1167 = vld [vmem:[%s7 + $0x98] sm:$0xff]
      %v1168 = vld [vmem:[%s7 + $0xa0] sm:$0xff]
      %v1169 = vld [vmem:[%s7 + $0xa8] sm:$0xff]
      %v1170 = vld [vmem:[%s7 + $0xb0] sm:$0xff]
      %v1171 = vld [vmem:[%s7 + $0xb8] sm:$0xff]
      %v1172 = vld [vmem:[%s7 + $0xc0] sm:$0xff]
      %v1173 = vld [vmem:[%s7 + $0xc8] sm:$0xff]
      %v1174 = vld [vmem:[%s7 + $0xd0] sm:$0xff]
      %v1175 = vld [vmem:[%s7 + $0xd8] sm:$0xff]
      %v1176 = vld [vmem:[%s7 + $0xe0] sm:$0xff]
      %v1177 = vld [vmem:[%s7 + $0xe8] sm:$0xff]
      %v1178 = vld [vmem:[%s7 + $0xf0] sm:$0xff]
      %v1179 = vld [vmem:[%s7 + $0xf8] sm:$0xff]
      %v1180 = vld [vmem:[#allocation4] sm:$0xff]
      %v1181 = vld [vmem:[#allocation5] sm:$0xff]
      %v1182 = vld [vmem:[#allocation6] sm:$0xff]
      %v1183 = vld [vmem:[#allocation7] sm:$0xff]
      %s1184 = smul.u32 0, 4
      %s1185 = smul.addr %s1184, 8
      %s1186 = scalar_lea.vmem [#allocation2], %s1185
      %v1187 = vld [vmem:[%s1186] sm:$0xff]
      %v1188 = vld [vmem:[%s1186 + $0x8] sm:$0xff]
      %v1189 = vld [vmem:[%s1186 + $0x10] sm:$0xff]
      %v1190 = vld [vmem:[%s1186 + $0x18] sm:$0xff]
      %v1191 = vpack.c.bf16 %v1180, %v1180
      %v1224 = vunpack.c.l.b16 %v1116
      %v1225 = vunpack.c.h.b16 %v1116
      %v1226 = vunpack.c.l.b16 %v1117
      %v1227 = vunpack.c.h.b16 %v1117
      %v1228 = vunpack.c.l.b16 %v1118
      %v1229 = vunpack.c.h.b16 %v1118
      %v1230 = vunpack.c.l.b16 %v1119
      %v1231 = vunpack.c.h.b16 %v1119
      %v1232 = vunpack.c.l.b16 %v1120
      %v1233 = vunpack.c.h.b16 %v1120
      %v1234 = vunpack.c.l.b16 %v1121
      %v1235 = vunpack.c.h.b16 %v1121
      %v1236 = vunpack.c.l.b16 %v1122
      %v1237 = vunpack.c.h.b16 %v1122
      %v1238 = vunpack.c.l.b16 %v1123
      %v1239 = vunpack.c.h.b16 %v1123
      %v1240 = vunpack.c.l.b16 %v1124
      %v1241 = vunpack.c.h.b16 %v1124
      %v1242 = vunpack.c.l.b16 %v1125
      %v1243 = vunpack.c.h.b16 %v1125
      %v1244 = vunpack.c.l.b16 %v1126
      %v1245 = vunpack.c.h.b16 %v1126
      %v1246 = vunpack.c.l.b16 %v1127
      %v1247 = vunpack.c.h.b16 %v1127
      %v1248 = vunpack.c.l.b16 %v1128
      %v1249 = vunpack.c.h.b16 %v1128
      %v1250 = vunpack.c.l.b16 %v1129
      %v1251 = vunpack.c.h.b16 %v1129
      %v1252 = vunpack.c.l.b16 %v1130
      %v1253 = vunpack.c.h.b16 %v1130
      %v1254 = vunpack.c.l.b16 %v1131
      %v1255 = vunpack.c.h.b16 %v1131
      %v1256 = vunpack.c.l.b16 %v1132
      %v1257 = vunpack.c.h.b16 %v1132
      %v1258 = vunpack.c.l.b16 %v1133
      %v1259 = vunpack.c.h.b16 %v1133
      %v1260 = vunpack.c.l.b16 %v1134
      %v1261 = vunpack.c.h.b16 %v1134
      %v1262 = vunpack.c.l.b16 %v1135
      %v1263 = vunpack.c.h.b16 %v1135
      %v1264 = vunpack.c.l.b16 %v1136
      %v1265 = vunpack.c.h.b16 %v1136
      %v1266 = vunpack.c.l.b16 %v1137
      %v1267 = vunpack.c.h.b16 %v1137
      %v1268 = vunpack.c.l.b16 %v1138
      %v1269 = vunpack.c.h.b16 %v1138
      %v1270 = vunpack.c.l.b16 %v1139
      %v1271 = vunpack.c.h.b16 %v1139
      %v1272 = vunpack.c.l.b16 %v1140
      %v1273 = vunpack.c.h.b16 %v1140
      %v1274 = vunpack.c.l.b16 %v1141
      %v1275 = vunpack.c.h.b16 %v1141
      %v1276 = vunpack.c.l.b16 %v1142
      %v1277 = vunpack.c.h.b16 %v1142
      %v1278 = vunpack.c.l.b16 %v1143
      %v1279 = vunpack.c.h.b16 %v1143
      %v1280 = vunpack.c.l.b16 %v1144
      %v1281 = vunpack.c.h.b16 %v1144
      %v1282 = vunpack.c.l.b16 %v1145
      %v1283 = vunpack.c.h.b16 %v1145
      %v1284 = vunpack.c.l.b16 %v1146
      %v1285 = vunpack.c.h.b16 %v1146
      %v1286 = vunpack.c.l.b16 %v1147
      %v1287 = vunpack.c.h.b16 %v1147
      %v1288 = vpack.c.b16 %v1228, %v1224
      %v1289 = vpack.c.b16 %v1229, %v1225
      %v1290 = vpack.c.b16 %v1230, %v1226
      %v1291 = vpack.c.b16 %v1231, %v1227
      %v1292 = vpack.c.b16 %v1236, %v1232
      %v1293 = vpack.c.b16 %v1237, %v1233
      %v1294 = vpack.c.b16 %v1238, %v1234
      %v1295 = vpack.c.b16 %v1239, %v1235
      %v1296 = vpack.c.b16 %v1244, %v1240
      %v1297 = vpack.c.b16 %v1245, %v1241
      %v1298 = vpack.c.b16 %v1246, %v1242
      %v1299 = vpack.c.b16 %v1247, %v1243
      %v1300 = vpack.c.b16 %v1252, %v1248
      %v1301 = vpack.c.b16 %v1253, %v1249
      %v1302 = vpack.c.b16 %v1254, %v1250
      %v1303 = vpack.c.b16 %v1255, %v1251
      %v1304 = vpack.c.b16 %v1260, %v1256
      %v1305 = vpack.c.b16 %v1261, %v1257
      %v1306 = vpack.c.b16 %v1262, %v1258
      %v1307 = vpack.c.b16 %v1263, %v1259
      %v1308 = vpack.c.b16 %v1268, %v1264
      %v1309 = vpack.c.b16 %v1269, %v1265
      %v1310 = vpack.c.b16 %v1270, %v1266
      %v1311 = vpack.c.b16 %v1271, %v1267
      %v1312 = vpack.c.b16 %v1276, %v1272
      %v1313 = vpack.c.b16 %v1277, %v1273
      %v1314 = vpack.c.b16 %v1278, %v1274
      %v1315 = vpack.c.b16 %v1279, %v1275
      %v1316 = vpack.c.b16 %v1284, %v1280
      %v1317 = vpack.c.b16 %v1285, %v1281
      %v1318 = vpack.c.b16 %v1286, %v1282
      %v1319 = vpack.c.b16 %v1287, %v1283
      %1352 = vmatprep.subr.bf16.mxu0 %v1289
      %1353 = vmatpush1.bf16.msra.mxu0 %v1288
      %1354 = vmatprep.subr.bf16.mxu0 %v1293
      %1355 = vmatpush1.bf16.msra.mxu0 %v1292
      %1356 = vmatprep.subr.bf16.mxu0 %v1297
      %1357 = vmatpush1.bf16.msra.mxu0 %v1296
      %1358 = vmatprep.subr.bf16.mxu0 %v1301
      %1359 = vmatpush1.bf16.msra.mxu0 %v1300
      %1360 = vmatprep.subr.bf16.mxu0 %v1305
      %1361 = vmatpush1.bf16.msra.mxu0 %v1304
      %1362 = vmatprep.subr.bf16.mxu0 %v1309
      %1363 = vmatpush1.bf16.msra.mxu0 %v1308
      %1364 = vmatprep.subr.bf16.mxu0 %v1313
      %1365 = vmatpush1.bf16.msra.mxu0 %v1312
      %1366 = vmatprep.subr.bf16.mxu0 %v1317
      %1367 = vmatpush1.bf16.msra.mxu0 %v1316
      %1368 = vmatprep.subr.bf16.mxu0 0
      %1369 = vmatpush1.bf16.msra.mxu0 0
      %1370 = vmatprep.subr.bf16.mxu0 0
      %1371 = vmatpush1.bf16.msra.mxu0 0
      %1372 = vmatprep.subr.bf16.mxu0 0
      %1373 = vmatpush1.bf16.msra.mxu0 0
      %1374 = vmatprep.subr.bf16.mxu0 0
      %1375 = vmatpush1.bf16.msra.mxu0 0
      %1376 = vmatprep.subr.bf16.mxu0 0
      %1377 = vmatpush1.bf16.msra.mxu0 0
      %1378 = vmatprep.subr.bf16.mxu0 0
      %1379 = vmatpush1.bf16.msra.mxu0 0
      %1380 = vmatprep.subr.bf16.mxu0 0
      %1381 = vmatpush1.bf16.msra.mxu0 0
      %1382 = vmatprep.subr.bf16.mxu0 0
      %1383 = vmatpush1.bf16.msra.mxu0 0
      %1384 = vmatprep.mubr.bf16.mxu0 0
      %1385 = vmatmul.mubr.bf16.gmra.mrb[0].mxu0 %v1191
      %v1386 = vpop.f32.mrb[0].mxu0
      %v1387 = vadd.f32 0.0, %v1386
      %v1388 = vpop.f32.mrb[0].mxu0
      %v1389 = vadd.f32 0.0, %v1388
      %v1390 = vpop.f32.mrb[0].mxu0
      %v1391 = vpop.f32.mrb[0].mxu0
      %1392 = vdwg.mxu0
      %1393 = vmatprep.subr.bf16.mxu0 %v1291
      %1394 = vmatpush1.bf16.msra.mxu0 %v1290
      %1395 = vmatprep.subr.bf16.mxu0 %v1295
      %1396 = vmatpush1.bf16.msra.mxu0 %v1294
      %1397 = vmatprep.subr.bf16.mxu0 %v1299
      %1398 = vmatpush1.bf16.msra.mxu0 %v1298
      %1399 = vmatprep.subr.bf16.mxu0 %v1303
      %1400 = vmatpush1.bf16.msra.mxu0 %v1302
      %1401 = vmatprep.subr.bf16.mxu0 %v1307
      %1402 = vmatpush1.bf16.msra.mxu0 %v1306
      %1403 = vmatprep.subr.bf16.mxu0 %v1311
      %1404 = vmatpush1.bf16.msra.mxu0 %v1310
      %1405 = vmatprep.subr.bf16.mxu0 %v1315
      %1406 = vmatpush1.bf16.msra.mxu0 %v1314
      %1407 = vmatprep.subr.bf16.mxu0 %v1319
      %1408 = vmatpush1.bf16.msra.mxu0 %v1318
      %1409 = vmatprep.subr.bf16.mxu0 0
      %1410 = vmatpush1.bf16.msra.mxu0 0
      %1411 = vmatprep.subr.bf16.mxu0 0
      %1412 = vmatpush1.bf16.msra.mxu0 0
      %1413 = vmatprep.subr.bf16.mxu0 0
      %1414 = vmatpush1.bf16.msra.mxu0 0
      %1415 = vmatprep.subr.bf16.mxu0 0
      %1416 = vmatpush1.bf16.msra.mxu0 0
      %1417 = vmatprep.subr.bf16.mxu0 0
      %1418 = vmatpush1.bf16.msra.mxu0 0
      %1419 = vmatprep.subr.bf16.mxu0 0
      %1420 = vmatpush1.bf16.msra.mxu0 0
      %1421 = vmatprep.subr.bf16.mxu0 0
      %1422 = vmatpush1.bf16.msra.mxu0 0
      %1423 = vmatprep.subr.bf16.mxu0 0
      %1424 = vmatpush1.bf16.msra.mxu0 0
      %1425 = vmatprep.mubr.bf16.mxu0 0
      %1426 = vmatmul.mubr.bf16.gmra.mrb[0].mxu0 %v1191
      %v1427 = vpop.f32.mrb[0].mxu0
      %v1428 = vadd.f32 0.0, %v1427
      %v1429 = vpop.f32.mrb[0].mxu0
      %v1430 = vadd.f32 0.0, %v1429
      %v1431 = vpop.f32.mrb[0].mxu0
      %v1432 = vpop.f32.mrb[0].mxu0
      %1433 = vdwg.mxu0
      %v1434 = vadd.f32 %v1187, %v1387
      %v1435 = vadd.f32 %v1188, %v1389
      %v1436 = vadd.f32 %v1189, %v1428
      %v1437 = vadd.f32 %v1190, %v1430
      %v1438 = vsub.f32 0.0, %v1434
      %v1439 = vsub.f32 0.0, %v1435
      %v1440 = vsub.f32 0.0, %v1436
      %v1441 = vmul.f32 %v1438, 1.442695
      %v1442 = vpow.pop %v1441
      %v1443 = vmul.f32 %v1439, 1.442695
      %v1444 = vpow.pop %v1443
      %v1445 = vmul.f32 %v1440, 1.442695
      %v1446 = vpow.pop %v1445
      %v1447 = vadd.f32 %v1442, 1.0
      %v1448 = vadd.f32 %v1444, 1.0
      %v1449 = vadd.f32 %v1446, 1.0
      %v1450 = vrcp.pop %v1447
      %v1451 = vrcp.pop %v1448
      %v1452 = vrcp.pop %v1449
      %v1453 = vtanh.pop %v1437
      %v1454 = vmul.f32 %v1451, %v1181
      %v1455 = vmul.f32 %v1450, %v1453
      %v1456 = vadd.f32 %v1454, %v1455
      %v1457 = vtanh.pop %v1456
      %v1458 = vmul.f32 %v1452, %v1457
      %s1459 = smul.u32 3, 4
      %s1460 = smul.addr %s1459, 8
      %s1461 = scalar_lea.vmem [#allocation3], %s1460
      %v1462 = vld [vmem:[%s1461] sm:$0xff]
      %v1463 = vld [vmem:[%s1461 + $0x8] sm:$0xff]
      %v1464 = vld [vmem:[%s1461 + $0x10] sm:$0xff]
      %v1465 = vld [vmem:[%s1461 + $0x18] sm:$0xff]
      %v1466 = vpack.c.bf16 %v1182, %v1182
      %v1499 = vunpack.c.l.b16 %v1148
      %v1500 = vunpack.c.h.b16 %v1148
      %v1501 = vunpack.c.l.b16 %v1149
      %v1502 = vunpack.c.h.b16 %v1149
      %v1503 = vunpack.c.l.b16 %v1150
      %v1504 = vunpack.c.h.b16 %v1150
      %v1505 = vunpack.c.l.b16 %v1151
      %v1506 = vunpack.c.h.b16 %v1151
      %v1507 = vunpack.c.l.b16 %v1152
      %v1508 = vunpack.c.h.b16 %v1152
      %v1509 = vunpack.c.l.b16 %v1153
      %v1510 = vunpack.c.h.b16 %v1153
      %v1511 = vunpack.c.l.b16 %v1154
      %v1512 = vunpack.c.h.b16 %v1154
      %v1513 = vunpack.c.l.b16 %v1155
      %v1514 = vunpack.c.h.b16 %v1155
      %v1515 = vunpack.c.l.b16 %v1156
      %v1516 = vunpack.c.h.b16 %v1156
      %v1517 = vunpack.c.l.b16 %v1157
      %v1518 = vunpack.c.h.b16 %v1157
      %v1519 = vunpack.c.l.b16 %v1158
      %v1520 = vunpack.c.h.b16 %v1158
      %v1521 = vunpack.c.l.b16 %v1159
      %v1522 = vunpack.c.h.b16 %v1159
      %v1523 = vunpack.c.l.b16 %v1160
      %v1524 = vunpack.c.h.b16 %v1160
      %v1525 = vunpack.c.l.b16 %v1161
      %v1526 = vunpack.c.h.b16 %v1161
      %v1527 = vunpack.c.l.b16 %v1162
      %v1528 = vunpack.c.h.b16 %v1162
      %v1529 = vunpack.c.l.b16 %v1163
      %v1530 = vunpack.c.h.b16 %v1163
      %v1531 = vunpack.c.l.b16 %v1164
      %v1532 = vunpack.c.h.b16 %v1164
      %v1533 = vunpack.c.l.b16 %v1165
      %v1534 = vunpack.c.h.b16 %v1165
      %v1535 = vunpack.c.l.b16 %v1166
      %v1536 = vunpack.c.h.b16 %v1166
      %v1537 = vunpack.c.l.b16 %v1167
      %v1538 = vunpack.c.h.b16 %v1167
      %v1539 = vunpack.c.l.b16 %v1168
      %v1540 = vunpack.c.h.b16 %v1168
      %v1541 = vunpack.c.l.b16 %v1169
      %v1542 = vunpack.c.h.b16 %v1169
      %v1543 = vunpack.c.l.b16 %v1170
      %v1544 = vunpack.c.h.b16 %v1170
      %v1545 = vunpack.c.l.b16 %v1171
      %v1546 = vunpack.c.h.b16 %v1171
      %v1547 = vunpack.c.l.b16 %v1172
      %v1548 = vunpack.c.h.b16 %v1172
      %v1549 = vunpack.c.l.b16 %v1173
      %v1550 = vunpack.c.h.b16 %v1173
      %v1551 = vunpack.c.l.b16 %v1174
      %v1552 = vunpack.c.h.b16 %v1174
      %v1553 = vunpack.c.l.b16 %v1175
      %v1554 = vunpack.c.h.b16 %v1175
      %v1555 = vunpack.c.l.b16 %v1176
      %v1556 = vunpack.c.h.b16 %v1176
      %v1557 = vunpack.c.l.b16 %v1177
      %v1558 = vunpack.c.h.b16 %v1177
      %v1559 = vunpack.c.l.b16 %v1178
      %v1560 = vunpack.c.h.b16 %v1178
      %v1561 = vunpack.c.l.b16 %v1179
      %v1562 = vunpack.c.h.b16 %v1179
      %v1563 = vpack.c.b16 %v1503, %v1499
      %v1564 = vpack.c.b16 %v1504, %v1500
      %v1565 = vpack.c.b16 %v1505, %v1501
      %v1566 = vpack.c.b16 %v1506, %v1502
      %v1567 = vpack.c.b16 %v1511, %v1507
      %v1568 = vpack.c.b16 %v1512, %v1508
      %v1569 = vpack.c.b16 %v1513, %v1509
      %v1570 = vpack.c.b16 %v1514, %v1510
      %v1571 = vpack.c.b16 %v1519, %v1515
      %v1572 = vpack.c.b16 %v1520, %v1516
      %v1573 = vpack.c.b16 %v1521, %v1517
      %v1574 = vpack.c.b16 %v1522, %v1518
      %v1575 = vpack.c.b16 %v1527, %v1523
      %v1576 = vpack.c.b16 %v1528, %v1524
      %v1577 = vpack.c.b16 %v1529, %v1525
      %v1578 = vpack.c.b16 %v1530, %v1526
      %v1579 = vpack.c.b16 %v1535, %v1531
      %v1580 = vpack.c.b16 %v1536, %v1532
      %v1581 = vpack.c.b16 %v1537, %v1533
      %v1582 = vpack.c.b16 %v1538, %v1534
      %v1583 = vpack.c.b16 %v1543, %v1539
      %v1584 = vpack.c.b16 %v1544, %v1540
      %v1585 = vpack.c.b16 %v1545, %v1541
      %v1586 = vpack.c.b16 %v1546, %v1542
      %v1587 = vpack.c.b16 %v1551, %v1547
      %v1588 = vpack.c.b16 %v1552, %v1548
      %v1589 = vpack.c.b16 %v1553, %v1549
      %v1590 = vpack.c.b16 %v1554, %v1550
      %v1591 = vpack.c.b16 %v1559, %v1555
      %v1592 = vpack.c.b16 %v1560, %v1556
      %v1593 = vpack.c.b16 %v1561, %v1557
      %v1594 = vpack.c.b16 %v1562, %v1558
      %1627 = vmatprep.subr.bf16.mxu0 %v1564
      %1628 = vmatpush1.bf16.msra.mxu0 %v1563
      %1629 = vmatprep.subr.bf16.mxu0 %v1568
      %1630 = vmatpush1.bf16.msra.mxu0 %v1567
      %1631 = vmatprep.subr.bf16.mxu0 %v1572
      %1632 = vmatpush1.bf16.msra.mxu0 %v1571
      %1633 = vmatprep.subr.bf16.mxu0 %v1576
      %1634 = vmatpush1.bf16.msra.mxu0 %v1575
      %1635 = vmatprep.subr.bf16.mxu0 %v1580
      %1636 = vmatpush1.bf16.msra.mxu0 %v1579
      %1637 = vmatprep.subr.bf16.mxu0 %v1584
      %1638 = vmatpush1.bf16.msra.mxu0 %v1583
      %1639 = vmatprep.subr.bf16.mxu0 %v1588
      %1640 = vmatpush1.bf16.msra.mxu0 %v1587
      %1641 = vmatprep.subr.bf16.mxu0 %v1592
      %1642 = vmatpush1.bf16.msra.mxu0 %v1591
      %1643 = vmatprep.subr.bf16.mxu0 0
      %1644 = vmatpush1.bf16.msra.mxu0 0
      %1645 = vmatprep.subr.bf16.mxu0 0
      %1646 = vmatpush1.bf16.msra.mxu0 0
      %1647 = vmatprep.subr.bf16.mxu0 0
      %1648 = vmatpush1.bf16.msra.mxu0 0
      %1649 = vmatprep.subr.bf16.mxu0 0
      %1650 = vmatpush1.bf16.msra.mxu0 0
      %1651 = vmatprep.subr.bf16.mxu0 0
      %1652 = vmatpush1.bf16.msra.mxu0 0
      %1653 = vmatprep.subr.bf16.mxu0 0
      %1654 = vmatpush1.bf16.msra.mxu0 0
      %1655 = vmatprep.subr.bf16.mxu0 0
      %1656 = vmatpush1.bf16.msra.mxu0 0
      %1657 = vmatprep.subr.bf16.mxu0 0
      %1658 = vmatpush1.bf16.msra.mxu0 0
      %1659 = vmatprep.mubr.bf16.mxu0 0
      %1660 = vmatmul.mubr.bf16.gmra.mrb[0].mxu0 %v1466
      %v1661 = vpop.f32.mrb[0].mxu0
      %v1662 = vadd.f32 0.0, %v1661
      %v1663 = vpop.f32.mrb[0].mxu0
      %v1664 = vadd.f32 0.0, %v1663
      %v1665 = vpop.f32.mrb[0].mxu0
      %v1666 = vpop.f32.mrb[0].mxu0
      %1667 = vdwg.mxu0
      %1668 = vmatprep.subr.bf16.mxu0 %v1566
      %1669 = vmatpush1.bf16.msra.mxu0 %v1565
      %1670 = vmatprep.subr.bf16.mxu0 %v1570
      %1671 = vmatpush1.bf16.msra.mxu0 %v1569
      %1672 = vmatprep.subr.bf16.mxu0 %v1574
      %1673 = vmatpush1.bf16.msra.mxu0 %v1573
      %1674 = vmatprep.subr.bf16.mxu0 %v1578
      %1675 = vmatpush1.bf16.msra.mxu0 %v1577
      %1676 = vmatprep.subr.bf16.mxu0 %v1582
      %1677 = vmatpush1.bf16.msra.mxu0 %v1581
      %1678 = vmatprep.subr.bf16.mxu0 %v1586
      %1679 = vmatpush1.bf16.msra.mxu0 %v1585
      %1680 = vmatprep.subr.bf16.mxu0 %v1590
      %1681 = vmatpush1.bf16.msra.mxu0 %v1589
      %1682 = vmatprep.subr.bf16.mxu0 %v1594
      %1683 = vmatpush1.bf16.msra.mxu0 %v1593
      %1684 = vmatprep.subr.bf16.mxu0 0
      %1685 = vmatpush1.bf16.msra.mxu0 0
      %1686 = vmatprep.subr.bf16.mxu0 0
      %1687 = vmatpush1.bf16.msra.mxu0 0
      %1688 = vmatprep.subr.bf16.mxu0 0
      %1689 = vmatpush1.bf16.msra.mxu0 0
      %1690 = vmatprep.subr.bf16.mxu0 0
      %1691 = vmatpush1.bf16.msra.mxu0 0
      %1692 = vmatprep.subr.bf16.mxu0 0
      %1693 = vmatpush1.bf16.msra.mxu0 0
      %1694 = vmatprep.subr.bf16.mxu0 0
      %1695 = vmatpush1.bf16.msra.mxu0 0
      %1696 = vmatprep.subr.bf16.mxu0 0
      %1697 = vmatpush1.bf16.msra.mxu0 0
      %1698 = vmatprep.subr.bf16.mxu0 0
      %1699 = vmatpush1.bf16.msra.mxu0 0
      %1700 = vmatprep.mubr.bf16.mxu0 0
      %1701 = vmatmul.mubr.bf16.gmra.mrb[0].mxu0 %v1466
      %v1702 = vpop.f32.mrb[0].mxu0
      %v1703 = vadd.f32 0.0, %v1702
      %v1704 = vpop.f32.mrb[0].mxu0
      %v1705 = vadd.f32 0.0, %v1704
      %v1706 = vpop.f32.mrb[0].mxu0
      %v1707 = vpop.f32.mrb[0].mxu0
      %1708 = vdwg.mxu0
      %v1709 = vadd.f32 %v1462, %v1662
      %v1710 = vadd.f32 %v1463, %v1664
      %v1711 = vadd.f32 %v1464, %v1703
      %v1712 = vadd.f32 %v1465, %v1705
      %v1713 = vsub.f32 0.0, %v1709
      %v1714 = vsub.f32 0.0, %v1710
      %v1715 = vsub.f32 0.0, %v1711
      %v1716 = vmul.f32 %v1713, 1.442695
      %v1717 = vpow.pop %v1716
      %v1718 = vmul.f32 %v1714, 1.442695
      %v1719 = vpow.pop %v1718
      %v1720 = vmul.f32 %v1715, 1.442695
      %v1721 = vpow.pop %v1720
      %v1722 = vadd.f32 %v1717, 1.0
      %v1723 = vadd.f32 %v1719, 1.0
      %v1724 = vadd.f32 %v1721, 1.0
      %v1725 = vrcp.pop %v1722
      %v1726 = vrcp.pop %v1723
      %v1727 = vrcp.pop %v1724
      %v1728 = vtanh.pop %v1712
      %v1729 = vmul.f32 %v1726, %v1183
      %v1730 = vmul.f32 %v1725, %v1728
      %v1731 = vadd.f32 %v1729, %v1730
      %v1732 = vtanh.pop %v1731
      %v1733 = vmul.f32 %v1727, %v1732
      %s1734 = smul.u32 1, 4
      %s1735 = smul.addr %s1734, 8
      %s1736 = scalar_lea.vmem [#allocation2], %s1735
      %v1737 = vld [vmem:[%s1736] sm:$0xff]
      %v1738 = vld [vmem:[%s1736 + $0x8] sm:$0xff]
      %v1739 = vld [vmem:[%s1736 + $0x10] sm:$0xff]
      %v1740 = vld [vmem:[%s1736 + $0x18] sm:$0xff]
      %v1741 = vpack.c.bf16 %v1458, %v1458
      %1742 = vmatprep.subr.bf16.mxu0 %v1289
      %1743 = vmatpush1.bf16.msra.mxu0 %v1288
      %1744 = vmatprep.subr.bf16.mxu0 %v1293
      %1745 = vmatpush1.bf16.msra.mxu0 %v1292
      %1746 = vmatprep.subr.bf16.mxu0 %v1297
      %1747 = vmatpush1.bf16.msra.mxu0 %v1296
      %1748 = vmatprep.subr.bf16.mxu0 %v1301
      %1749 = vmatpush1.bf16.msra.mxu0 %v1300
      %1750 = vmatprep.subr.bf16.mxu0 %v1305
      %1751 = vmatpush1.bf16.msra.mxu0 %v1304
      %1752 = vmatprep.subr.bf16.mxu0 %v1309
      %1753 = vmatpush1.bf16.msra.mxu0 %v1308
      %1754 = vmatprep.subr.bf16.mxu0 %v1313
      %1755 = vmatpush1.bf16.msra.mxu0 %v1312
      %1756 = vmatprep.subr.bf16.mxu0 %v1317
      %1757 = vmatpush1.bf16.msra.mxu0 %v1316
      %1758 = vmatprep.subr.bf16.mxu0 0
      %1759 = vmatpush1.bf16.msra.mxu0 0
      %1760 = vmatprep.subr.bf16.mxu0 0
      %1761 = vmatpush1.bf16.msra.mxu0 0
      %1762 = vmatprep.subr.bf16.mxu0 0
      %1763 = vmatpush1.bf16.msra.mxu0 0
      %1764 = vmatprep.subr.bf16.mxu0 0
      %1765 = vmatpush1.bf16.msra.mxu0 0
      %1766 = vmatprep.subr.bf16.mxu0 0
      %1767 = vmatpush1.bf16.msra.mxu0 0
      %1768 = vmatprep.subr.bf16.mxu0 0
      %1769 = vmatpush1.bf16.msra.mxu0 0
      %1770 = vmatprep.subr.bf16.mxu0 0
      %1771 = vmatpush1.bf16.msra.mxu0 0
      %1772 = vmatprep.subr.bf16.mxu0 0
      %1773 = vmatpush1.bf16.msra.mxu0 0
      %1774 = vmatprep.mubr.bf16.mxu0 0
      %1775 = vmatmul.mubr.bf16.gmra.mrb[0].mxu0 %v1741
      %v1776 = vpop.f32.mrb[0].mxu0
      %v1777 = vadd.f32 0.0, %v1776
      %v1778 = vpop.f32.mrb[0].mxu0
      %v1779 = vadd.f32 0.0, %v1778
      %v1780 = vpop.f32.mrb[0].mxu0
      %v1781 = vpop.f32.mrb[0].mxu0
      %1782 = vdwg.mxu0
      %1783 = vmatprep.subr.bf16.mxu0 %v1291
      %1784 = vmatpush1.bf16.msra.mxu0 %v1290
      %1785 = vmatprep.subr.bf16.mxu0 %v1295
      %1786 = vmatpush1.bf16.msra.mxu0 %v1294
      %1787 = vmatprep.subr.bf16.mxu0 %v1299
      %1788 = vmatpush1.bf16.msra.mxu0 %v1298
      %1789 = vmatprep.subr.bf16.mxu0 %v1303
      %1790 = vmatpush1.bf16.msra.mxu0 %v1302
      %1791 = vmatprep.subr.bf16.mxu0 %v1307
      %1792 = vmatpush1.bf16.msra.mxu0 %v1306
      %1793 = vmatprep.subr.bf16.mxu0 %v1311
      %1794 = vmatpush1.bf16.msra.mxu0 %v1310
      %1795 = vmatprep.subr.bf16.mxu0 %v1315
      %1796 = vmatpush1.bf16.msra.mxu0 %v1314
      %1797 = vmatprep.subr.bf16.mxu0 %v1319
      %1798 = vmatpush1.bf16.msra.mxu0 %v1318
      %1799 = vmatprep.subr.bf16.mxu0 0
      %1800 = vmatpush1.bf16.msra.mxu0 0
      %1801 = vmatprep.subr.bf16.mxu0 0
      %1802 = vmatpush1.bf16.msra.mxu0 0
      %1803 = vmatprep.subr.bf16.mxu0 0
      %1804 = vmatpush1.bf16.msra.mxu0 0
      %1805 = vmatprep.subr.bf16.mxu0 0
      %1806 = vmatpush1.bf16.msra.mxu0 0
      %1807 = vmatprep.subr.bf16.mxu0 0
      %1808 = vmatpush1.bf16.msra.mxu0 0
      %1809 = vmatprep.subr.bf16.mxu0 0
      %1810 = vmatpush1.bf16.msra.mxu0 0
      %1811 = vmatprep.subr.bf16.mxu0 0
      %1812 = vmatpush1.bf16.msra.mxu0 0
      %1813 = vmatprep.subr.bf16.mxu0 0
      %1814 = vmatpush1.bf16.msra.mxu0 0
      %1815 = vmatprep.mubr.bf16.mxu0 0
      %1816 = vmatmul.mubr.bf16.gmra.mrb[0].mxu0 %v1741
      %v1817 = vpop.f32.mrb[0].mxu0
      %v1818 = vadd.f32 0.0, %v1817
      %v1819 = vpop.f32.mrb[0].mxu0
      %v1820 = vadd.f32 0.0, %v1819
      %v1821 = vpop.f32.mrb[0].mxu0
      %v1822 = vpop.f32.mrb[0].mxu0
      %1823 = vdwg.mxu0
      %v1824 = vadd.f32 %v1737, %v1777
      %v1825 = vadd.f32 %v1738, %v1779
      %v1826 = vadd.f32 %v1739, %v1818
      %v1827 = vadd.f32 %v1740, %v1820
      %v1828 = vsub.f32 0.0, %v1824
      %v1829 = vsub.f32 0.0, %v1825
      %v1830 = vsub.f32 0.0, %v1826
      %v1831 = vmul.f32 %v1828, 1.442695
      %v1832 = vpow.pop %v1831
      %v1833 = vmul.f32 %v1829, 1.442695
      %v1834 = vpow.pop %v1833
      %v1835 = vmul.f32 %v1830, 1.442695
      %v1836 = vpow.pop %v1835
      %v1837 = vadd.f32 %v1832, 1.0
      %v1838 = vadd.f32 %v1834, 1.0
      %v1839 = vadd.f32 %v1836, 1.0
      %v1840 = vrcp.pop %v1837
      %v1841 = vrcp.pop %v1838
      %v1842 = vrcp.pop %v1839
      %v1843 = vtanh.pop %v1827
      %v1844 = vmul.f32 %v1841, %v1456
      %v1845 = vmul.f32 %v1840, %v1843
      %v1846 = vadd.f32 %v1844, %v1845
      %v1847 = vtanh.pop %v1846
      %v1848 = vmul.f32 %v1842, %v1847
      %s1849 = smul.u32 2, 4
      %s1850 = smul.addr %s1849, 8
      %s1851 = scalar_lea.vmem [#allocation3], %s1850
      %v1852 = vld [vmem:[%s1851] sm:$0xff]
      %v1853 = vld [vmem:[%s1851 + $0x8] sm:$0xff]
      %v1854 = vld [vmem:[%s1851 + $0x10] sm:$0xff]
      %v1855 = vld [vmem:[%s1851 + $0x18] sm:$0xff]
      %v1856 = vpack.c.bf16 %v1733, %v1733
      %1857 = vmatprep.subr.bf16.mxu0 %v1564
      %1858 = vmatpush1.bf16.msra.mxu0 %v1563
      %1859 = vmatprep.subr.bf16.mxu0 %v1568
      %1860 = vmatpush1.bf16.msra.mxu0 %v1567
      %1861 = vmatprep.subr.bf16.mxu0 %v1572
      %1862 = vmatpush1.bf16.msra.mxu0 %v1571
      %1863 = vmatprep.subr.bf16.mxu0 %v1576
      %1864 = vmatpush1.bf16.msra.mxu0 %v1575
      %1865 = vmatprep.subr.bf16.mxu0 %v1580
      %1866 = vmatpush1.bf16.msra.mxu0 %v1579
      %1867 = vmatprep.subr.bf16.mxu0 %v1584
      %1868 = vmatpush1.bf16.msra.mxu0 %v1583
      %1869 = vmatprep.subr.bf16.mxu0 %v1588
      %1870 = vmatpush1.bf16.msra.mxu0 %v1587
      %1871 = vmatprep.subr.bf16.mxu0 %v1592
      %1872 = vmatpush1.bf16.msra.mxu0 %v1591
      %1873 = vmatprep.subr.bf16.mxu0 0
      %1874 = vmatpush1.bf16.msra.mxu0 0
      %1875 = vmatprep.subr.bf16.mxu0 0
      %1876 = vmatpush1.bf16.msra.mxu0 0
      %1877 = vmatprep.subr.bf16.mxu0 0
      %1878 = vmatpush1.bf16.msra.mxu0 0
      %1879 = vmatprep.subr.bf16.mxu0 0
      %1880 = vmatpush1.bf16.msra.mxu0 0
      %1881 = vmatprep.subr.bf16.mxu0 0
      %1882 = vmatpush1.bf16.msra.mxu0 0
      %1883 = vmatprep.subr.bf16.mxu0 0
      %1884 = vmatpush1.bf16.msra.mxu0 0
      %1885 = vmatprep.subr.bf16.mxu0 0
      %1886 = vmatpush1.bf16.msra.mxu0 0
      %1887 = vmatprep.subr.bf16.mxu0 0
      %1888 = vmatpush1.bf16.msra.mxu0 0
      %1889 = vmatprep.mubr.bf16.mxu0 0
      %1890 = vmatmul.mubr.bf16.gmra.mrb[0].mxu0 %v1856
      %v1891 = vpop.f32.mrb[0].mxu0
      %v1892 = vadd.f32 0.0, %v1891
      %v1893 = vpop.f32.mrb[0].mxu0
      %v1894 = vadd.f32 0.0, %v1893
      %v1895 = vpop.f32.mrb[0].mxu0
      %v1896 = vpop.f32.mrb[0].mxu0
      %1897 = vdwg.mxu0
      %1898 = vmatprep.subr.bf16.mxu0 %v1566
      %1899 = vmatpush1.bf16.msra.mxu0 %v1565
      %1900 = vmatprep.subr.bf16.mxu0 %v1570
      %1901 = vmatpush1.bf16.msra.mxu0 %v1569
      %1902 = vmatprep.subr.bf16.mxu0 %v1574
      %1903 = vmatpush1.bf16.msra.mxu0 %v1573
      %1904 = vmatprep.subr.bf16.mxu0 %v1578
      %1905 = vmatpush1.bf16.msra.mxu0 %v1577
      %1906 = vmatprep.subr.bf16.mxu0 %v1582
      %1907 = vmatpush1.bf16.msra.mxu0 %v1581
      %1908 = vmatprep.subr.bf16.mxu0 %v1586
      %1909 = vmatpush1.bf16.msra.mxu0 %v1585
      %1910 = vmatprep.subr.bf16.mxu0 %v1590
      %1911 = vmatpush1.bf16.msra.mxu0 %v1589
      %1912 = vmatprep.subr.bf16.mxu0 %v1594
      %1913 = vmatpush1.bf16.msra.mxu0 %v1593
      %1914 = vmatprep.subr.bf16.mxu0 0
      %1915 = vmatpush1.bf16.msra.mxu0 0
      %1916 = vmatprep.subr.bf16.mxu0 0
      %1917 = vmatpush1.bf16.msra.mxu0 0
      %1918 = vmatprep.subr.bf16.mxu0 0
      %1919 = vmatpush1.bf16.msra.mxu0 0
      %1920 = vmatprep.subr.bf16.mxu0 0
      %1921 = vmatpush1.bf16.msra.mxu0 0
      %1922 = vmatprep.subr.bf16.mxu0 0
      %1923 = vmatpush1.bf16.msra.mxu0 0
      %1924 = vmatprep.subr.bf16.mxu0 0
      %1925 = vmatpush1.bf16.msra.mxu0 0
      %1926 = vmatprep.subr.bf16.mxu0 0
      %1927 = vmatpush1.bf16.msra.mxu0 0
      %1928 = vmatprep.subr.bf16.mxu0 0
      %1929 = vmatpush1.bf16.msra.mxu0 0
      %1930 = vmatprep.mubr.bf16.mxu0 0
      %1931 = vmatmul.mubr.bf16.gmra.mrb[0].mxu0 %v1856
      %v1932 = vpop.f32.mrb[0].mxu0
      %v1933 = vadd.f32 0.0, %v1932
      %v1934 = vpop.f32.mrb[0].mxu0
      %v1935 = vadd.f32 0.0, %v1934
      %v1936 = vpop.f32.mrb[0].mxu0
      %v1937 = vpop.f32.mrb[0].mxu0
      %1938 = vdwg.mxu0
      %v1939 = vadd.f32 %v1852, %v1892
      %v1940 = vadd.f32 %v1853, %v1894
      %v1941 = vadd.f32 %v1854, %v1933
      %v1942 = vadd.f32 %v1855, %v1935
      %v1943 = vsub.f32 0.0, %v1939
      %v1944 = vsub.f32 0.0, %v1940
      %v1945 = vsub.f32 0.0, %v1941
      %v1946 = vmul.f32 %v1943, 1.442695
      %v1947 = vpow.pop %v1946
      %v1948 = vmul.f32 %v1944, 1.442695
      %v1949 = vpow.pop %v1948
      %v1950 = vmul.f32 %v1945, 1.442695
      %v1951 = vpow.pop %v1950
      %v1952 = vadd.f32 %v1947, 1.0
      %v1953 = vadd.f32 %v1949, 1.0
      %v1954 = vadd.f32 %v1951, 1.0
      %v1955 = vrcp.pop %v1952
      %v1956 = vrcp.pop %v1953
      %v1957 = vrcp.pop %v1954
      %v1958 = vtanh.pop %v1942
      %v1959 = vmul.f32 %v1956, %v1731
      %v1960 = vmul.f32 %v1955, %v1958
      %v1961 = vadd.f32 %v1959, %v1960
      %v1962 = vtanh.pop %v1961
      %v1963 = vmul.f32 %v1957, %v1962
      %s1964 = smul.addr %s1849, 8
      %s1965 = scalar_lea.vmem [#allocation2], %s1964
      %v1966 = vld [vmem:[%s1965] sm:$0xff]
      %v1967 = vld [vmem:[%s1965 + $0x8] sm:$0xff]
      %v1968 = vld [vmem:[%s1965 + $0x10] sm:$0xff]
      %v1969 = vld [vmem:[%s1965 + $0x18] sm:$0xff]
      %v1970 = vpack.c.bf16 %v1848, %v1848
      %1971 = vmatprep.subr.bf16.mxu0 %v1289
      %1972 = vmatpush1.bf16.msra.mxu0 %v1288
      %1973 = vmatprep.subr.bf16.mxu0 %v1293
      %1974 = vmatpush1.bf16.msra.mxu0 %v1292
      %1975 = vmatprep.subr.bf16.mxu0 %v1297
      %1976 = vmatpush1.bf16.msra.mxu0 %v1296
      %1977 = vmatprep.subr.bf16.mxu0 %v1301
      %1978 = vmatpush1.bf16.msra.mxu0 %v1300
      %1979 = vmatprep.subr.bf16.mxu0 %v1305
      %1980 = vmatpush1.bf16.msra.mxu0 %v1304
      %1981 = vmatprep.subr.bf16.mxu0 %v1309
      %1982 = vmatpush1.bf16.msra.mxu0 %v1308
      %1983 = vmatprep.subr.bf16.mxu0 %v1313
      %1984 = vmatpush1.bf16.msra.mxu0 %v1312
      %1985 = vmatprep.subr.bf16.mxu0 %v1317
      %1986 = vmatpush1.bf16.msra.mxu0 %v1316
      %1987 = vmatprep.subr.bf16.mxu0 0
      %1988 = vmatpush1.bf16.msra.mxu0 0
      %1989 = vmatprep.subr.bf16.mxu0 0
      %1990 = vmatpush1.bf16.msra.mxu0 0
      %1991 = vmatprep.subr.bf16.mxu0 0
      %1992 = vmatpush1.bf16.msra.mxu0 0
      %1993 = vmatprep.subr.bf16.mxu0 0
      %1994 = vmatpush1.bf16.msra.mxu0 0
      %1995 = vmatprep.subr.bf16.mxu0 0
      %1996 = vmatpush1.bf16.msra.mxu0 0
      %1997 = vmatprep.subr.bf16.mxu0 0
      %1998 = vmatpush1.bf16.msra.mxu0 0
      %1999 = vmatprep.subr.bf16.mxu0 0
      %2000 = vmatpush1.bf16.msra.mxu0 0
      %2001 = vmatprep.subr.bf16.mxu0 0
      %2002 = vmatpush1.bf16.msra.mxu0 0
      %2003 = vmatprep.mubr.bf16.mxu0 0
      %2004 = vmatmul.mubr.bf16.gmra.mrb[0].mxu0 %v1970
      %v2005 = vpop.f32.mrb[0].mxu0
      %v2006 = vadd.f32 0.0, %v2005
      %v2007 = vpop.f32.mrb[0].mxu0
      %v2008 = vadd.f32 0.0, %v2007
      %v2009 = vpop.f32.mrb[0].mxu0
      %v2010 = vpop.f32.mrb[0].mxu0
      %2011 = vdwg.mxu0
      %2012 = vmatprep.subr.bf16.mxu0 %v1291
      %2013 = vmatpush1.bf16.msra.mxu0 %v1290
      %2014 = vmatprep.subr.bf16.mxu0 %v1295
      %2015 = vmatpush1.bf16.msra.mxu0 %v1294
      %2016 = vmatprep.subr.bf16.mxu0 %v1299
      %2017 = vmatpush1.bf16.msra.mxu0 %v1298
      %2018 = vmatprep.subr.bf16.mxu0 %v1303
      %2019 = vmatpush1.bf16.msra.mxu0 %v1302
      %2020 = vmatprep.subr.bf16.mxu0 %v1307
      %2021 = vmatpush1.bf16.msra.mxu0 %v1306
      %2022 = vmatprep.subr.bf16.mxu0 %v1311
      %2023 = vmatpush1.bf16.msra.mxu0 %v1310
      %2024 = vmatprep.subr.bf16.mxu0 %v1315
      %2025 = vmatpush1.bf16.msra.mxu0 %v1314
      %2026 = vmatprep.subr.bf16.mxu0 %v1319
      %2027 = vmatpush1.bf16.msra.mxu0 %v1318
      %2028 = vmatprep.subr.bf16.mxu0 0
      %2029 = vmatpush1.bf16.msra.mxu0 0
      %2030 = vmatprep.subr.bf16.mxu0 0
      %2031 = vmatpush1.bf16.msra.mxu0 0
      %2032 = vmatprep.subr.bf16.mxu0 0
      %2033 = vmatpush1.bf16.msra.mxu0 0
      %2034 = vmatprep.subr.bf16.mxu0 0
      %2035 = vmatpush1.bf16.msra.mxu0 0
      %2036 = vmatprep.subr.bf16.mxu0 0
      %2037 = vmatpush1.bf16.msra.mxu0 0
      %2038 = vmatprep.subr.bf16.mxu0 0
      %2039 = vmatpush1.bf16.msra.mxu0 0
      %2040 = vmatprep.subr.bf16.mxu0 0
      %2041 = vmatpush1.bf16.msra.mxu0 0
      %2042 = vmatprep.subr.bf16.mxu0 0
      %2043 = vmatpush1.bf16.msra.mxu0 0
      %2044 = vmatprep.mubr.bf16.mxu0 0
      %2045 = vmatmul.mubr.bf16.gmra.mrb[0].mxu0 %v1970
      %v2046 = vpop.f32.mrb[0].mxu0
      %v2047 = vadd.f32 0.0, %v2046
      %v2048 = vpop.f32.mrb[0].mxu0
      %v2049 = vadd.f32 0.0, %v2048
      %v2050 = vpop.f32.mrb[0].mxu0
      %v2051 = vpop.f32.mrb[0].mxu0
      %2052 = vdwg.mxu0
      %v2053 = vadd.f32 %v1966, %v2006
      %v2054 = vadd.f32 %v1967, %v2008
      %v2055 = vadd.f32 %v1968, %v2047
      %v2056 = vadd.f32 %v1969, %v2049
      %v2057 = vsub.f32 0.0, %v2053
      %v2058 = vsub.f32 0.0, %v2054
      %v2059 = vsub.f32 0.0, %v2055
      %v2060 = vmul.f32 %v2057, 1.442695
      %v2061 = vpow.pop %v2060
      %v2062 = vmul.f32 %v2058, 1.442695
      %v2063 = vpow.pop %v2062
      %v2064 = vmul.f32 %v2059, 1.442695
      %v2065 = vpow.pop %v2064
      %v2066 = vadd.f32 %v2061, 1.0
      %v2067 = vadd.f32 %v2063, 1.0
      %v2068 = vadd.f32 %v2065, 1.0
      %v2069 = vrcp.pop %v2066
      %v2070 = vrcp.pop %v2067
      %v2071 = vrcp.pop %v2068
      %v2072 = vtanh.pop %v2056
      %v2073 = vmul.f32 %v2070, %v1846
      %v2074 = vmul.f32 %v2069, %v2072
      %v2075 = vadd.f32 %v2073, %v2074
      %v2076 = vtanh.pop %v2075
      %v2077 = vmul.f32 %v2071, %v2076
      %s2078 = smul.addr %s1734, 8
      %s2079 = scalar_lea.vmem [#allocation3], %s2078
      %v2080 = vld [vmem:[%s2079] sm:$0xff]
      %v2081 = vld [vmem:[%s2079 + $0x8] sm:$0xff]
      %v2082 = vld [vmem:[%s2079 + $0x10] sm:$0xff]
      %v2083 = vld [vmem:[%s2079 + $0x18] sm:$0xff]
      %v2084 = vpack.c.bf16 %v1963, %v1963
      %2085 = vmatprep.subr.bf16.mxu0 %v1564
      %2086 = vmatpush1.bf16.msra.mxu0 %v1563
      %2087 = vmatprep.subr.bf16.mxu0 %v1568
      %2088 = vmatpush1.bf16.msra.mxu0 %v1567
      %2089 = vmatprep.subr.bf16.mxu0 %v1572
      %2090 = vmatpush1.bf16.msra.mxu0 %v1571
      %2091 = vmatprep.subr.bf16.mxu0 %v1576
      %2092 = vmatpush1.bf16.msra.mxu0 %v1575
      %2093 = vmatprep.subr.bf16.mxu0 %v1580
      %2094 = vmatpush1.bf16.msra.mxu0 %v1579
      %2095 = vmatprep.subr.bf16.mxu0 %v1584
      %2096 = vmatpush1.bf16.msra.mxu0 %v1583
      %2097 = vmatprep.subr.bf16.mxu0 %v1588
      %2098 = vmatpush1.bf16.msra.mxu0 %v1587
      %2099 = vmatprep.subr.bf16.mxu0 %v1592
      %2100 = vmatpush1.bf16.msra.mxu0 %v1591
      %2101 = vmatprep.subr.bf16.mxu0 0
      %2102 = vmatpush1.bf16.msra.mxu0 0
      %2103 = vmatprep.subr.bf16.mxu0 0
      %2104 = vmatpush1.bf16.msra.mxu0 0
      %2105 = vmatprep.subr.bf16.mxu0 0
      %2106 = vmatpush1.bf16.msra.mxu0 0
      %2107 = vmatprep.subr.bf16.mxu0 0
      %2108 = vmatpush1.bf16.msra.mxu0 0
      %2109 = vmatprep.subr.bf16.mxu0 0
      %2110 = vmatpush1.bf16.msra.mxu0 0
      %2111 = vmatprep.subr.bf16.mxu0 0
      %2112 = vmatpush1.bf16.msra.mxu0 0
      %2113 = vmatprep.subr.bf16.mxu0 0
      %2114 = vmatpush1.bf16.msra.mxu0 0
      %2115 = vmatprep.subr.bf16.mxu0 0
      %2116 = vmatpush1.bf16.msra.mxu0 0
      %2117 = vmatprep.mubr.bf16.mxu0 0
      %2118 = vmatmul.mubr.bf16.gmra.mrb[0].mxu0 %v2084
      %v2119 = vpop.f32.mrb[0].mxu0
      %v2120 = vadd.f32 0.0, %v2119
      %v2121 = vpop.f32.mrb[0].mxu0
      %v2122 = vadd.f32 0.0, %v2121
      %v2123 = vpop.f32.mrb[0].mxu0
      %v2124 = vpop.f32.mrb[0].mxu0
      %2125 = vdwg.mxu0
      %2126 = vmatprep.subr.bf16.mxu0 %v1566
      %2127 = vmatpush1.bf16.msra.mxu0 %v1565
      %2128 = vmatprep.subr.bf16.mxu0 %v1570
      %2129 = vmatpush1.bf16.msra.mxu0 %v1569
      %2130 = vmatprep.subr.bf16.mxu0 %v1574
      %2131 = vmatpush1.bf16.msra.mxu0 %v1573
      %2132 = vmatprep.subr.bf16.mxu0 %v1578
      %2133 = vmatpush1.bf16.msra.mxu0 %v1577
      %2134 = vmatprep.subr.bf16.mxu0 %v1582
      %2135 = vmatpush1.bf16.msra.mxu0 %v1581
      %2136 = vmatprep.subr.bf16.mxu0 %v1586
      %2137 = vmatpush1.bf16.msra.mxu0 %v1585
      %2138 = vmatprep.subr.bf16.mxu0 %v1590
      %2139 = vmatpush1.bf16.msra.mxu0 %v1589
      %2140 = vmatprep.subr.bf16.mxu0 %v1594
      %2141 = vmatpush1.bf16.msra.mxu0 %v1593
      %2142 = vmatprep.subr.bf16.mxu0 0
      %2143 = vmatpush1.bf16.msra.mxu0 0
      %2144 = vmatprep.subr.bf16.mxu0 0
      %2145 = vmatpush1.bf16.msra.mxu0 0
      %2146 = vmatprep.subr.bf16.mxu0 0
      %2147 = vmatpush1.bf16.msra.mxu0 0
      %2148 = vmatprep.subr.bf16.mxu0 0
      %2149 = vmatpush1.bf16.msra.mxu0 0
      %2150 = vmatprep.subr.bf16.mxu0 0
      %2151 = vmatpush1.bf16.msra.mxu0 0
      %2152 = vmatprep.subr.bf16.mxu0 0
      %2153 = vmatpush1.bf16.msra.mxu0 0
      %2154 = vmatprep.subr.bf16.mxu0 0
      %2155 = vmatpush1.bf16.msra.mxu0 0
      %2156 = vmatprep.subr.bf16.mxu0 0
      %2157 = vmatpush1.bf16.msra.mxu0 0
      %2158 = vmatprep.mubr.bf16.mxu0 0
      %2159 = vmatmul.mubr.bf16.gmra.mrb[0].mxu0 %v2084
      %v2160 = vpop.f32.mrb[0].mxu0
      %v2161 = vadd.f32 0.0, %v2160
      %v2162 = vpop.f32.mrb[0].mxu0
      %v2163 = vadd.f32 0.0, %v2162
      %v2164 = vpop.f32.mrb[0].mxu0
      %v2165 = vpop.f32.mrb[0].mxu0
      %2166 = vdwg.mxu0
      %v2167 = vadd.f32 %v2080, %v2120
      %v2168 = vadd.f32 %v2081, %v2122
      %v2169 = vadd.f32 %v2082, %v2161
      %v2170 = vadd.f32 %v2083, %v2163
      %v2171 = vsub.f32 0.0, %v2167
      %v2172 = vsub.f32 0.0, %v2168
      %v2173 = vsub.f32 0.0, %v2169
      %v2174 = vmul.f32 %v2171, 1.442695
      %v2175 = vpow.pop %v2174
      %v2176 = vmul.f32 %v2172, 1.442695
      %v2177 = vpow.pop %v2176
      %v2178 = vmul.f32 %v2173, 1.442695
      %v2179 = vpow.pop %v2178
      %v2180 = vadd.f32 %v2175, 1.0
      %v2181 = vadd.f32 %v2177, 1.0
      %v2182 = vadd.f32 %v2179, 1.0
      %v2183 = vrcp.pop %v2180
      %v2184 = vrcp.pop %v2181
      %v2185 = vrcp.pop %v2182
      %v2186 = vtanh.pop %v2170
      %v2187 = vmul.f32 %v2184, %v1961
      %v2188 = vmul.f32 %v2183, %v2186
      %v2189 = vadd.f32 %v2187, %v2188
      %v2190 = vtanh.pop %v2189
      %v2191 = vmul.f32 %v2185, %v2190
      %s2192 = smul.addr %s1459, 8
      %s2193 = scalar_lea.vmem [#allocation2], %s2192
      %v2194 = vld [vmem:[%s2193] sm:$0xff]
      %v2195 = vld [vmem:[%s2193 + $0x8] sm:$0xff]
      %v2196 = vld [vmem:[%s2193 + $0x10] sm:$0xff]
      %v2197 = vld [vmem:[%s2193 + $0x18] sm:$0xff]
      %v2198 = vpack.c.bf16 %v2077, %v2077
      %2199 = vmatprep.subr.bf16.mxu0 %v1289
      %2200 = vmatpush1.bf16.msra.mxu0 %v1288
      %2201 = vmatprep.subr.bf16.mxu0 %v1293
      %2202 = vmatpush1.bf16.msra.mxu0 %v1292
      %2203 = vmatprep.subr.bf16.mxu0 %v1297
      %2204 = vmatpush1.bf16.msra.mxu0 %v1296
      %2205 = vmatprep.subr.bf16.mxu0 %v1301
      %2206 = vmatpush1.bf16.msra.mxu0 %v1300
      %2207 = vmatprep.subr.bf16.mxu0 %v1305
      %2208 = vmatpush1.bf16.msra.mxu0 %v1304
      %2209 = vmatprep.subr.bf16.mxu0 %v1309
      %2210 = vmatpush1.bf16.msra.mxu0 %v1308
      %2211 = vmatprep.subr.bf16.mxu0 %v1313
      %2212 = vmatpush1.bf16.msra.mxu0 %v1312
      %2213 = vmatprep.subr.bf16.mxu0 %v1317
      %2214 = vmatpush1.bf16.msra.mxu0 %v1316
      %2215 = vmatprep.subr.bf16.mxu0 0
      %2216 = vmatpush1.bf16.msra.mxu0 0
      %2217 = vmatprep.subr.bf16.mxu0 0
      %2218 = vmatpush1.bf16.msra.mxu0 0
      %2219 = vmatprep.subr.bf16.mxu0 0
      %2220 = vmatpush1.bf16.msra.mxu0 0
      %2221 = vmatprep.subr.bf16.mxu0 0
      %2222 = vmatpush1.bf16.msra.mxu0 0
      %2223 = vmatprep.subr.bf16.mxu0 0
      %2224 = vmatpush1.bf16.msra.mxu0 0
      %2225 = vmatprep.subr.bf16.mxu0 0
      %2226 = vmatpush1.bf16.msra.mxu0 0
      %2227 = vmatprep.subr.bf16.mxu0 0
      %2228 = vmatpush1.bf16.msra.mxu0 0
      %2229 = vmatprep.subr.bf16.mxu0 0
      %2230 = vmatpush1.bf16.msra.mxu0 0
      %2231 = vmatprep.mubr.bf16.mxu0 0
      %2232 = vmatmul.mubr.bf16.gmra.mrb[0].mxu0 %v2198
      %v2233 = vpop.f32.mrb[0].mxu0
      %v2234 = vadd.f32 0.0, %v2233
      %v2235 = vpop.f32.mrb[0].mxu0
      %v2236 = vadd.f32 0.0, %v2235
      %v2237 = vpop.f32.mrb[0].mxu0
      %v2238 = vpop.f32.mrb[0].mxu0
      %2239 = vdwg.mxu0
      %2240 = vmatprep.subr.bf16.mxu0 %v1291
      %2241 = vmatpush1.bf16.msra.mxu0 %v1290
      %2242 = vmatprep.subr.bf16.mxu0 %v1295
      %2243 = vmatpush1.bf16.msra.mxu0 %v1294
      %2244 = vmatprep.subr.bf16.mxu0 %v1299
      %2245 = vmatpush1.bf16.msra.mxu0 %v1298
      %2246 = vmatprep.subr.bf16.mxu0 %v1303
      %2247 = vmatpush1.bf16.msra.mxu0 %v1302
      %2248 = vmatprep.subr.bf16.mxu0 %v1307
      %2249 = vmatpush1.bf16.msra.mxu0 %v1306
      %2250 = vmatprep.subr.bf16.mxu0 %v1311
      %2251 = vmatpush1.bf16.msra.mxu0 %v1310
      %2252 = vmatprep.subr.bf16.mxu0 %v1315
      %2253 = vmatpush1.bf16.msra.mxu0 %v1314
      %2254 = vmatprep.subr.bf16.mxu0 %v1319
      %2255 = vmatpush1.bf16.msra.mxu0 %v1318
      %2256 = vmatprep.subr.bf16.mxu0 0
      %2257 = vmatpush1.bf16.msra.mxu0 0
      %2258 = vmatprep.subr.bf16.mxu0 0
      %2259 = vmatpush1.bf16.msra.mxu0 0
      %2260 = vmatprep.subr.bf16.mxu0 0
      %2261 = vmatpush1.bf16.msra.mxu0 0
      %2262 = vmatprep.subr.bf16.mxu0 0
      %2263 = vmatpush1.bf16.msra.mxu0 0
      %2264 = vmatprep.subr.bf16.mxu0 0
      %2265 = vmatpush1.bf16.msra.mxu0 0
      %2266 = vmatprep.subr.bf16.mxu0 0
      %2267 = vmatpush1.bf16.msra.mxu0 0
      %2268 = vmatprep.subr.bf16.mxu0 0
      %2269 = vmatpush1.bf16.msra.mxu0 0
      %2270 = vmatprep.subr.bf16.mxu0 0
      %2271 = vmatpush1.bf16.msra.mxu0 0
      %2272 = vmatprep.mubr.bf16.mxu0 0
      %2273 = vmatmul.mubr.bf16.gmra.mrb[0].mxu0 %v2198
      %v2274 = vpop.f32.mrb[0].mxu0
      %v2275 = vadd.f32 0.0, %v2274
      %v2276 = vpop.f32.mrb[0].mxu0
      %v2277 = vadd.f32 0.0, %v2276
      %v2278 = vpop.f32.mrb[0].mxu0
      %v2279 = vpop.f32.mrb[0].mxu0
      %2280 = vdwg.mxu0
      %v2281 = vadd.f32 %v2194, %v2234
      %v2282 = vadd.f32 %v2195, %v2236
      %v2283 = vadd.f32 %v2196, %v2275
      %v2284 = vadd.f32 %v2197, %v2277
      %v2285 = vsub.f32 0.0, %v2281
      %v2286 = vsub.f32 0.0, %v2282
      %v2287 = vsub.f32 0.0, %v2283
      %v2288 = vmul.f32 %v2285, 1.442695
      %v2289 = vpow.pop %v2288
      %v2290 = vmul.f32 %v2286, 1.442695
      %v2291 = vpow.pop %v2290
      %v2292 = vmul.f32 %v2287, 1.442695
      %v2293 = vpow.pop %v2292
      %v2294 = vadd.f32 %v2289, 1.0
      %v2295 = vadd.f32 %v2291, 1.0
      %v2296 = vadd.f32 %v2293, 1.0
      %v2297 = vrcp.pop %v2294
      %v2298 = vrcp.pop %v2295
      %v2299 = vrcp.pop %v2296
      %v2300 = vtanh.pop %v2284
      %v2301 = vmul.f32 %v2298, %v2075
      %v2302 = vmul.f32 %v2297, %v2300
      %v2303 = vadd.f32 %v2301, %v2302
      %v2304 = vtanh.pop %v2303
      %v2305 = vmul.f32 %v2299, %v2304
      %s2306 = smul.addr %s1184, 8
      %s2307 = scalar_lea.vmem [#allocation3], %s2306
      %v2308 = vld [vmem:[%s2307] sm:$0xff]
      %v2309 = vld [vmem:[%s2307 + $0x8] sm:$0xff]
      %v2310 = vld [vmem:[%s2307 + $0x10] sm:$0xff]
      %v2311 = vld [vmem:[%s2307 + $0x18] sm:$0xff]
      %v2312 = vpack.c.bf16 %v2191, %v2191
      %2313 = vmatprep.subr.bf16.mxu0 %v1564
      %2314 = vmatpush1.bf16.msra.mxu0 %v1563
      %2315 = vmatprep.subr.bf16.mxu0 %v1568
      %2316 = vmatpush1.bf16.msra.mxu0 %v1567
      %2317 = vmatprep.subr.bf16.mxu0 %v1572
      %2318 = vmatpush1.bf16.msra.mxu0 %v1571
      %2319 = vmatprep.subr.bf16.mxu0 %v1576
      %2320 = vmatpush1.bf16.msra.mxu0 %v1575
      %2321 = vmatprep.subr.bf16.mxu0 %v1580
      %2322 = vmatpush1.bf16.msra.mxu0 %v1579
      %2323 = vmatprep.subr.bf16.mxu0 %v1584
      %2324 = vmatpush1.bf16.msra.mxu0 %v1583
      %2325 = vmatprep.subr.bf16.mxu0 %v1588
      %2326 = vmatpush1.bf16.msra.mxu0 %v1587
      %2327 = vmatprep.subr.bf16.mxu0 %v1592
      %2328 = vmatpush1.bf16.msra.mxu0 %v1591
      %2329 = vmatprep.subr.bf16.mxu0 0
      %2330 = vmatpush1.bf16.msra.mxu0 0
      %2331 = vmatprep.subr.bf16.mxu0 0
      %2332 = vmatpush1.bf16.msra.mxu0 0
      %2333 = vmatprep.subr.bf16.mxu0 0
      %2334 = vmatpush1.bf16.msra.mxu0 0
      %2335 = vmatprep.subr.bf16.mxu0 0
      %2336 = vmatpush1.bf16.msra.mxu0 0
      %2337 = vmatprep.subr.bf16.mxu0 0
      %2338 = vmatpush1.bf16.msra.mxu0 0
      %2339 = vmatprep.subr.bf16.mxu0 0
      %2340 = vmatpush1.bf16.msra.mxu0 0
      %2341 = vmatprep.subr.bf16.mxu0 0
      %2342 = vmatpush1.bf16.msra.mxu0 0
      %2343 = vmatprep.subr.bf16.mxu0 0
      %2344 = vmatpush1.bf16.msra.mxu0 0
      %2345 = vmatprep.mubr.bf16.mxu0 0
      %2346 = vmatmul.mubr.bf16.gmra.mrb[0].mxu0 %v2312
      %v2347 = vpop.f32.mrb[0].mxu0
      %v2348 = vadd.f32 0.0, %v2347
      %v2349 = vpop.f32.mrb[0].mxu0
      %v2350 = vadd.f32 0.0, %v2349
      %v2351 = vpop.f32.mrb[0].mxu0
      %v2352 = vpop.f32.mrb[0].mxu0
      %2353 = vdwg.mxu0
      %2354 = vmatprep.subr.bf16.mxu0 %v1566
      %2355 = vmatpush1.bf16.msra.mxu0 %v1565
      %2356 = vmatprep.subr.bf16.mxu0 %v1570
      %2357 = vmatpush1.bf16.msra.mxu0 %v1569
      %2358 = vmatprep.subr.bf16.mxu0 %v1574
      %2359 = vmatpush1.bf16.msra.mxu0 %v1573
      %2360 = vmatprep.subr.bf16.mxu0 %v1578
      %2361 = vmatpush1.bf16.msra.mxu0 %v1577
      %2362 = vmatprep.subr.bf16.mxu0 %v1582
      %2363 = vmatpush1.bf16.msra.mxu0 %v1581
      %2364 = vmatprep.subr.bf16.mxu0 %v1586
      %2365 = vmatpush1.bf16.msra.mxu0 %v1585
      %2366 = vmatprep.subr.bf16.mxu0 %v1590
      %2367 = vmatpush1.bf16.msra.mxu0 %v1589
      %2368 = vmatprep.subr.bf16.mxu0 %v1594
      %2369 = vmatpush1.bf16.msra.mxu0 %v1593
      %2370 = vmatprep.subr.bf16.mxu0 0
      %2371 = vmatpush1.bf16.msra.mxu0 0
      %2372 = vmatprep.subr.bf16.mxu0 0
      %2373 = vmatpush1.bf16.msra.mxu0 0
      %2374 = vmatprep.subr.bf16.mxu0 0
      %2375 = vmatpush1.bf16.msra.mxu0 0
      %2376 = vmatprep.subr.bf16.mxu0 0
      %2377 = vmatpush1.bf16.msra.mxu0 0
      %2378 = vmatprep.subr.bf16.mxu0 0
      %2379 = vmatpush1.bf16.msra.mxu0 0
      %2380 = vmatprep.subr.bf16.mxu0 0
      %2381 = vmatpush1.bf16.msra.mxu0 0
      %2382 = vmatprep.subr.bf16.mxu0 0
      %2383 = vmatpush1.bf16.msra.mxu0 0
      %2384 = vmatprep.subr.bf16.mxu0 0
      %2385 = vmatpush1.bf16.msra.mxu0 0
      %2386 = vmatprep.mubr.bf16.mxu0 0
      %2387 = vmatmul.mubr.bf16.gmra.mrb[0].mxu0 %v2312
      %v2388 = vpop.f32.mrb[0].mxu0
      %v2389 = vadd.f32 0.0, %v2388
      %v2390 = vpop.f32.mrb[0].mxu0
      %v2391 = vadd.f32 0.0, %v2390
      %v2392 = vpop.f32.mrb[0].mxu0
      %v2393 = vpop.f32.mrb[0].mxu0
      %2394 = vdwg.mxu0
      %v2395 = vadd.f32 %v2308, %v2348
      %v2396 = vadd.f32 %v2309, %v2350
      %v2397 = vadd.f32 %v2310, %v2389
      %v2398 = vadd.f32 %v2311, %v2391
      %v2399 = vsub.f32 0.0, %v2395
      %v2400 = vsub.f32 0.0, %v2396
      %v2401 = vsub.f32 0.0, %v2397
      %v2402 = vmul.f32 %v2399, 1.442695
      %v2403 = vpow.pop %v2402
      %v2404 = vmul.f32 %v2400, 1.442695
      %v2405 = vpow.pop %v2404
      %v2406 = vmul.f32 %v2401, 1.442695
      %v2407 = vpow.pop %v2406
      %v2408 = vadd.f32 %v2403, 1.0
      %v2409 = vadd.f32 %v2405, 1.0
      %v2410 = vadd.f32 %v2407, 1.0
      %v2411 = vrcp.pop %v2408
      %v2412 = vrcp.pop %v2409
      %v2413 = vrcp.pop %v2410
      %v2414 = vtanh.pop %v2398
      %v2415 = vmul.f32 %v2412, %v2189
      %v2416 = vmul.f32 %v2411, %v2414
      %v2417 = vadd.f32 %v2415, %v2416
      %v2418 = vtanh.pop %v2417
      %v2419 = vmul.f32 %v2413, %v2418
      %2420 = vst [vmem:[#allocation4] sm:$0xff] %v2305
      %2421 = vst [vmem:[#allocation5] sm:$0xff] %v2303
      %2422 = vst [vmem:[#allocation6] sm:$0xff] %v2419
      %2423 = vst [vmem:[#allocation7] sm:$0xff] %v2417
      %p2424 = scmp.eq.s32.totalorder %s22, 1
      // Predicated region
      $region69: #{simple_lstm_forward.1} parent=63 // pred_check
        %p2425 = pneg %p2424
      $region70: #{simple_lstm_forward.1} parent=63 // pred_check_branch
        %2427 = sbr.rel (%p2425) target = $region72
      $region71: #{simple_lstm_forward.1} parent=63 // pred_region
        %v2428 = vpack.c.bf16 %v2305, %v2305
        %v2429 = vld [vmem:[%s8] sm:$0xf]
        %v2430 = vld [vmem:[%s8 + $0x4] sm:$0xf]
        %v2431 = vld [vmem:[%s8 + $0x8] sm:$0xf]
        %v2432 = vld [vmem:[%s8 + $0xc] sm:$0xf]
        %v2433 = vld [vmem:[%s8 + $0x10] sm:$0xf]
        %v2434 = vld [vmem:[%s8 + $0x14] sm:$0xf]
        %v2435 = vld [vmem:[%s8 + $0x18] sm:$0xf]
        %v2436 = vld [vmem:[%s8 + $0x1c] sm:$0xf]
        %v2437 = vld [vmem:[%s8 + $0x20] sm:$0xf]
        %v2438 = vld [vmem:[%s8 + $0x24] sm:$0xf]
        %v2439 = vld [vmem:[%s8 + $0x28] sm:$0xf]
        %v2440 = vld [vmem:[%s8 + $0x2c] sm:$0xf]
        %v2441 = vld [vmem:[%s8 + $0x30] sm:$0xf]
        %v2442 = vld [vmem:[%s8 + $0x34] sm:$0xf]
        %v2443 = vld [vmem:[%s8 + $0x38] sm:$0xf]
        %v2444 = vld [vmem:[%s8 + $0x3c] sm:$0xf]
        %v2445 = vpack.c.bf16 %v2419, %v2419
        %v2446 = vld [vmem:[%s9] sm:$0xf]
        %v2447 = vld [vmem:[%s9 + $0x4] sm:$0xf]
        %v2448 = vld [vmem:[%s9 + $0x8] sm:$0xf]
        %v2449 = vld [vmem:[%s9 + $0xc] sm:$0xf]
        %v2450 = vld [vmem:[%s9 + $0x10] sm:$0xf]
        %v2451 = vld [vmem:[%s9 + $0x14] sm:$0xf]
        %v2452 = vld [vmem:[%s9 + $0x18] sm:$0xf]
        %v2453 = vld [vmem:[%s9 + $0x1c] sm:$0xf]
        %v2454 = vld [vmem:[%s9 + $0x20] sm:$0xf]
        %v2455 = vld [vmem:[%s9 + $0x24] sm:$0xf]
        %v2456 = vld [vmem:[%s9 + $0x28] sm:$0xf]
        %v2457 = vld [vmem:[%s9 + $0x2c] sm:$0xf]
        %v2458 = vld [vmem:[%s9 + $0x30] sm:$0xf]
        %v2459 = vld [vmem:[%s9 + $0x34] sm:$0xf]
        %v2460 = vld [vmem:[%s9 + $0x38] sm:$0xf]
        %v2461 = vld [vmem:[%s9 + $0x3c] sm:$0xf]
        %v2478 = vunpack.c.l.b16 %v2446
        %v2479 = vunpack.c.l.b16 %v2447
        %v2480 = vunpack.c.l.b16 %v2448
        %v2481 = vunpack.c.l.b16 %v2449
        %v2482 = vunpack.c.l.b16 %v2450
        %v2483 = vunpack.c.l.b16 %v2451
        %v2484 = vunpack.c.l.b16 %v2452
        %v2485 = vunpack.c.l.b16 %v2453
        %v2486 = vunpack.c.l.b16 %v2454
        %v2487 = vunpack.c.l.b16 %v2455
        %v2488 = vunpack.c.l.b16 %v2456
        %v2489 = vunpack.c.l.b16 %v2457
        %v2490 = vunpack.c.l.b16 %v2458
        %v2491 = vunpack.c.l.b16 %v2459
        %v2492 = vunpack.c.l.b16 %v2460
        %v2493 = vunpack.c.l.b16 %v2461
        %v2494 = vpack.c.b16 %v2479, %v2478
        %v2495 = vpack.c.b16 %v2481, %v2480
        %v2496 = vpack.c.b16 %v2483, %v2482
        %v2497 = vpack.c.b16 %v2485, %v2484
        %v2498 = vpack.c.b16 %v2487, %v2486
        %v2499 = vpack.c.b16 %v2489, %v2488
        %v2500 = vpack.c.b16 %v2491, %v2490
        %v2501 = vpack.c.b16 %v2493, %v2492
        %2510 = vmatprep.subr.bf16.mxu0 0
        %2511 = vmatpush1.bf16.msra.mxu0 %v2494
        %2512 = vmatprep.subr.bf16.mxu0 0
        %2513 = vmatpush1.bf16.msra.mxu0 %v2495
        %2514 = vmatprep.subr.bf16.mxu0 0
        %2515 = vmatpush1.bf16.msra.mxu0 %v2496
        %2516 = vmatprep.subr.bf16.mxu0 0
        %2517 = vmatpush1.bf16.msra.mxu0 %v2497
        %2518 = vmatprep.subr.bf16.mxu0 0
        %2519 = vmatpush1.bf16.msra.mxu0 %v2498
        %2520 = vmatprep.subr.bf16.mxu0 0
        %2521 = vmatpush1.bf16.msra.mxu0 %v2499
        %2522 = vmatprep.subr.bf16.mxu0 0
        %2523 = vmatpush1.bf16.msra.mxu0 %v2500
        %2524 = vmatprep.subr.bf16.mxu0 0
        %2525 = vmatpush1.bf16.msra.mxu0 %v2501
        %2526 = vmatprep.subr.bf16.mxu0 0
        %2527 = vmatpush1.bf16.msra.mxu0 0
        %2528 = vmatprep.subr.bf16.mxu0 0
        %2529 = vmatpush1.bf16.msra.mxu0 0
        %2530 = vmatprep.subr.bf16.mxu0 0
        %2531 = vmatpush1.bf16.msra.mxu0 0
        %2532 = vmatprep.subr.bf16.mxu0 0
        %2533 = vmatpush1.bf16.msra.mxu0 0
        %2534 = vmatprep.subr.bf16.mxu0 0
        %2535 = vmatpush1.bf16.msra.mxu0 0
        %2536 = vmatprep.subr.bf16.mxu0 0
        %2537 = vmatpush1.bf16.msra.mxu0 0
        %2538 = vmatprep.subr.bf16.mxu0 0
        %2539 = vmatpush1.bf16.msra.mxu0 0
        %2540 = vmatprep.subr.bf16.mxu0 0
        %2541 = vmatpush1.bf16.msra.mxu0 0
        %2542 = vmatprep.mubr.bf16.mxu0 0
        %2543 = vmatmul.mubr.bf16.gmra.mrb[0].mxu0 %v2445
        %v2544 = vpop.f32.mrb[0].mxu0
        %v2545 = vadd.f32 0.0, %v2544
        %v2546 = vpop.f32.mrb[0].mxu0
        %v2547 = vpop.f32.mrb[0].mxu0
        %v2548 = vpop.f32.mrb[0].mxu0
        %2549 = vdwg.mxu0
        %v2566 = vunpack.c.l.b16 %v2429
        %v2567 = vunpack.c.l.b16 %v2430
        %v2568 = vunpack.c.l.b16 %v2431
        %v2569 = vunpack.c.l.b16 %v2432
        %v2570 = vunpack.c.l.b16 %v2433
        %v2571 = vunpack.c.l.b16 %v2434
        %v2572 = vunpack.c.l.b16 %v2435
        %v2573 = vunpack.c.l.b16 %v2436
        %v2574 = vunpack.c.l.b16 %v2437
        %v2575 = vunpack.c.l.b16 %v2438
        %v2576 = vunpack.c.l.b16 %v2439
        %v2577 = vunpack.c.l.b16 %v2440
        %v2578 = vunpack.c.l.b16 %v2441
        %v2579 = vunpack.c.l.b16 %v2442
        %v2580 = vunpack.c.l.b16 %v2443
        %v2581 = vunpack.c.l.b16 %v2444
        %v2582 = vpack.c.b16 %v2567, %v2566
        %v2583 = vpack.c.b16 %v2569, %v2568
        %v2584 = vpack.c.b16 %v2571, %v2570
        %v2585 = vpack.c.b16 %v2573, %v2572
        %v2586 = vpack.c.b16 %v2575, %v2574
        %v2587 = vpack.c.b16 %v2577, %v2576
        %v2588 = vpack.c.b16 %v2579, %v2578
        %v2589 = vpack.c.b16 %v2581, %v2580
        %2598 = vmatprep.subr.bf16.mxu0 0
        %2599 = vmatpush1.bf16.msra.mxu0 %v2582
        %2600 = vmatprep.subr.bf16.mxu0 0
        %2601 = vmatpush1.bf16.msra.mxu0 %v2583
        %2602 = vmatprep.subr.bf16.mxu0 0
        %2603 = vmatpush1.bf16.msra.mxu0 %v2584
        %2604 = vmatprep.subr.bf16.mxu0 0
        %2605 = vmatpush1.bf16.msra.mxu0 %v2585
        %2606 = vmatprep.subr.bf16.mxu0 0
        %2607 = vmatpush1.bf16.msra.mxu0 %v2586
        %2608 = vmatprep.subr.bf16.mxu0 0
        %2609 = vmatpush1.bf16.msra.mxu0 %v2587
        %2610 = vmatprep.subr.bf16.mxu0 0
        %2611 = vmatpush1.bf16.msra.mxu0 %v2588
        %2612 = vmatprep.subr.bf16.mxu0 0
        %2613 = vmatpush1.bf16.msra.mxu0 %v2589
        %2614 = vmatprep.subr.bf16.mxu0 0
        %2615 = vmatpush1.bf16.msra.mxu0 0
        %2616 = vmatprep.subr.bf16.mxu0 0
        %2617 = vmatpush1.bf16.msra.mxu0 0
        %2618 = vmatprep.subr.bf16.mxu0 0
        %2619 = vmatpush1.bf16.msra.mxu0 0
        %2620 = vmatprep.subr.bf16.mxu0 0
        %2621 = vmatpush1.bf16.msra.mxu0 0
        %2622 = vmatprep.subr.bf16.mxu0 0
        %2623 = vmatpush1.bf16.msra.mxu0 0
        %2624 = vmatprep.subr.bf16.mxu0 0
        %2625 = vmatpush1.bf16.msra.mxu0 0
        %2626 = vmatprep.subr.bf16.mxu0 0
        %2627 = vmatpush1.bf16.msra.mxu0 0
        %2628 = vmatprep.subr.bf16.mxu0 0
        %2629 = vmatpush1.bf16.msra.mxu0 0
        %2630 = vmatprep.mubr.bf16.mxu0 0
        %2631 = vmatmul.mubr.bf16.gmra.mrb[0].mxu0 %v2428
        %v2632 = vpop.f32.mrb[0].mxu0
        %v2633 = vadd.f32 %v2545, %v2632
        %v2634 = vpop.f32.mrb[0].mxu0
        %v2635 = vpop.f32.mrb[0].mxu0
        %v2636 = vpop.f32.mrb[0].mxu0
        %2637 = vdwg.mxu0
        %v2638 = vld [vmem:[%s10] sm:$0x1]
        %v2640 = vlaneseq
        %v2641 = vshrl.u32 %v2640, 7
        %v2642 = vsub.s32 0, %v2641
        %v2643 = vrot.slane %v2638, %v2642
        %v2645 = vadd.f32 %v2633, %v2643
        %2646 = vst [vmem:[%s11] sm:$0xff] %v2645
      $region72: #{simple_lstm_forward.1} parent=63 // pred_fallthru
        _
      // Predicated region
      $region73: #{simple_lstm_forward.1} parent=63 // pred_check
        %p2647 = pneg %p278
      $region74: #{simple_lstm_forward.1} parent=63 // pred_check_branch
        %2649 = sbr.rel (%p2647) target = $region76
      $region75: #{simple_lstm_forward.1} parent=63 // pred_region
        _
      $region76: #{simple_lstm_forward.1} parent=63 // pred_fallthru
        _
      // Predicated region
      $region77: #{simple_lstm_forward.1} parent=63 // pred_check
        %p2650 = pneg %p278
      $region78: #{simple_lstm_forward.1} parent=63 // pred_check_branch
        %2652 = sbr.rel (%p2650) target = $region80
      $region79: #{simple_lstm_forward.1} parent=63 // pred_region
        _
      $region80: #{simple_lstm_forward.1} parent=63 // pred_fallthru
        _
    $region64: #{simple_lstm_forward.1} parent=5 // pred_fallthru
      _
    %p2653 = scmp.le.s32.totalorder 2, %s17
    // Predicated region
    $region81: #{simple_lstm_forward.1} parent=5 // pred_check
      %p2654 = pneg %p2653
    $region82: #{simple_lstm_forward.1} parent=5 // pred_check_branch
      %2656 = sbr.rel (%p2654) target = $region84
    $region83: #{simple_lstm_forward.1} parent=5 // pred_region
      %s2657 = ssub.s32 %s17, 2
    $region84: #{simple_lstm_forward.1} parent=5 // pred_fallthru
      _
  $region6: #{simple_lstm_forward.1} parent=0 // loop_footer
    %s21 = sadd.s32 1, %s17
  $region7: #{simple_lstm_forward.1} parent=0 // loop_footer_branch
    %16 = sbr.rel target = $region3
  $region8: #{simple_lstm_forward.1} parent=0 // loop_exit
    _

</llo_original>
